<compile_context>
chip_gen: v6e
topology: v6e:2x2x1
jax: 0.10.0
libtpu: 0.0.40
codegen_flags: <defaults>
</compile_context>

<pallas_src>
import jax
import jax.numpy as jnp
from jax.experimental import pallas as pl
from jax.experimental.pallas import tpu as pltpu

BN_EPS = 1e-5
DIMS = [64, 512, 512, 512, 256, 128, 18]
HID = (512, 512, 512, 256, 128)           # widths of the 5 BN layers
OUT_DIM = DIMS[-1]                        # 18
OUT_PAD = 128                             # lane-dense padded output width

# Static offsets of the [gamma_i | beta_i] segments inside the packed vector,
# followed by the zero-padded final bias.  All offsets are multiples of 128.
_GB_OFFS = []
_off = 0
for _n in HID:
    _GB_OFFS.append(_off)
    _off += 2 * _n
_GB_OFFS = tuple(_GB_OFFS)                # (0, 1024, 2048, 3072, 3584)
_B6_OFF = _off                            # 3840
VEC_LEN = _off + OUT_PAD                  # 3968 = 31 * 128


def _decoder_att_fused_kernel(
    x_ref, w1_ref, vec_ref,                    # auto-DMA'd VMEM inputs
    w2_hbm, w3_hbm, w4_hbm, w5_hbm, w6_hbm,    # HBM refs (manual DMA)
    o_ref,                                     # (B, 128) VMEM output
    w2_v, w3_v, w4_v, w5_v, w6_v, sem,         # VMEM scratch + DMA semaphores
):
    # --- Kick off all large weight HBM->VMEM copies immediately (in order of
    # use) so they overlap with the serial matmul->BN compute chain. ---------
    srcs = (w2_hbm, w3_hbm, w4_hbm, w5_hbm, w6_hbm)
    dsts = (w2_v, w3_v, w4_v, w5_v, w6_v)
    copies = []
    for i in range(5):
        cp = pltpu.make_async_copy(srcs[i], dsts[i], sem.at[i])
        cp.start()
        copies.append(cp)

    B = x_ref.shape[0]
    inv_b = jnp.float32(1.0 / B)

    def bn_relu(y, li):
        """Training-mode BatchNorm1d + affine + ReLU (fused scale/shift FMA).

        Single-pass batch statistics; normalize+affine folded into one FMA on
        the wide (B, N) tensor.  All arithmetic in f32 (v5e-safe); result is
        cast to bf16 once, as the next layer's MXU LHS.
        """
        n = HID[li]
        off = _GB_OFFS[li]
        g = vec_ref[:, off:off + n]                    # (1, n) f32
        bt = vec_ref[:, off + n:off + 2 * n]           # (1, n) f32
        mean = jnp.sum(y, axis=0, keepdims=True) * inv_b
        mean_sq = jnp.sum(y * y, axis=0, keepdims=True) * inv_b
        var = jnp.maximum(mean_sq - mean * mean, 0.0)
        scale = g * jax.lax.rsqrt(var + BN_EPS)        # EUP rsqrt (free slot)
        shift = bt - mean * scale
        return jnp.maximum(y * scale + shift, 0.0).astype(jnp.bfloat16)

    x = x_ref[...].astype(jnp.bfloat16)

    # Layer 1: w1 (64 KB) arrived via the cheap BlockSpec prologue DMA, so
    # compute starts while the large manual weight copies are still in flight.
    # (Linear bias dropped: cancelled exactly by the BN mean subtraction.)
    y = jnp.dot(x, w1_ref[...], preferred_element_type=jnp.float32)
    x = bn_relu(y, 0)

    # Layers 2..5: wait on each weight only right before its matmul.
    for li, (cp, w_v) in enumerate(
        ((copies[0], w2_v), (copies[1], w3_v),
         (copies[2], w4_v), (copies[3], w5_v)),
        start=1,
    ):
        cp.wait()
        y = jnp.dot(x, w_v[...], preferred_element_type=jnp.float32)
        x = bn_relu(y, li)

    # Final Linear (bias kept), lane-dense padded (B, 128) output store.
    copies[4].wait()
    b6 = vec_ref[:, _B6_OFF:_B6_OFF + OUT_PAD]
    y = jnp.dot(x, w6_v[...], preferred_element_type=jnp.float32) + b6
    o_ref[...] = y.astype(o_ref.dtype)


def decoder_att_forward_fused(z, kparams):
    """Single fused pallas_call over the whole 6-layer MLP."""
    B = z.shape[0]
    vmem = pl.BlockSpec(memory_space=pltpu.MemorySpace.VMEM)
    hbm = pl.BlockSpec(memory_space=pl.ANY)

    w_scratch = [
        pltpu.VMEM((DIMS[i], DIMS[i + 1]), jnp.bfloat16) for i in range(1, 5)
    ] + [pltpu.VMEM((DIMS[5], OUT_PAD), jnp.bfloat16)]

    out_pad = pl.pallas_call(
        _decoder_att_fused_kernel,
        out_shape=jax.ShapeDtypeStruct((B, OUT_PAD), jnp.float32),
        in_specs=[vmem, vmem, vmem] + [hbm] * 5,
        out_specs=vmem,
        scratch_shapes=w_scratch + [pltpu.SemaphoreType.DMA((5,))],
    )(z, kparams["w1"], kparams["vec"], *kparams["w_hbm"])

    return out_pad[:, :OUT_DIM]


decoder_att_forward = jax.jit(decoder_att_forward_fused)


def init_decoder_att_params(key, latent_dim=64):
    """Deterministic synthetic parameters matching decoder_att's shapes.

    Returns:
      layers:   per-layer dicts (f32 bias, bf16 transposed weight, BN affine)
                used by the pure-JAX reference.
      kparams:  packed kernel operands:
                  "w1":    (64, 512) bf16        auto-DMA'd VMEM input
                  "w_hbm": 5 bf16 weights        HBM-resident, manually DMA'd
                  "vec":   (1, 3968) f32         all gammas/betas + padded b6
    """
    dims = [latent_dim] + DIMS[1:]
    layers = []
    for i in range(len(dims) - 1):
        fan_in, fan_out = dims[i], dims[i + 1]
        key, kw, kb, kg, kbeta = jax.random.split(key, 5)
        bound = 1.0 / float(fan_in) ** 0.5
        w = jax.random.uniform(kw, (fan_out, fan_in), jnp.float32, -bound, bound)
        b = jax.random.uniform(kb, (1, fan_out), jnp.float32, -bound, bound)
        layer = {"w_t": w.T.astype(jnp.bfloat16), "b": b}
        if i < len(dims) - 2:
            layer["gamma"] = 1.0 + 0.1 * jax.random.normal(kg, (1, fan_out), jnp.float32)
            layer["beta"] = 0.1 * jax.random.normal(kbeta, (1, fan_out), jnp.float32)
        layers.append(layer)

    # Kernel-side packed operands.
    w6_pad = jnp.pad(layers[-1]["w_t"], ((0, 0), (0, OUT_PAD - OUT_DIM)))
    b6_pad = jnp.pad(layers[-1]["b"], ((0, 0), (0, OUT_PAD - OUT_DIM)))
    segs = []
    for layer in layers[:-1]:
        segs += [layer["gamma"], layer["beta"]]
    segs.append(b6_pad)
    vec = jnp.concatenate(segs, axis=1)
    assert vec.shape == (1, VEC_LEN), vec.shape

    kparams = {
        "w1": layers[0]["w_t"],
        "w_hbm": tuple(layer["w_t"] for layer in layers[1:-1])
                 + (w6_pad.astype(jnp.bfloat16),),
        "vec": vec,
    }
    return layers, kparams


def reference_forward(z, layers, matmul_dtype=jnp.float32):
    """Pure-JAX reference with PyTorch-faithful structure (Linear biases kept,
    two-pass training-mode BN).  `matmul_dtype=bfloat16` reproduces the
    kernel's MXU operand precision for a tight comparison."""
    x = z.astype(jnp.float32)
    for layer in layers[:-1]:
        w = layer["w_t"].astype(matmul_dtype)
        y = jnp.dot(x.astype(matmul_dtype), w,
                    preferred_element_type=jnp.float32) + layer["b"]
        mean = jnp.mean(y, axis=0, keepdims=True)
        var = jnp.mean((y - mean) ** 2, axis=0, keepdims=True)
        y = (y - mean) / jnp.sqrt(var + BN_EPS) * layer["gamma"] + layer["beta"]
        x = jnp.maximum(y, 0.0)
    last = layers[-1]
    return jnp.dot(x.astype(matmul_dtype), last["w_t"].astype(matmul_dtype),
                   preferred_element_type=jnp.float32) + last["b"]


if __name__ == "__main__":
    key = jax.random.PRNGKey(0)
    k_params, k_z = jax.random.split(key)

    B, LATENT = 8, 64
    layers, kparams = init_decoder_att_params(k_params, latent_dim=LATENT)
    z = jax.random.normal(k_z, (B, LATENT), jnp.float32)

    out = decoder_att_forward(z, kparams)
    out = jax.block_until_ready(out)
    assert out.shape == (B, OUT_DIM), out.shape

    # Tight check: reference with the same bf16 matmul-operand precision
    # (remaining differences: dropped-but-cancelled biases, 1-pass vs 2-pass
    # BN statistics, fused scale/shift FMA).
    ref_matched = reference_forward(z, layers, matmul_dtype=jnp.bfloat16)
    err_matched = float(jnp.max(jnp.abs(out - ref_matched)))
    assert err_matched < 1e-2, f"mismatch vs matched-precision reference: {err_matched}"

    # Loose check: full-f32 reference (difference is only the bf16 operand
    # quantization inside the matmuls).
    ref_f32 = reference_forward(z, layers, matmul_dtype=jnp.float32)
    err_f32 = float(jnp.max(jnp.abs(out - ref_f32)))
    assert err_f32 < 1e-1, f"mismatch vs f32 reference: {err_f32}"

    print("KERNEL_OK")
</pallas_src>

<mosaic_0001>
module attributes {stable_mosaic.version = 11 : i64} {
  func.func @_decoder_att_fused_kernel(%arg0: memref<8x64xf32, #tpu.memory_space<vmem>>, %arg1: memref<64x512xbf16, #tpu.memory_space<vmem>>, %arg2: memref<1x3968xf32, #tpu.memory_space<vmem>>, %arg3: memref<512x512xbf16, #tpu.memory_space<any>>, %arg4: memref<512x512xbf16, #tpu.memory_space<any>>, %arg5: memref<512x256xbf16, #tpu.memory_space<any>>, %arg6: memref<256x128xbf16, #tpu.memory_space<any>>, %arg7: memref<128x128xbf16, #tpu.memory_space<any>>, %arg8: memref<8x128xf32, #tpu.memory_space<vmem>>, %arg9: memref<512x512xbf16, #tpu.memory_space<vmem>>, %arg10: memref<512x512xbf16, #tpu.memory_space<vmem>>, %arg11: memref<512x256xbf16, #tpu.memory_space<vmem>>, %arg12: memref<256x128xbf16, #tpu.memory_space<vmem>>, %arg13: memref<128x128xbf16, #tpu.memory_space<vmem>>, %arg14: memref<5x!tpu.dma_semaphore, #tpu.memory_space<semaphore_mem>>) attributes {dimension_semantics = [], scalar_prefetch = 0 : i64, scratch_operands = 6 : i64, tpu.core_type = #tpu.core_type<tc>} {
    %c0_i32 = arith.constant 0 : i32
    %0 = tpu.memref_slice %arg14[%c0_i32] : memref<5x!tpu.dma_semaphore, #tpu.memory_space<semaphore_mem>> -> memref<1x!tpu.dma_semaphore, #tpu.memory_space<semaphore_mem>>
    %1 = tpu.memref_squeeze %0 : memref<1x!tpu.dma_semaphore, #tpu.memory_space<semaphore_mem>> -> memref<!tpu.dma_semaphore, #tpu.memory_space<semaphore_mem>>
    tpu.enqueue_dma source(%arg3 : memref<512x512xbf16, #tpu.memory_space<any>>) target(%arg9 : memref<512x512xbf16, #tpu.memory_space<vmem>>) target_semaphore(%1 : memref<!tpu.dma_semaphore, #tpu.memory_space<semaphore_mem>>)
    %c1_i32 = arith.constant 1 : i32
    %2 = tpu.memref_slice %arg14[%c1_i32] : memref<5x!tpu.dma_semaphore, #tpu.memory_space<semaphore_mem>> -> memref<1x!tpu.dma_semaphore, #tpu.memory_space<semaphore_mem>>
    %3 = tpu.memref_squeeze %2 : memref<1x!tpu.dma_semaphore, #tpu.memory_space<semaphore_mem>> -> memref<!tpu.dma_semaphore, #tpu.memory_space<semaphore_mem>>
    tpu.enqueue_dma source(%arg4 : memref<512x512xbf16, #tpu.memory_space<any>>) target(%arg10 : memref<512x512xbf16, #tpu.memory_space<vmem>>) target_semaphore(%3 : memref<!tpu.dma_semaphore, #tpu.memory_space<semaphore_mem>>)
    %c2_i32 = arith.constant 2 : i32
    %4 = tpu.memref_slice %arg14[%c2_i32] : memref<5x!tpu.dma_semaphore, #tpu.memory_space<semaphore_mem>> -> memref<1x!tpu.dma_semaphore, #tpu.memory_space<semaphore_mem>>
    %5 = tpu.memref_squeeze %4 : memref<1x!tpu.dma_semaphore, #tpu.memory_space<semaphore_mem>> -> memref<!tpu.dma_semaphore, #tpu.memory_space<semaphore_mem>>
    tpu.enqueue_dma source(%arg5 : memref<512x256xbf16, #tpu.memory_space<any>>) target(%arg11 : memref<512x256xbf16, #tpu.memory_space<vmem>>) target_semaphore(%5 : memref<!tpu.dma_semaphore, #tpu.memory_space<semaphore_mem>>)
    %c3_i32 = arith.constant 3 : i32
    %6 = tpu.memref_slice %arg14[%c3_i32] : memref<5x!tpu.dma_semaphore, #tpu.memory_space<semaphore_mem>> -> memref<1x!tpu.dma_semaphore, #tpu.memory_space<semaphore_mem>>
    %7 = tpu.memref_squeeze %6 : memref<1x!tpu.dma_semaphore, #tpu.memory_space<semaphore_mem>> -> memref<!tpu.dma_semaphore, #tpu.memory_space<semaphore_mem>>
    tpu.enqueue_dma source(%arg6 : memref<256x128xbf16, #tpu.memory_space<any>>) target(%arg12 : memref<256x128xbf16, #tpu.memory_space<vmem>>) target_semaphore(%7 : memref<!tpu.dma_semaphore, #tpu.memory_space<semaphore_mem>>)
    %c4_i32 = arith.constant 4 : i32
    %8 = tpu.memref_slice %arg14[%c4_i32] : memref<5x!tpu.dma_semaphore, #tpu.memory_space<semaphore_mem>> -> memref<1x!tpu.dma_semaphore, #tpu.memory_space<semaphore_mem>>
    %9 = tpu.memref_squeeze %8 : memref<1x!tpu.dma_semaphore, #tpu.memory_space<semaphore_mem>> -> memref<!tpu.dma_semaphore, #tpu.memory_space<semaphore_mem>>
    tpu.enqueue_dma source(%arg7 : memref<128x128xbf16, #tpu.memory_space<any>>) target(%arg13 : memref<128x128xbf16, #tpu.memory_space<vmem>>) target_semaphore(%9 : memref<!tpu.dma_semaphore, #tpu.memory_space<semaphore_mem>>)
    %c0 = arith.constant 0 : index
    %c0_0 = arith.constant 0 : index
    %10 = vector.load %arg0[%c0, %c0_0] : memref<8x64xf32, #tpu.memory_space<vmem>>, vector<8x64xf32>
    %11 = arith.truncf %10 : vector<8x64xf32> to vector<8x64xbf16>
    %c0_1 = arith.constant 0 : index
    %c0_2 = arith.constant 0 : index
    %12 = vector.load %arg1[%c0_1, %c0_2] : memref<64x512xbf16, #tpu.memory_space<vmem>>, vector<64x512xbf16>
    %cst = arith.constant dense<0.000000e+00> : vector<8x512xf32>
    %13 = tpu.matmul %11, %12, %cst {dimension_numbers = #tpu.dot_dimension_numbers<[1], [0], [0], [1], [0, 0, 1, 1], [], []>} : vector<8x64xbf16>, vector<64x512xbf16>, vector<8x512xf32> -> vector<8x512xf32>
    %c0_3 = arith.constant 0 : index
    %c0_4 = arith.constant 0 : index
    %14 = vector.load %arg2[%c0_3, %c0_4] : memref<1x3968xf32, #tpu.memory_space<vmem>>, vector<1x512xf32>
    %c0_5 = arith.constant 0 : index
    %c512 = arith.constant 512 : index
    %15 = vector.load %arg2[%c0_5, %c512] : memref<1x3968xf32, #tpu.memory_space<vmem>>, vector<1x512xf32>
    %cst_6 = arith.constant dense<0.000000e+00> : vector<512xf32>
    %16 = vector.multi_reduction <add>, %13, %cst_6 [0] : vector<8x512xf32> to vector<512xf32>
    %17 = vector.shape_cast %16 : vector<512xf32> to vector<1x512xf32>
    %cst_7 = arith.constant 1.250000e-01 : f32
    %18 = vector.broadcast %cst_7 : f32 to vector<1x512xf32>
    %19 = arith.mulf %17, %18 : vector<1x512xf32>
    %20 = arith.mulf %13, %13 : vector<8x512xf32>
    %cst_8 = arith.constant dense<0.000000e+00> : vector<512xf32>
    %21 = vector.multi_reduction <add>, %20, %cst_8 [0] : vector<8x512xf32> to vector<512xf32>
    %22 = vector.shape_cast %21 : vector<512xf32> to vector<1x512xf32>
    %cst_9 = arith.constant 1.250000e-01 : f32
    %23 = vector.broadcast %cst_9 : f32 to vector<1x512xf32>
    %24 = arith.mulf %22, %23 : vector<1x512xf32>
    %25 = arith.mulf %19, %19 : vector<1x512xf32>
    %26 = arith.subf %24, %25 : vector<1x512xf32>
    %cst_10 = arith.constant 0.000000e+00 : f32
    %27 = vector.broadcast %cst_10 : f32 to vector<1x512xf32>
    %28 = arith.maximumf %26, %27 : vector<1x512xf32>
    %cst_11 = arith.constant 9.99999974E-6 : f32
    %29 = vector.broadcast %cst_11 : f32 to vector<1x512xf32>
    %30 = arith.addf %28, %29 : vector<1x512xf32>
    %31 = math.rsqrt %30 : vector<1x512xf32>
    %32 = arith.mulf %14, %31 : vector<1x512xf32>
    %33 = arith.mulf %19, %32 : vector<1x512xf32>
    %34 = arith.subf %15, %33 : vector<1x512xf32>
    %35 = vector.broadcast %32 : vector<1x512xf32> to vector<8x512xf32>
    %36 = arith.mulf %13, %35 : vector<8x512xf32>
    %37 = vector.broadcast %34 : vector<1x512xf32> to vector<8x512xf32>
    %38 = arith.addf %36, %37 : vector<8x512xf32>
    %cst_12 = arith.constant 0.000000e+00 : f32
    %39 = vector.broadcast %cst_12 : f32 to vector<8x512xf32>
    %40 = arith.maximumf %38, %39 : vector<8x512xf32>
    %41 = arith.truncf %40 : vector<8x512xf32> to vector<8x512xbf16>
    %c0_i32_13 = arith.constant 0 : i32
    %42 = tpu.memref_slice %arg14[%c0_i32_13] : memref<5x!tpu.dma_semaphore, #tpu.memory_space<semaphore_mem>> -> memref<1x!tpu.dma_semaphore, #tpu.memory_space<semaphore_mem>>
    %43 = tpu.memref_squeeze %42 : memref<1x!tpu.dma_semaphore, #tpu.memory_space<semaphore_mem>> -> memref<!tpu.dma_semaphore, #tpu.memory_space<semaphore_mem>>
    tpu.wait_dma2 semaphore(%43 : memref<!tpu.dma_semaphore, #tpu.memory_space<semaphore_mem>>) src(%arg3 : memref<512x512xbf16, #tpu.memory_space<any>>) dst(%arg9 : memref<512x512xbf16, #tpu.memory_space<vmem>>)
    %c0_14 = arith.constant 0 : index
    %c0_15 = arith.constant 0 : index
    %44 = vector.load %arg9[%c0_14, %c0_15] : memref<512x512xbf16, #tpu.memory_space<vmem>>, vector<512x512xbf16>
    %cst_16 = arith.constant dense<0.000000e+00> : vector<8x512xf32>
    %45 = tpu.matmul %41, %44, %cst_16 {dimension_numbers = #tpu.dot_dimension_numbers<[1], [0], [0], [1], [0, 0, 1, 1], [], []>} : vector<8x512xbf16>, vector<512x512xbf16>, vector<8x512xf32> -> vector<8x512xf32>
    %c0_17 = arith.constant 0 : index
    %c1024 = arith.constant 1024 : index
    %46 = vector.load %arg2[%c0_17, %c1024] : memref<1x3968xf32, #tpu.memory_space<vmem>>, vector<1x512xf32>
    %c0_18 = arith.constant 0 : index
    %c1536 = arith.constant 1536 : index
    %47 = vector.load %arg2[%c0_18, %c1536] : memref<1x3968xf32, #tpu.memory_space<vmem>>, vector<1x512xf32>
    %cst_19 = arith.constant dense<0.000000e+00> : vector<512xf32>
    %48 = vector.multi_reduction <add>, %45, %cst_19 [0] : vector<8x512xf32> to vector<512xf32>
    %49 = vector.shape_cast %48 : vector<512xf32> to vector<1x512xf32>
    %cst_20 = arith.constant 1.250000e-01 : f32
    %50 = vector.broadcast %cst_20 : f32 to vector<1x512xf32>
    %51 = arith.mulf %49, %50 : vector<1x512xf32>
    %52 = arith.mulf %45, %45 : vector<8x512xf32>
    %cst_21 = arith.constant dense<0.000000e+00> : vector<512xf32>
    %53 = vector.multi_reduction <add>, %52, %cst_21 [0] : vector<8x512xf32> to vector<512xf32>
    %54 = vector.shape_cast %53 : vector<512xf32> to vector<1x512xf32>
    %cst_22 = arith.constant 1.250000e-01 : f32
    %55 = vector.broadcast %cst_22 : f32 to vector<1x512xf32>
    %56 = arith.mulf %54, %55 : vector<1x512xf32>
    %57 = arith.mulf %51, %51 : vector<1x512xf32>
    %58 = arith.subf %56, %57 : vector<1x512xf32>
    %cst_23 = arith.constant 0.000000e+00 : f32
    %59 = vector.broadcast %cst_23 : f32 to vector<1x512xf32>
    %60 = arith.maximumf %58, %59 : vector<1x512xf32>
    %cst_24 = arith.constant 9.99999974E-6 : f32
    %61 = vector.broadcast %cst_24 : f32 to vector<1x512xf32>
    %62 = arith.addf %60, %61 : vector<1x512xf32>
    %63 = math.rsqrt %62 : vector<1x512xf32>
    %64 = arith.mulf %46, %63 : vector<1x512xf32>
    %65 = arith.mulf %51, %64 : vector<1x512xf32>
    %66 = arith.subf %47, %65 : vector<1x512xf32>
    %67 = vector.broadcast %64 : vector<1x512xf32> to vector<8x512xf32>
    %68 = arith.mulf %45, %67 : vector<8x512xf32>
    %69 = vector.broadcast %66 : vector<1x512xf32> to vector<8x512xf32>
    %70 = arith.addf %68, %69 : vector<8x512xf32>
    %cst_25 = arith.constant 0.000000e+00 : f32
    %71 = vector.broadcast %cst_25 : f32 to vector<8x512xf32>
    %72 = arith.maximumf %70, %71 : vector<8x512xf32>
    %73 = arith.truncf %72 : vector<8x512xf32> to vector<8x512xbf16>
    %c1_i32_26 = arith.constant 1 : i32
    %74 = tpu.memref_slice %arg14[%c1_i32_26] : memref<5x!tpu.dma_semaphore, #tpu.memory_space<semaphore_mem>> -> memref<1x!tpu.dma_semaphore, #tpu.memory_space<semaphore_mem>>
    %75 = tpu.memref_squeeze %74 : memref<1x!tpu.dma_semaphore, #tpu.memory_space<semaphore_mem>> -> memref<!tpu.dma_semaphore, #tpu.memory_space<semaphore_mem>>
    tpu.wait_dma2 semaphore(%75 : memref<!tpu.dma_semaphore, #tpu.memory_space<semaphore_mem>>) src(%arg4 : memref<512x512xbf16, #tpu.memory_space<any>>) dst(%arg10 : memref<512x512xbf16, #tpu.memory_space<vmem>>)
    %c0_27 = arith.constant 0 : index
    %c0_28 = arith.constant 0 : index
    %76 = vector.load %arg10[%c0_27, %c0_28] : memref<512x512xbf16, #tpu.memory_space<vmem>>, vector<512x512xbf16>
    %cst_29 = arith.constant dense<0.000000e+00> : vector<8x512xf32>
    %77 = tpu.matmul %73, %76, %cst_29 {dimension_numbers = #tpu.dot_dimension_numbers<[1], [0], [0], [1], [0, 0, 1, 1], [], []>} : vector<8x512xbf16>, vector<512x512xbf16>, vector<8x512xf32> -> vector<8x512xf32>
    %c0_30 = arith.constant 0 : index
    %c2048 = arith.constant 2048 : index
    %78 = vector.load %arg2[%c0_30, %c2048] : memref<1x3968xf32, #tpu.memory_space<vmem>>, vector<1x512xf32>
    %c0_31 = arith.constant 0 : index
    %c2560 = arith.constant 2560 : index
    %79 = vector.load %arg2[%c0_31, %c2560] : memref<1x3968xf32, #tpu.memory_space<vmem>>, vector<1x512xf32>
    %cst_32 = arith.constant dense<0.000000e+00> : vector<512xf32>
    %80 = vector.multi_reduction <add>, %77, %cst_32 [0] : vector<8x512xf32> to vector<512xf32>
    %81 = vector.shape_cast %80 : vector<512xf32> to vector<1x512xf32>
    %cst_33 = arith.constant 1.250000e-01 : f32
    %82 = vector.broadcast %cst_33 : f32 to vector<1x512xf32>
    %83 = arith.mulf %81, %82 : vector<1x512xf32>
    %84 = arith.mulf %77, %77 : vector<8x512xf32>
    %cst_34 = arith.constant dense<0.000000e+00> : vector<512xf32>
    %85 = vector.multi_reduction <add>, %84, %cst_34 [0] : vector<8x512xf32> to vector<512xf32>
    %86 = vector.shape_cast %85 : vector<512xf32> to vector<1x512xf32>
    %cst_35 = arith.constant 1.250000e-01 : f32
    %87 = vector.broadcast %cst_35 : f32 to vector<1x512xf32>
    %88 = arith.mulf %86, %87 : vector<1x512xf32>
    %89 = arith.mulf %83, %83 : vector<1x512xf32>
    %90 = arith.subf %88, %89 : vector<1x512xf32>
    %cst_36 = arith.constant 0.000000e+00 : f32
    %91 = vector.broadcast %cst_36 : f32 to vector<1x512xf32>
    %92 = arith.maximumf %90, %91 : vector<1x512xf32>
    %cst_37 = arith.constant 9.99999974E-6 : f32
    %93 = vector.broadcast %cst_37 : f32 to vector<1x512xf32>
    %94 = arith.addf %92, %93 : vector<1x512xf32>
    %95 = math.rsqrt %94 : vector<1x512xf32>
    %96 = arith.mulf %78, %95 : vector<1x512xf32>
    %97 = arith.mulf %83, %96 : vector<1x512xf32>
    %98 = arith.subf %79, %97 : vector<1x512xf32>
    %99 = vector.broadcast %96 : vector<1x512xf32> to vector<8x512xf32>
    %100 = arith.mulf %77, %99 : vector<8x512xf32>
    %101 = vector.broadcast %98 : vector<1x512xf32> to vector<8x512xf32>
    %102 = arith.addf %100, %101 : vector<8x512xf32>
    %cst_38 = arith.constant 0.000000e+00 : f32
    %103 = vector.broadcast %cst_38 : f32 to vector<8x512xf32>
    %104 = arith.maximumf %102, %103 : vector<8x512xf32>
    %105 = arith.truncf %104 : vector<8x512xf32> to vector<8x512xbf16>
    %c2_i32_39 = arith.constant 2 : i32
    %106 = tpu.memref_slice %arg14[%c2_i32_39] : memref<5x!tpu.dma_semaphore, #tpu.memory_space<semaphore_mem>> -> memref<1x!tpu.dma_semaphore, #tpu.memory_space<semaphore_mem>>
    %107 = tpu.memref_squeeze %106 : memref<1x!tpu.dma_semaphore, #tpu.memory_space<semaphore_mem>> -> memref<!tpu.dma_semaphore, #tpu.memory_space<semaphore_mem>>
    tpu.wait_dma2 semaphore(%107 : memref<!tpu.dma_semaphore, #tpu.memory_space<semaphore_mem>>) src(%arg5 : memref<512x256xbf16, #tpu.memory_space<any>>) dst(%arg11 : memref<512x256xbf16, #tpu.memory_space<vmem>>)
    %c0_40 = arith.constant 0 : index
    %c0_41 = arith.constant 0 : index
    %108 = vector.load %arg11[%c0_40, %c0_41] : memref<512x256xbf16, #tpu.memory_space<vmem>>, vector<512x256xbf16>
    %cst_42 = arith.constant dense<0.000000e+00> : vector<8x256xf32>
    %109 = tpu.matmul %105, %108, %cst_42 {dimension_numbers = #tpu.dot_dimension_numbers<[1], [0], [0], [1], [0, 0, 1, 1], [], []>} : vector<8x512xbf16>, vector<512x256xbf16>, vector<8x256xf32> -> vector<8x256xf32>
    %c0_43 = arith.constant 0 : index
    %c3072 = arith.constant 3072 : index
    %110 = vector.load %arg2[%c0_43, %c3072] : memref<1x3968xf32, #tpu.memory_space<vmem>>, vector<1x256xf32>
    %c0_44 = arith.constant 0 : index
    %c3328 = arith.constant 3328 : index
    %111 = vector.load %arg2[%c0_44, %c3328] : memref<1x3968xf32, #tpu.memory_space<vmem>>, vector<1x256xf32>
    %cst_45 = arith.constant dense<0.000000e+00> : vector<256xf32>
    %112 = vector.multi_reduction <add>, %109, %cst_45 [0] : vector<8x256xf32> to vector<256xf32>
    %113 = vector.shape_cast %112 : vector<256xf32> to vector<1x256xf32>
    %cst_46 = arith.constant 1.250000e-01 : f32
    %114 = vector.broadcast %cst_46 : f32 to vector<1x256xf32>
    %115 = arith.mulf %113, %114 : vector<1x256xf32>
    %116 = arith.mulf %109, %109 : vector<8x256xf32>
    %cst_47 = arith.constant dense<0.000000e+00> : vector<256xf32>
    %117 = vector.multi_reduction <add>, %116, %cst_47 [0] : vector<8x256xf32> to vector<256xf32>
    %118 = vector.shape_cast %117 : vector<256xf32> to vector<1x256xf32>
    %cst_48 = arith.constant 1.250000e-01 : f32
    %119 = vector.broadcast %cst_48 : f32 to vector<1x256xf32>
    %120 = arith.mulf %118, %119 : vector<1x256xf32>
    %121 = arith.mulf %115, %115 : vector<1x256xf32>
    %122 = arith.subf %120, %121 : vector<1x256xf32>
    %cst_49 = arith.constant 0.000000e+00 : f32
    %123 = vector.broadcast %cst_49 : f32 to vector<1x256xf32>
    %124 = arith.maximumf %122, %123 : vector<1x256xf32>
    %cst_50 = arith.constant 9.99999974E-6 : f32
    %125 = vector.broadcast %cst_50 : f32 to vector<1x256xf32>
    %126 = arith.addf %124, %125 : vector<1x256xf32>
    %127 = math.rsqrt %126 : vector<1x256xf32>
    %128 = arith.mulf %110, %127 : vector<1x256xf32>
    %129 = arith.mulf %115, %128 : vector<1x256xf32>
    %130 = arith.subf %111, %129 : vector<1x256xf32>
    %131 = vector.broadcast %128 : vector<1x256xf32> to vector<8x256xf32>
    %132 = arith.mulf %109, %131 : vector<8x256xf32>
    %133 = vector.broadcast %130 : vector<1x256xf32> to vector<8x256xf32>
    %134 = arith.addf %132, %133 : vector<8x256xf32>
    %cst_51 = arith.constant 0.000000e+00 : f32
    %135 = vector.broadcast %cst_51 : f32 to vector<8x256xf32>
    %136 = arith.maximumf %134, %135 : vector<8x256xf32>
    %137 = arith.truncf %136 : vector<8x256xf32> to vector<8x256xbf16>
    %c3_i32_52 = arith.constant 3 : i32
    %138 = tpu.memref_slice %arg14[%c3_i32_52] : memref<5x!tpu.dma_semaphore, #tpu.memory_space<semaphore_mem>> -> memref<1x!tpu.dma_semaphore, #tpu.memory_space<semaphore_mem>>
    %139 = tpu.memref_squeeze %138 : memref<1x!tpu.dma_semaphore, #tpu.memory_space<semaphore_mem>> -> memref<!tpu.dma_semaphore, #tpu.memory_space<semaphore_mem>>
    tpu.wait_dma2 semaphore(%139 : memref<!tpu.dma_semaphore, #tpu.memory_space<semaphore_mem>>) src(%arg6 : memref<256x128xbf16, #tpu.memory_space<any>>) dst(%arg12 : memref<256x128xbf16, #tpu.memory_space<vmem>>)
    %c0_53 = arith.constant 0 : index
    %c0_54 = arith.constant 0 : index
    %140 = vector.load %arg12[%c0_53, %c0_54] : memref<256x128xbf16, #tpu.memory_space<vmem>>, vector<256x128xbf16>
    %cst_55 = arith.constant dense<0.000000e+00> : vector<8x128xf32>
    %141 = tpu.matmul %137, %140, %cst_55 {dimension_numbers = #tpu.dot_dimension_numbers<[1], [0], [0], [1], [0, 0, 1, 1], [], []>} : vector<8x256xbf16>, vector<256x128xbf16>, vector<8x128xf32> -> vector<8x128xf32>
    %c0_56 = arith.constant 0 : index
    %c3584 = arith.constant 3584 : index
    %142 = vector.load %arg2[%c0_56, %c3584] : memref<1x3968xf32, #tpu.memory_space<vmem>>, vector<1x128xf32>
    %c0_57 = arith.constant 0 : index
    %c3712 = arith.constant 3712 : index
    %143 = vector.load %arg2[%c0_57, %c3712] : memref<1x3968xf32, #tpu.memory_space<vmem>>, vector<1x128xf32>
    %cst_58 = arith.constant dense<0.000000e+00> : vector<128xf32>
    %144 = vector.multi_reduction <add>, %141, %cst_58 [0] : vector<8x128xf32> to vector<128xf32>
    %145 = vector.shape_cast %144 : vector<128xf32> to vector<1x128xf32>
    %cst_59 = arith.constant 1.250000e-01 : f32
    %146 = vector.broadcast %cst_59 : f32 to vector<1x128xf32>
    %147 = arith.mulf %145, %146 : vector<1x128xf32>
    %148 = arith.mulf %141, %141 : vector<8x128xf32>
    %cst_60 = arith.constant dense<0.000000e+00> : vector<128xf32>
    %149 = vector.multi_reduction <add>, %148, %cst_60 [0] : vector<8x128xf32> to vector<128xf32>
    %150 = vector.shape_cast %149 : vector<128xf32> to vector<1x128xf32>
    %cst_61 = arith.constant 1.250000e-01 : f32
    %151 = vector.broadcast %cst_61 : f32 to vector<1x128xf32>
    %152 = arith.mulf %150, %151 : vector<1x128xf32>
    %153 = arith.mulf %147, %147 : vector<1x128xf32>
    %154 = arith.subf %152, %153 : vector<1x128xf32>
    %cst_62 = arith.constant 0.000000e+00 : f32
    %155 = vector.broadcast %cst_62 : f32 to vector<1x128xf32>
    %156 = arith.maximumf %154, %155 : vector<1x128xf32>
    %cst_63 = arith.constant 9.99999974E-6 : f32
    %157 = vector.broadcast %cst_63 : f32 to vector<1x128xf32>
    %158 = arith.addf %156, %157 : vector<1x128xf32>
    %159 = math.rsqrt %158 : vector<1x128xf32>
    %160 = arith.mulf %142, %159 : vector<1x128xf32>
    %161 = arith.mulf %147, %160 : vector<1x128xf32>
    %162 = arith.subf %143, %161 : vector<1x128xf32>
    %163 = vector.broadcast %160 : vector<1x128xf32> to vector<8x128xf32>
    %164 = arith.mulf %141, %163 : vector<8x128xf32>
    %165 = vector.broadcast %162 : vector<1x128xf32> to vector<8x128xf32>
    %166 = arith.addf %164, %165 : vector<8x128xf32>
    %cst_64 = arith.constant 0.000000e+00 : f32
    %167 = vector.broadcast %cst_64 : f32 to vector<8x128xf32>
    %168 = arith.maximumf %166, %167 : vector<8x128xf32>
    %169 = arith.truncf %168 : vector<8x128xf32> to vector<8x128xbf16>
    %c4_i32_65 = arith.constant 4 : i32
    %170 = tpu.memref_slice %arg14[%c4_i32_65] : memref<5x!tpu.dma_semaphore, #tpu.memory_space<semaphore_mem>> -> memref<1x!tpu.dma_semaphore, #tpu.memory_space<semaphore_mem>>
    %171 = tpu.memref_squeeze %170 : memref<1x!tpu.dma_semaphore, #tpu.memory_space<semaphore_mem>> -> memref<!tpu.dma_semaphore, #tpu.memory_space<semaphore_mem>>
    tpu.wait_dma2 semaphore(%171 : memref<!tpu.dma_semaphore, #tpu.memory_space<semaphore_mem>>) src(%arg7 : memref<128x128xbf16, #tpu.memory_space<any>>) dst(%arg13 : memref<128x128xbf16, #tpu.memory_space<vmem>>)
    %c0_66 = arith.constant 0 : index
    %c3840 = arith.constant 3840 : index
    %172 = vector.load %arg2[%c0_66, %c3840] : memref<1x3968xf32, #tpu.memory_space<vmem>>, vector<1x128xf32>
    %c0_67 = arith.constant 0 : index
    %c0_68 = arith.constant 0 : index
    %173 = vector.load %arg13[%c0_67, %c0_68] : memref<128x128xbf16, #tpu.memory_space<vmem>>, vector<128x128xbf16>
    %cst_69 = arith.constant dense<0.000000e+00> : vector<8x128xf32>
    %174 = tpu.matmul %169, %173, %cst_69 {dimension_numbers = #tpu.dot_dimension_numbers<[1], [0], [0], [1], [0, 0, 1, 1], [], []>} : vector<8x128xbf16>, vector<128x128xbf16>, vector<8x128xf32> -> vector<8x128xf32>
    %175 = vector.broadcast %172 : vector<1x128xf32> to vector<8x128xf32>
    %176 = arith.addf %174, %175 : vector<8x128xf32>
    %c0_70 = arith.constant 0 : index
    %c0_71 = arith.constant 0 : index
    %177 = vector.load %arg8[%c0_70, %c0_71] : memref<8x128xf32, #tpu.memory_space<vmem>>, vector<8x128xf32>
    tpu.vector_store %arg8[%c0_70, %c0_71], %176 {strides = array<i32>} : memref<8x128xf32, #tpu.memory_space<vmem>>, vector<8x128xf32>,
    return
  }
}

</mosaic_0001>

<llo_original>
// kernel: decoder_att_forward_fused.1
$region0: #{decoder_att_forward_fused.1}
  #allocation0 [shape = 'u32[]', space=smem, size = 0x4, offset = 0x4, fixed_abs, tag = 'smem constant byte address 0x4 - core index']
  #allocation1 [shape = 'u32[144,128]{1,0:T(1,128)}', space=vmem, size = 0x12000, scoped, tag = 'internal scratch']
  #allocation2 [shape = 'bf16[512,512]{1,0:T(8,128)(2,1)}', space=vmem, size = 0x80000, scoped, tag = 'scratch operand']
  #allocation3 [shape = 'bf16[512,512]{1,0:T(8,128)(2,1)}', space=vmem, size = 0x80000, scoped, tag = 'scratch operand']
  #allocation4 [shape = 'bf16[512,256]{1,0:T(8,128)(2,1)}', space=vmem, size = 0x40000, scoped, tag = 'scratch operand']
  #allocation5 [shape = 'bf16[256,128]{1,0:T(8,128)(2,1)}', space=vmem, size = 0x10000, scoped, tag = 'scratch operand']
  #allocation6 [shape = 'bf16[128,128]{1,0:T(8,128)(2,1)}', space=vmem, size = 0x8000, scoped, tag = 'scratch operand']
  #allocation7 [shape = 's32[5]{0}', space=sflag, size = 0x14, scoped, tag = 'scratch operand']
  #allocation15 [shape = 's32[]', space=sflag, size = 0x4, offset = 0, fixed_abs, tag = 'sflag constant byte address 0x0 - dummy sync flag']
  #allocation16 [shape = 's32[]', space=sflag, size = 0x4, offset = 0, fixed_abs, tag = 'sflag constant byte address 0x0 - dummy sync flag']
  #allocation17 [shape = 'u32[]', space=smem, size = 0x4, offset = 0x44, fixed_abs, tag = 'smem constant byte address 0x44 - assertion arg 0']
  #allocation18 [shape = 'u32[]', space=smem, size = 0x4, offset = 0x48, fixed_abs, tag = 'smem constant byte address 0x48 - assertion arg 1']
  #allocation19 [shape = 's32[]', space=sflag, size = 0x4, offset = 0, fixed_abs, tag = 'sflag constant byte address 0x0 - dummy sync flag']
  #allocation20 [shape = 's32[]', space=sflag, size = 0x4, offset = 0, fixed_abs, tag = 'sflag constant byte address 0x0 - dummy sync flag']
  #allocation21 [shape = 's32[]', space=sflag, size = 0x4, offset = 0, fixed_abs, tag = 'sflag constant byte address 0x0 - dummy sync flag']
  #allocation22 [shape = 's32[]', space=sflag, size = 0x4, offset = 0, fixed_abs, tag = 'sflag constant byte address 0x0 - dummy sync flag']
  #allocation23 [shape = 's32[]', space=sflag, size = 0x4, offset = 0, fixed_abs, tag = 'sflag constant byte address 0x0 - dummy sync flag']
  #allocation24 [shape = 's32[]', space=sflag, size = 0x4, offset = 0, fixed_abs, tag = 'sflag constant byte address 0x0 - dummy sync flag']
  #allocation25 [shape = 's32[]', space=sflag, size = 0x4, offset = 0, fixed_abs, tag = 'sflag constant byte address 0x0 - dummy sync flag']
  #allocation26 [shape = 's32[]', space=sflag, size = 0x4, offset = 0, fixed_abs, tag = 'sflag constant byte address 0x0 - dummy sync flag']
  %s0 = inlined_call_operand.hbm [shape: f32[8,64], index: 0, kind: input, shape index: {}]
  %s1 = inlined_call_operand.hbm [shape: bf16[64,512], index: 1, kind: input, shape index: {}]
  %s2 = inlined_call_operand.hbm [shape: f32[1,3968], index: 2, kind: input, shape index: {}]
  %s3 = inlined_call_operand.hbm [shape: bf16[512,512], index: 3, kind: input, shape index: {}]
  %s4 = inlined_call_operand.hbm [shape: bf16[512,512], index: 4, kind: input, shape index: {}]
  %s5 = inlined_call_operand.hbm [shape: bf16[512,256], index: 5, kind: input, shape index: {}]
  %s6 = inlined_call_operand.hbm [shape: bf16[256,128], index: 6, kind: input, shape index: {}]
  %s7 = inlined_call_operand.hbm [shape: bf16[128,128], index: 7, kind: input, shape index: {}]
  %s8 = inlined_call_operand.hbm [shape: f32[8,128], index: 8, kind: output, shape index: {}]
  %s9 = sld [smem:[#allocation0]]
  $region54: #{decoder_att_forward_fused.1} parent=0
    _
  %s11 = ssub.s32 1, %s9
  %s12 = scalar_select 0, %s11, %s9
  $region1: #{decoder_att_forward_fused.1} parent=0
    #allocation8 [shape = 'u8[4096]{0}', space=vmem, size = 0x1000, scoped, tag = 'input window, operand 0, single buffered']
    #allocation9 [shape = 's32[1]{0}', space=sflag, size = 0x4, scoped, tag = 'scoped memory for decoder_att_forward_fused.1']
    #allocation10 [shape = 's32[1]{0}', space=sflag, size = 0x4, scoped, tag = 'scoped memory for decoder_att_forward_fused.1']
    #allocation11 [shape = 'u8[65536]{0}', space=vmem, size = 0x10000, scoped, tag = 'input window, operand 1, single buffered']
    #allocation12 [shape = 's32[1]{0}', space=sflag, size = 0x4, scoped, tag = 'scoped memory for decoder_att_forward_fused.1']
    #allocation13 [shape = 'u8[15872]{0}', space=vmem, size = 0x4000, scoped, tag = 'input window, operand 2, single buffered']
    #allocation14 [shape = 'u8[4096]{0}', space=vmem, size = 0x1000, scoped, tag = 'output window, operand 0, single buffered']
    %13 = vsyncpa [#allocation9], 0
    %14 = vsyncpa [#allocation12], 0
    %15 = vsyncpa [#allocation10], 0
    // Predicated region
    $region2: #{decoder_att_forward_fused.1} parent=1 // pred_check
      _
    $region3: #{decoder_att_forward_fused.1} parent=1 // pred_check_branch
      %17 = sbr.rel (0) target = $region5
    $region4: #{decoder_att_forward_fused.1} parent=1 // pred_region
      %s19 = ssub.s32 128, 128
      %20 = vsyncadd [#allocation9], %s19
      %s22 = sshll.u32 [#allocation8], 4
      %s23 = int_to_ptr.vmem [resolvable:$true] %s22
      %25 = dma.hbm_to_vmem [thread:$0]  %s0, 128, %s23, [#allocation9]
    $region5: #{decoder_att_forward_fused.1} parent=1 // pred_fallthru
      _
    // Predicated region
    $region6: #{decoder_att_forward_fused.1} parent=1 // pred_check
      _
    $region7: #{decoder_att_forward_fused.1} parent=1 // pred_check_branch
      %27 = sbr.rel (0) target = $region9
    $region8: #{decoder_att_forward_fused.1} parent=1 // pred_region
      %s29 = ssub.s32 2048, 2048
      %30 = vsyncadd [#allocation12], %s29
      %s31 = sshll.u32 [#allocation11], 4
      %s32 = int_to_ptr.vmem [resolvable:$true] %s31
      %37 = dma.hbm_to_vmem [thread:$0]  %s1, 2048, %s32, [#allocation12], 256, 256, 16
    $region9: #{decoder_att_forward_fused.1} parent=1 // pred_fallthru
      _
    // Predicated region
    $region10: #{decoder_att_forward_fused.1} parent=1 // pred_check
      _
    $region11: #{decoder_att_forward_fused.1} parent=1 // pred_check_branch
      %39 = sbr.rel (0) target = $region13
    $region12: #{decoder_att_forward_fused.1} parent=1 // pred_region
      %s41 = ssub.s32 496, 496
      %42 = vsyncadd [#allocation12], %s41
      %s44 = sshll.u32 [#allocation13], 4
      %s45 = int_to_ptr.vmem [resolvable:$true] %s44
      %47 = dma.hbm_to_vmem [thread:$0]  %s2, 496, %s45, [#allocation12]
    $region13: #{decoder_att_forward_fused.1} parent=1 // pred_fallthru
      _
    // Predicated region
    $region14: #{decoder_att_forward_fused.1} parent=1 // pred_check
      _
    $region15: #{decoder_att_forward_fused.1} parent=1 // pred_check_branch
      %49 = sbr.rel (0) target = $region17
    $region16: #{decoder_att_forward_fused.1} parent=1 // pred_region
      %50 = dma.done [#allocation9], 128
    $region17: #{decoder_att_forward_fused.1} parent=1 // pred_fallthru
      _
    // Predicated region
    $region18: #{decoder_att_forward_fused.1} parent=1 // pred_check
      _
    $region19: #{decoder_att_forward_fused.1} parent=1 // pred_check_branch
      %52 = sbr.rel (0) target = $region21
    $region20: #{decoder_att_forward_fused.1} parent=1 // pred_region
      %53 = dma.done [#allocation12], 2048
    $region21: #{decoder_att_forward_fused.1} parent=1 // pred_fallthru
      _
    // Predicated region
    $region22: #{decoder_att_forward_fused.1} parent=1 // pred_check
      _
    $region23: #{decoder_att_forward_fused.1} parent=1 // pred_check_branch
      %55 = sbr.rel (0) target = $region25
    $region24: #{decoder_att_forward_fused.1} parent=1 // pred_region
      %56 = dma.done [#allocation12], 496
    $region25: #{decoder_att_forward_fused.1} parent=1 // pred_fallthru
      _
    // Predicated region
    $region26: #{decoder_att_forward_fused.1} parent=1 // pred_check
      _
    $region27: #{decoder_att_forward_fused.1} parent=1 // pred_check_branch
      %59 = sbr.rel target = $region29
    $region28: #{decoder_att_forward_fused.1} parent=1 // pred_region
      %60 = sst [smem:[#allocation17]] [#allocation16]
      %61 = sst [smem:[#allocation18]] [#allocation15]
    $region29: #{decoder_att_forward_fused.1} parent=1 // pred_fallthru
      _
    %63 = shalt.err (0)
    %s65 = sshll.u32 [#allocation2], 4
    %s66 = int_to_ptr.vmem [resolvable:$true] %s65
    %68 = dma.hbm_to_vmem [thread:$0]  %s3, 16384, %s66, [#allocation7]
    %s69 = scalar_lea.sflag [#allocation7], 1
    // Predicated region
    $region30: #{decoder_att_forward_fused.1} parent=1 // pred_check
      _
    $region31: #{decoder_att_forward_fused.1} parent=1 // pred_check_branch
      %71 = sbr.rel target = $region33
    $region32: #{decoder_att_forward_fused.1} parent=1 // pred_region
      %72 = sst [smem:[#allocation17]] [#allocation20]
      %73 = sst [smem:[#allocation18]] [#allocation19]
    $region33: #{decoder_att_forward_fused.1} parent=1 // pred_fallthru
      _
    %75 = shalt.err (0)
    %s77 = sshll.u32 [#allocation3], 4
    %s78 = int_to_ptr.vmem [resolvable:$true] %s77
    %80 = dma.hbm_to_vmem [thread:$0]  %s4, 16384, %s78, %s69
    %s81 = scalar_lea.sflag [#allocation7], 2
    // Predicated region
    $region34: #{decoder_att_forward_fused.1} parent=1 // pred_check
      _
    $region35: #{decoder_att_forward_fused.1} parent=1 // pred_check_branch
      %83 = sbr.rel target = $region37
    $region36: #{decoder_att_forward_fused.1} parent=1 // pred_region
      %84 = sst [smem:[#allocation17]] [#allocation22]
      %85 = sst [smem:[#allocation18]] [#allocation21]
    $region37: #{decoder_att_forward_fused.1} parent=1 // pred_fallthru
      _
    %87 = shalt.err (0)
    %s89 = sshll.u32 [#allocation4], 4
    %s90 = int_to_ptr.vmem [resolvable:$true] %s89
    %92 = dma.hbm_to_vmem [thread:$0]  %s5, 8192, %s90, %s81
    %s93 = scalar_lea.sflag [#allocation7], 3
    // Predicated region
    $region38: #{decoder_att_forward_fused.1} parent=1 // pred_check
      _
    $region39: #{decoder_att_forward_fused.1} parent=1 // pred_check_branch
      %95 = sbr.rel target = $region41
    $region40: #{decoder_att_forward_fused.1} parent=1 // pred_region
      %96 = sst [smem:[#allocation17]] [#allocation24]
      %97 = sst [smem:[#allocation18]] [#allocation23]
    $region41: #{decoder_att_forward_fused.1} parent=1 // pred_fallthru
      _
    %99 = shalt.err (0)
    %s101 = sshll.u32 [#allocation5], 4
    %s102 = int_to_ptr.vmem [resolvable:$true] %s101
    %104 = dma.hbm_to_vmem [thread:$0]  %s6, 2048, %s102, %s93
    %s105 = scalar_lea.sflag [#allocation7], 4
    // Predicated region
    $region42: #{decoder_att_forward_fused.1} parent=1 // pred_check
      _
    $region43: #{decoder_att_forward_fused.1} parent=1 // pred_check_branch
      %107 = sbr.rel target = $region45
    $region44: #{decoder_att_forward_fused.1} parent=1 // pred_region
      %108 = sst [smem:[#allocation17]] [#allocation26]
      %109 = sst [smem:[#allocation18]] [#allocation25]
    $region45: #{decoder_att_forward_fused.1} parent=1 // pred_fallthru
      _
    %111 = shalt.err (0)
    %s113 = sshll.u32 [#allocation6], 4
    %s114 = int_to_ptr.vmem [resolvable:$true] %s113
    %116 = dma.hbm_to_vmem [thread:$0]  %s7, 1024, %s114, %s105
    %v117 = vld [vmem:[#allocation8] sm:$0xff]
    %v118 = vpack.c.bf16 %v117, %v117
    %v119 = vld [vmem:[#allocation11] sm:$0xff]
    %v120 = vld [vmem:[#allocation11 + $0x8] sm:$0xff]
    %v121 = vld [vmem:[#allocation11 + $0x10] sm:$0xff]
    %v122 = vld [vmem:[#allocation11 + $0x18] sm:$0xff]
    %v123 = vld [vmem:[#allocation11 + $0x20] sm:$0xff]
    %v124 = vld [vmem:[#allocation11 + $0x28] sm:$0xff]
    %v125 = vld [vmem:[#allocation11 + $0x30] sm:$0xff]
    %v126 = vld [vmem:[#allocation11 + $0x38] sm:$0xff]
    %v127 = vld [vmem:[#allocation11 + $0x40] sm:$0xff]
    %v128 = vld [vmem:[#allocation11 + $0x48] sm:$0xff]
    %v129 = vld [vmem:[#allocation11 + $0x50] sm:$0xff]
    %v130 = vld [vmem:[#allocation11 + $0x58] sm:$0xff]
    %v131 = vld [vmem:[#allocation11 + $0x60] sm:$0xff]
    %v132 = vld [vmem:[#allocation11 + $0x68] sm:$0xff]
    %v133 = vld [vmem:[#allocation11 + $0x70] sm:$0xff]
    %v134 = vld [vmem:[#allocation11 + $0x78] sm:$0xff]
    %v151 = vunpack.c.l.b16 %v119
    %v152 = vunpack.c.h.b16 %v119
    %v153 = vunpack.c.l.b16 %v120
    %v154 = vunpack.c.h.b16 %v120
    %v155 = vunpack.c.l.b16 %v121
    %v156 = vunpack.c.h.b16 %v121
    %v157 = vunpack.c.l.b16 %v122
    %v158 = vunpack.c.h.b16 %v122
    %v159 = vunpack.c.l.b16 %v123
    %v160 = vunpack.c.h.b16 %v123
    %v161 = vunpack.c.l.b16 %v124
    %v162 = vunpack.c.h.b16 %v124
    %v163 = vunpack.c.l.b16 %v125
    %v164 = vunpack.c.h.b16 %v125
    %v165 = vunpack.c.l.b16 %v126
    %v166 = vunpack.c.h.b16 %v126
    %v167 = vunpack.c.l.b16 %v127
    %v168 = vunpack.c.h.b16 %v127
    %v169 = vunpack.c.l.b16 %v128
    %v170 = vunpack.c.h.b16 %v128
    %v171 = vunpack.c.l.b16 %v129
    %v172 = vunpack.c.h.b16 %v129
    %v173 = vunpack.c.l.b16 %v130
    %v174 = vunpack.c.h.b16 %v130
    %v175 = vunpack.c.l.b16 %v131
    %v176 = vunpack.c.h.b16 %v131
    %v177 = vunpack.c.l.b16 %v132
    %v178 = vunpack.c.h.b16 %v132
    %v179 = vunpack.c.l.b16 %v133
    %v180 = vunpack.c.h.b16 %v133
    %v181 = vunpack.c.l.b16 %v134
    %v182 = vunpack.c.h.b16 %v134
    %v183 = vpack.c.b16 %v155, %v151
    %v184 = vpack.c.b16 %v156, %v152
    %v185 = vpack.c.b16 %v157, %v153
    %v186 = vpack.c.b16 %v158, %v154
    %v187 = vpack.c.b16 %v163, %v159
    %v188 = vpack.c.b16 %v164, %v160
    %v189 = vpack.c.b16 %v165, %v161
    %v190 = vpack.c.b16 %v166, %v162
    %v191 = vpack.c.b16 %v171, %v167
    %v192 = vpack.c.b16 %v172, %v168
    %v193 = vpack.c.b16 %v173, %v169
    %v194 = vpack.c.b16 %v174, %v170
    %v195 = vpack.c.b16 %v179, %v175
    %v196 = vpack.c.b16 %v180, %v176
    %v197 = vpack.c.b16 %v181, %v177
    %v198 = vpack.c.b16 %v182, %v178
    %vm215 = vcmask 523264
    %v217 = vsel %vm215, %v118, 0
    %219 = vmatprep.subr.bf16.mxu0 0
    %220 = vmatpush1.bf16.msra.mxu0 0
    %221 = vmatprep.subr.bf16.mxu0 0
    %222 = vmatpush1.bf16.msra.mxu0 0
    %223 = vmatprep.subr.bf16.mxu0 0
    %224 = vmatpush1.bf16.msra.mxu0 0
    %225 = vmatprep.subr.bf16.mxu0 0
    %226 = vmatpush1.bf16.msra.mxu0 0
    %227 = vmatprep.subr.bf16.mxu0 %v196
    %228 = vmatpush1.bf16.msra.mxu0 %v195
    %229 = vmatprep.subr.bf16.mxu0 %v192
    %230 = vmatpush1.bf16.msra.mxu0 %v191
    %231 = vmatprep.subr.bf16.mxu0 %v188
    %232 = vmatpush1.bf16.msra.mxu0 %v187
    %233 = vmatprep.subr.bf16.mxu0 %v184
    %234 = vmatpush1.bf16.msra.mxu0 %v183
    %235 = vmatprep.subr.bf16.mxu0 0
    %236 = vmatpush2.bf16.msra.mxu0 0
    %237 = vmatprep.subr.bf16.mxu0 0
    %238 = vmatpush2.bf16.msra.mxu0 0
    %239 = vmatprep.subr.bf16.mxu0 0
    %240 = vmatpush2.bf16.msra.mxu0 0
    %241 = vmatprep.subr.bf16.mxu0 0
    %242 = vmatpush2.bf16.msra.mxu0 0
    %243 = vmatprep.subr.bf16.mxu0 0
    %244 = vmatpush2.bf16.msra.mxu0 0
    %245 = vmatprep.subr.bf16.mxu0 0
    %246 = vmatpush2.bf16.msra.mxu0 0
    %247 = vmatprep.subr.bf16.mxu0 0
    %248 = vmatpush2.bf16.msra.mxu0 0
    %249 = vmatprep.subr.bf16.mxu0 0
    %250 = vmatpush2.bf16.msra.mxu0 0
    %251 = vmatprep.mubr.bf16.mxu0 0
    %252 = vmatmul.mubr.bf16.gmra.mxu0 %v217
    %v253 = vpop.f32.mrf.mxu0
    %v254 = vadd.f32 0.0, %v253
    %v255 = vpop.f32.mrf.mxu0
    %v256 = vadd.f32 0.0, %v255
    %v257 = vpop.f32.mrf.mxu0
    %v258 = vpop.f32.mrf.mxu0
    %259 = vdwg.mxu0
    %260 = vmatprep.subr.bf16.mxu0 0
    %261 = vmatpush1.bf16.msra.mxu0 0
    %262 = vmatprep.subr.bf16.mxu0 0
    %263 = vmatpush1.bf16.msra.mxu0 0
    %264 = vmatprep.subr.bf16.mxu0 0
    %265 = vmatpush1.bf16.msra.mxu0 0
    %266 = vmatprep.subr.bf16.mxu0 0
    %267 = vmatpush1.bf16.msra.mxu0 0
    %268 = vmatprep.subr.bf16.mxu0 %v198
    %269 = vmatpush1.bf16.msra.mxu0 %v197
    %270 = vmatprep.subr.bf16.mxu0 %v194
    %271 = vmatpush1.bf16.msra.mxu0 %v193
    %272 = vmatprep.subr.bf16.mxu0 %v190
    %273 = vmatpush1.bf16.msra.mxu0 %v189
    %274 = vmatprep.subr.bf16.mxu0 %v186
    %275 = vmatpush1.bf16.msra.mxu0 %v185
    %276 = vmatprep.subr.bf16.mxu0 0
    %277 = vmatpush2.bf16.msra.mxu0 0
    %278 = vmatprep.subr.bf16.mxu0 0
    %279 = vmatpush2.bf16.msra.mxu0 0
    %280 = vmatprep.subr.bf16.mxu0 0
    %281 = vmatpush2.bf16.msra.mxu0 0
    %282 = vmatprep.subr.bf16.mxu0 0
    %283 = vmatpush2.bf16.msra.mxu0 0
    %284 = vmatprep.subr.bf16.mxu0 0
    %285 = vmatpush2.bf16.msra.mxu0 0
    %286 = vmatprep.subr.bf16.mxu0 0
    %287 = vmatpush2.bf16.msra.mxu0 0
    %288 = vmatprep.subr.bf16.mxu0 0
    %289 = vmatpush2.bf16.msra.mxu0 0
    %290 = vmatprep.subr.bf16.mxu0 0
    %291 = vmatpush2.bf16.msra.mxu0 0
    %292 = vmatprep.mubr.bf16.mxu0 0
    %293 = vmatmul.mubr.bf16.gmra.mxu0 %v217
    %v294 = vpop.f32.mrf.mxu0
    %v295 = vadd.f32 0.0, %v294
    %v296 = vpop.f32.mrf.mxu0
    %v297 = vadd.f32 0.0, %v296
    %v298 = vpop.f32.mrf.mxu0
    %v299 = vpop.f32.mrf.mxu0
    %300 = vdwg.mxu0
    %v301 = vld [vmem:[#allocation13] sm:$0xf]
    %v302 = vld [vmem:[#allocation13 + $0x4] sm:$0xf]
    %v303 = vrot.slane %v254, 4
    %v304 = vadd.f32 %v254, %v303
    %v305 = vrot.slane %v304, 2
    %v306 = vadd.f32 %v304, %v305
    %v307 = vrot.slane %v306, 1
    %v308 = vadd.f32 %v306, %v307
    %v309 = vrot.slane %v256, 4
    %v310 = vadd.f32 %v256, %v309
    %v311 = vrot.slane %v310, 2
    %v312 = vadd.f32 %v310, %v311
    %v313 = vrot.slane %v312, 1
    %v314 = vadd.f32 %v312, %v313
    %v315 = vrot.slane %v295, 4
    %v316 = vadd.f32 %v295, %v315
    %v317 = vrot.slane %v316, 2
    %v318 = vadd.f32 %v316, %v317
    %v319 = vrot.slane %v318, 1
    %v320 = vadd.f32 %v318, %v319
    %v321 = vrot.slane %v297, 4
    %v322 = vadd.f32 %v297, %v321
    %v323 = vrot.slane %v322, 2
    %v324 = vadd.f32 %v322, %v323
    %v325 = vrot.slane %v324, 1
    %v326 = vadd.f32 %v324, %v325
    %v327 = vmul.f32 %v308, 0.125
    %v328 = vmul.f32 %v314, 0.125
    %v329 = vmul.f32 %v320, 0.125
    %v330 = vmul.f32 %v326, 0.125
    %v331 = vmul.f32 %v254, %v254
    %v332 = vmul.f32 %v256, %v256
    %v333 = vmul.f32 %v295, %v295
    %v334 = vmul.f32 %v297, %v297
    %v335 = vrot.slane %v331, 4
    %v336 = vadd.f32 %v331, %v335
    %v337 = vrot.slane %v336, 2
    %v338 = vadd.f32 %v336, %v337
    %v339 = vrot.slane %v338, 1
    %v340 = vadd.f32 %v338, %v339
    %v341 = vrot.slane %v332, 4
    %v342 = vadd.f32 %v332, %v341
    %v343 = vrot.slane %v342, 2
    %v344 = vadd.f32 %v342, %v343
    %v345 = vrot.slane %v344, 1
    %v346 = vadd.f32 %v344, %v345
    %v347 = vrot.slane %v333, 4
    %v348 = vadd.f32 %v333, %v347
    %v349 = vrot.slane %v348, 2
    %v350 = vadd.f32 %v348, %v349
    %v351 = vrot.slane %v350, 1
    %v352 = vadd.f32 %v350, %v351
    %v353 = vrot.slane %v334, 4
    %v354 = vadd.f32 %v334, %v353
    %v355 = vrot.slane %v354, 2
    %v356 = vadd.f32 %v354, %v355
    %v357 = vrot.slane %v356, 1
    %v358 = vadd.f32 %v356, %v357
    %v359 = vmul.f32 %v340, 0.125
    %v360 = vmul.f32 %v346, 0.125
    %v361 = vmul.f32 %v352, 0.125
    %v362 = vmul.f32 %v358, 0.125
    %v363 = vmul.f32 %v327, %v327
    %v364 = vmul.f32 %v328, %v328
    %v365 = vmul.f32 %v329, %v329
    %v366 = vmul.f32 %v330, %v330
    %v367 = vsub.f32 %v359, %v363
    %v368 = vsub.f32 %v360, %v364
    %v369 = vsub.f32 %v361, %v365
    %v370 = vsub.f32 %v362, %v366
    %v371 = vmax.f32 %v367, 0.0
    %v372 = vmax.f32 %v368, 0.0
    %v373 = vmax.f32 %v369, 0.0
    %v374 = vmax.f32 %v370, 0.0
    %v375 = vadd.f32 %v371, 1e-05
    %v376 = vadd.f32 %v372, 1e-05
    %v377 = vadd.f32 %v373, 1e-05
    %v378 = vadd.f32 %v374, 1e-05
    %v379 = vrsqrt.pop %v375
    %v380 = vrsqrt.pop %v376
    %v381 = vrsqrt.pop %v377
    %v382 = vrsqrt.pop %v378
    %v387 = vcombine.low %v379, %v380
    %v388 = vcombine.low %v381, %v382
    %v390 = vunpack.c.l.s4 1966171168
    %v391 = vunpack.c.0.s8 %v390
    %v392 = vlaneseq
    %v393 = vshrl.u32 %v392, 7
    %v394 = vsub.s32 %v391, %v393
    %v395 = vrot.slane %v387, %v394
    %v397 = vunpack.c.l.s4 1966171168
    %v398 = vunpack.c.0.s8 %v397
    %v399 = vlaneseq
    %v400 = vshrl.u32 %v399, 7
    %v401 = vsub.s32 %v398, %v400
    %v402 = vrot.slane %v388, %v401
    %v403 = vcombine.low %v395, %v402
    %v405 = vunpack.c.l.s4 1966171168
    %v406 = vunpack.c.0.s8 %v405
    %v407 = vlaneseq
    %v408 = vshrl.u32 %v407, 7
    %v409 = vsub.s32 %v406, %v408
    %v410 = vrot.slane %v403, %v409
    %v412 = vmul.f32 %v301, %v410
    %v414 = vlaneseq
    %v415 = vshrl.u32 %v414, 7
    %v416 = vsub.s32 0, %v415
    %v417 = vrot.slane %v412, %v416
    %v418 = vlaneseq
    %v419 = vshrl.u32 %v418, 7
    %v420 = vsub.s32 1, %v419
    %v421 = vrot.slane %v412, %v420
    %v422 = vlaneseq
    %v423 = vshrl.u32 %v422, 7
    %v424 = vsub.s32 2, %v423
    %v425 = vrot.slane %v412, %v424
    %v426 = vlaneseq
    %v427 = vshrl.u32 %v426, 7
    %v428 = vsub.s32 3, %v427
    %v429 = vrot.slane %v412, %v428
    %v434 = vmul.f32 %v327, %v417
    %v435 = vmul.f32 %v328, %v421
    %v436 = vmul.f32 %v329, %v425
    %v437 = vmul.f32 %v330, %v429
    %v442 = vcombine.low %v434, %v435
    %v443 = vcombine.low %v436, %v437
    %v445 = vunpack.c.l.s4 1966171168
    %v446 = vunpack.c.0.s8 %v445
    %v447 = vlaneseq
    %v448 = vshrl.u32 %v447, 7
    %v449 = vsub.s32 %v446, %v448
    %v450 = vrot.slane %v442, %v449
    %v452 = vunpack.c.l.s4 1966171168
    %v453 = vunpack.c.0.s8 %v452
    %v454 = vlaneseq
    %v455 = vshrl.u32 %v454, 7
    %v456 = vsub.s32 %v453, %v455
    %v457 = vrot.slane %v443, %v456
    %v458 = vcombine.low %v450, %v457
    %v460 = vunpack.c.l.s4 1966171168
    %v461 = vunpack.c.0.s8 %v460
    %v462 = vlaneseq
    %v463 = vshrl.u32 %v462, 7
    %v464 = vsub.s32 %v461, %v463
    %v465 = vrot.slane %v458, %v464
    %v467 = vsub.f32 %v302, %v465
    %v468 = vmul.f32 %v254, %v417
    %v469 = vmul.f32 %v256, %v421
    %v470 = vmul.f32 %v295, %v425
    %v471 = vmul.f32 %v297, %v429
    %v473 = vlaneseq
    %v474 = vshrl.u32 %v473, 7
    %v475 = vsub.s32 0, %v474
    %v476 = vrot.slane %v467, %v475
    %v477 = vlaneseq
    %v478 = vshrl.u32 %v477, 7
    %v479 = vsub.s32 1, %v478
    %v480 = vrot.slane %v467, %v479
    %v481 = vlaneseq
    %v482 = vshrl.u32 %v481, 7
    %v483 = vsub.s32 2, %v482
    %v484 = vrot.slane %v467, %v483
    %v485 = vlaneseq
    %v486 = vshrl.u32 %v485, 7
    %v487 = vsub.s32 3, %v486
    %v488 = vrot.slane %v467, %v487
    %v493 = vadd.f32 %v468, %v476
    %v494 = vadd.f32 %v469, %v480
    %v495 = vadd.f32 %v470, %v484
    %v496 = vadd.f32 %v471, %v488
    %v497 = vmax.f32 %v493, 0.0
    %v498 = vmax.f32 %v494, 0.0
    %v499 = vmax.f32 %v495, 0.0
    %v500 = vmax.f32 %v496, 0.0
    %v501 = vpack.c.bf16 %v497, %v497
    %v502 = vpack.c.bf16 %v498, %v498
    %v503 = vpack.c.bf16 %v499, %v499
    %v504 = vpack.c.bf16 %v500, %v500
    %s505 = smul.u32 4, 64
    %s506 = smul.u32 %s505, 4
    %s507 = sshll.u32 %s506, 4
    %508 = dma.done [#allocation7], %s507
    %v509 = vld [vmem:[#allocation2] sm:$0xff]
    %v510 = vld [vmem:[#allocation2 + $0x8] sm:$0xff]
    %v511 = vld [vmem:[#allocation2 + $0x10] sm:$0xff]
    %v512 = vld [vmem:[#allocation2 + $0x18] sm:$0xff]
    %v513 = vld [vmem:[#allocation2 + $0x20] sm:$0xff]
    %v514 = vld [vmem:[#allocation2 + $0x28] sm:$0xff]
    %v515 = vld [vmem:[#allocation2 + $0x30] sm:$0xff]
    %v516 = vld [vmem:[#allocation2 + $0x38] sm:$0xff]
    %v517 = vld [vmem:[#allocation2 + $0x40] sm:$0xff]
    %v518 = vld [vmem:[#allocation2 + $0x48] sm:$0xff]
    %v519 = vld [vmem:[#allocation2 + $0x50] sm:$0xff]
    %v520 = vld [vmem:[#allocation2 + $0x58] sm:$0xff]
    %v521 = vld [vmem:[#allocation2 + $0x60] sm:$0xff]
    %v522 = vld [vmem:[#allocation2 + $0x68] sm:$0xff]
    %v523 = vld [vmem:[#allocation2 + $0x70] sm:$0xff]
    %v524 = vld [vmem:[#allocation2 + $0x78] sm:$0xff]
    %v525 = vld [vmem:[#allocation2 + $0x80] sm:$0xff]
    %v526 = vld [vmem:[#allocation2 + $0x88] sm:$0xff]
    %v527 = vld [vmem:[#allocation2 + $0x90] sm:$0xff]
    %v528 = vld [vmem:[#allocation2 + $0x98] sm:$0xff]
    %v529 = vld [vmem:[#allocation2 + $0xa0] sm:$0xff]
    %v530 = vld [vmem:[#allocation2 + $0xa8] sm:$0xff]
    %v531 = vld [vmem:[#allocation2 + $0xb0] sm:$0xff]
    %v532 = vld [vmem:[#allocation2 + $0xb8] sm:$0xff]
    %v533 = vld [vmem:[#allocation2 + $0xc0] sm:$0xff]
    %v534 = vld [vmem:[#allocation2 + $0xc8] sm:$0xff]
    %v535 = vld [vmem:[#allocation2 + $0xd0] sm:$0xff]
    %v536 = vld [vmem:[#allocation2 + $0xd8] sm:$0xff]
    %v537 = vld [vmem:[#allocation2 + $0xe0] sm:$0xff]
    %v538 = vld [vmem:[#allocation2 + $0xe8] sm:$0xff]
    %v539 = vld [vmem:[#allocation2 + $0xf0] sm:$0xff]
    %v540 = vld [vmem:[#allocation2 + $0xf8] sm:$0xff]
    %v541 = vld [vmem:[#allocation2 + $0x100] sm:$0xff]
    %v542 = vld [vmem:[#allocation2 + $0x108] sm:$0xff]
    %v543 = vld [vmem:[#allocation2 + $0x110] sm:$0xff]
    %v544 = vld [vmem:[#allocation2 + $0x118] sm:$0xff]
    %v545 = vld [vmem:[#allocation2 + $0x120] sm:$0xff]
    %v546 = vld [vmem:[#allocation2 + $0x128] sm:$0xff]
    %v547 = vld [vmem:[#allocation2 + $0x130] sm:$0xff]
    %v548 = vld [vmem:[#allocation2 + $0x138] sm:$0xff]
    %v549 = vld [vmem:[#allocation2 + $0x140] sm:$0xff]
    %v550 = vld [vmem:[#allocation2 + $0x148] sm:$0xff]
    %v551 = vld [vmem:[#allocation2 + $0x150] sm:$0xff]
    %v552 = vld [vmem:[#allocation2 + $0x158] sm:$0xff]
    %v553 = vld [vmem:[#allocation2 + $0x160] sm:$0xff]
    %v554 = vld [vmem:[#allocation2 + $0x168] sm:$0xff]
    %v555 = vld [vmem:[#allocation2 + $0x170] sm:$0xff]
    %v556 = vld [vmem:[#allocation2 + $0x178] sm:$0xff]
    %v557 = vld [vmem:[#allocation2 + $0x180] sm:$0xff]
    %v558 = vld [vmem:[#allocation2 + $0x188] sm:$0xff]
    %v559 = vld [vmem:[#allocation2 + $0x190] sm:$0xff]
    %v560 = vld [vmem:[#allocation2 + $0x198] sm:$0xff]
    %v561 = vld [vmem:[#allocation2 + $0x1a0] sm:$0xff]
    %v562 = vld [vmem:[#allocation2 + $0x1a8] sm:$0xff]
    %v563 = vld [vmem:[#allocation2 + $0x1b0] sm:$0xff]
    %v564 = vld [vmem:[#allocation2 + $0x1b8] sm:$0xff]
    %v565 = vld [vmem:[#allocation2 + $0x1c0] sm:$0xff]
    %v566 = vld [vmem:[#allocation2 + $0x1c8] sm:$0xff]
    %v567 = vld [vmem:[#allocation2 + $0x1d0] sm:$0xff]
    %v568 = vld [vmem:[#allocation2 + $0x1d8] sm:$0xff]
    %v569 = vld [vmem:[#allocation2 + $0x1e0] sm:$0xff]
    %v570 = vld [vmem:[#allocation2 + $0x1e8] sm:$0xff]
    %v571 = vld [vmem:[#allocation2 + $0x1f0] sm:$0xff]
    %v572 = vld [vmem:[#allocation2 + $0x1f8] sm:$0xff]
    %v573 = vld [vmem:[#allocation2 + $0x200] sm:$0xff]
    %v574 = vld [vmem:[#allocation2 + $0x208] sm:$0xff]
    %v575 = vld [vmem:[#allocation2 + $0x210] sm:$0xff]
    %v576 = vld [vmem:[#allocation2 + $0x218] sm:$0xff]
    %v577 = vld [vmem:[#allocation2 + $0x220] sm:$0xff]
    %v578 = vld [vmem:[#allocation2 + $0x228] sm:$0xff]
    %v579 = vld [vmem:[#allocation2 + $0x230] sm:$0xff]
    %v580 = vld [vmem:[#allocation2 + $0x238] sm:$0xff]
    %v581 = vld [vmem:[#allocation2 + $0x240] sm:$0xff]
    %v582 = vld [vmem:[#allocation2 + $0x248] sm:$0xff]
    %v583 = vld [vmem:[#allocation2 + $0x250] sm:$0xff]
    %v584 = vld [vmem:[#allocation2 + $0x258] sm:$0xff]
    %v585 = vld [vmem:[#allocation2 + $0x260] sm:$0xff]
    %v586 = vld [vmem:[#allocation2 + $0x268] sm:$0xff]
    %v587 = vld [vmem:[#allocation2 + $0x270] sm:$0xff]
    %v588 = vld [vmem:[#allocation2 + $0x278] sm:$0xff]
    %v589 = vld [vmem:[#allocation2 + $0x280] sm:$0xff]
    %v590 = vld [vmem:[#allocation2 + $0x288] sm:$0xff]
    %v591 = vld [vmem:[#allocation2 + $0x290] sm:$0xff]
    %v592 = vld [vmem:[#allocation2 + $0x298] sm:$0xff]
    %v593 = vld [vmem:[#allocation2 + $0x2a0] sm:$0xff]
    %v594 = vld [vmem:[#allocation2 + $0x2a8] sm:$0xff]
    %v595 = vld [vmem:[#allocation2 + $0x2b0] sm:$0xff]
    %v596 = vld [vmem:[#allocation2 + $0x2b8] sm:$0xff]
    %v597 = vld [vmem:[#allocation2 + $0x2c0] sm:$0xff]
    %v598 = vld [vmem:[#allocation2 + $0x2c8] sm:$0xff]
    %v599 = vld [vmem:[#allocation2 + $0x2d0] sm:$0xff]
    %v600 = vld [vmem:[#allocation2 + $0x2d8] sm:$0xff]
    %v601 = vld [vmem:[#allocation2 + $0x2e0] sm:$0xff]
    %v602 = vld [vmem:[#allocation2 + $0x2e8] sm:$0xff]
    %v603 = vld [vmem:[#allocation2 + $0x2f0] sm:$0xff]
    %v604 = vld [vmem:[#allocation2 + $0x2f8] sm:$0xff]
    %v605 = vld [vmem:[#allocation2 + $0x300] sm:$0xff]
    %v606 = vld [vmem:[#allocation2 + $0x308] sm:$0xff]
    %v607 = vld [vmem:[#allocation2 + $0x310] sm:$0xff]
    %v608 = vld [vmem:[#allocation2 + $0x318] sm:$0xff]
    %v609 = vld [vmem:[#allocation2 + $0x320] sm:$0xff]
    %v610 = vld [vmem:[#allocation2 + $0x328] sm:$0xff]
    %v611 = vld [vmem:[#allocation2 + $0x330] sm:$0xff]
    %v612 = vld [vmem:[#allocation2 + $0x338] sm:$0xff]
    %v613 = vld [vmem:[#allocation2 + $0x340] sm:$0xff]
    %v614 = vld [vmem:[#allocation2 + $0x348] sm:$0xff]
    %v615 = vld [vmem:[#allocation2 + $0x350] sm:$0xff]
    %v616 = vld [vmem:[#allocation2 + $0x358] sm:$0xff]
    %v617 = vld [vmem:[#allocation2 + $0x360] sm:$0xff]
    %v618 = vld [vmem:[#allocation2 + $0x368] sm:$0xff]
    %v619 = vld [vmem:[#allocation2 + $0x370] sm:$0xff]
    %v620 = vld [vmem:[#allocation2 + $0x378] sm:$0xff]
    %v621 = vld [vmem:[#allocation2 + $0x380] sm:$0xff]
    %v622 = vld [vmem:[#allocation2 + $0x388] sm:$0xff]
    %v623 = vld [vmem:[#allocation2 + $0x390] sm:$0xff]
    %v624 = vld [vmem:[#allocation2 + $0x398] sm:$0xff]
    %v625 = vld [vmem:[#allocation2 + $0x3a0] sm:$0xff]
    %v626 = vld [vmem:[#allocation2 + $0x3a8] sm:$0xff]
    %v627 = vld [vmem:[#allocation2 + $0x3b0] sm:$0xff]
    %v628 = vld [vmem:[#allocation2 + $0x3b8] sm:$0xff]
    %v629 = vld [vmem:[#allocation2 + $0x3c0] sm:$0xff]
    %v630 = vld [vmem:[#allocation2 + $0x3c8] sm:$0xff]
    %v631 = vld [vmem:[#allocation2 + $0x3d0] sm:$0xff]
    %v632 = vld [vmem:[#allocation2 + $0x3d8] sm:$0xff]
    %v633 = vld [vmem:[#allocation2 + $0x3e0] sm:$0xff]
    %v634 = vld [vmem:[#allocation2 + $0x3e8] sm:$0xff]
    %v635 = vld [vmem:[#allocation2 + $0x3f0] sm:$0xff]
    %v636 = vld [vmem:[#allocation2 + $0x3f8] sm:$0xff]
    %v765 = vunpack.c.l.b16 %v509
    %v766 = vunpack.c.h.b16 %v509
    %v767 = vunpack.c.l.b16 %v510
    %v768 = vunpack.c.h.b16 %v510
    %v769 = vunpack.c.l.b16 %v511
    %v770 = vunpack.c.h.b16 %v511
    %v771 = vunpack.c.l.b16 %v512
    %v772 = vunpack.c.h.b16 %v512
    %v773 = vunpack.c.l.b16 %v513
    %v774 = vunpack.c.h.b16 %v513
    %v775 = vunpack.c.l.b16 %v514
    %v776 = vunpack.c.h.b16 %v514
    %v777 = vunpack.c.l.b16 %v515
    %v778 = vunpack.c.h.b16 %v515
    %v779 = vunpack.c.l.b16 %v516
    %v780 = vunpack.c.h.b16 %v516
    %v781 = vunpack.c.l.b16 %v517
    %v782 = vunpack.c.h.b16 %v517
    %v783 = vunpack.c.l.b16 %v518
    %v784 = vunpack.c.h.b16 %v518
    %v785 = vunpack.c.l.b16 %v519
    %v786 = vunpack.c.h.b16 %v519
    %v787 = vunpack.c.l.b16 %v520
    %v788 = vunpack.c.h.b16 %v520
    %v789 = vunpack.c.l.b16 %v521
    %v790 = vunpack.c.h.b16 %v521
    %v791 = vunpack.c.l.b16 %v522
    %v792 = vunpack.c.h.b16 %v522
    %v793 = vunpack.c.l.b16 %v523
    %v794 = vunpack.c.h.b16 %v523
    %v795 = vunpack.c.l.b16 %v524
    %v796 = vunpack.c.h.b16 %v524
    %v797 = vunpack.c.l.b16 %v525
    %v798 = vunpack.c.h.b16 %v525
    %v799 = vunpack.c.l.b16 %v526
    %v800 = vunpack.c.h.b16 %v526
    %v801 = vunpack.c.l.b16 %v527
    %v802 = vunpack.c.h.b16 %v527
    %v803 = vunpack.c.l.b16 %v528
    %v804 = vunpack.c.h.b16 %v528
    %v805 = vunpack.c.l.b16 %v529
    %v806 = vunpack.c.h.b16 %v529
    %v807 = vunpack.c.l.b16 %v530
    %v808 = vunpack.c.h.b16 %v530
    %v809 = vunpack.c.l.b16 %v531
    %v810 = vunpack.c.h.b16 %v531
    %v811 = vunpack.c.l.b16 %v532
    %v812 = vunpack.c.h.b16 %v532
    %v813 = vunpack.c.l.b16 %v533
    %v814 = vunpack.c.h.b16 %v533
    %v815 = vunpack.c.l.b16 %v534
    %v816 = vunpack.c.h.b16 %v534
    %v817 = vunpack.c.l.b16 %v535
    %v818 = vunpack.c.h.b16 %v535
    %v819 = vunpack.c.l.b16 %v536
    %v820 = vunpack.c.h.b16 %v536
    %v821 = vunpack.c.l.b16 %v537
    %v822 = vunpack.c.h.b16 %v537
    %v823 = vunpack.c.l.b16 %v538
    %v824 = vunpack.c.h.b16 %v538
    %v825 = vunpack.c.l.b16 %v539
    %v826 = vunpack.c.h.b16 %v539
    %v827 = vunpack.c.l.b16 %v540
    %v828 = vunpack.c.h.b16 %v540
    %v829 = vunpack.c.l.b16 %v541
    %v830 = vunpack.c.h.b16 %v541
    %v831 = vunpack.c.l.b16 %v542
    %v832 = vunpack.c.h.b16 %v542
    %v833 = vunpack.c.l.b16 %v543
    %v834 = vunpack.c.h.b16 %v543
    %v835 = vunpack.c.l.b16 %v544
    %v836 = vunpack.c.h.b16 %v544
    %v837 = vunpack.c.l.b16 %v545
    %v838 = vunpack.c.h.b16 %v545
    %v839 = vunpack.c.l.b16 %v546
    %v840 = vunpack.c.h.b16 %v546
    %v841 = vunpack.c.l.b16 %v547
    %v842 = vunpack.c.h.b16 %v547
    %v843 = vunpack.c.l.b16 %v548
    %v844 = vunpack.c.h.b16 %v548
    %v845 = vunpack.c.l.b16 %v549
    %v846 = vunpack.c.h.b16 %v549
    %v847 = vunpack.c.l.b16 %v550
    %v848 = vunpack.c.h.b16 %v550
    %v849 = vunpack.c.l.b16 %v551
    %v850 = vunpack.c.h.b16 %v551
    %v851 = vunpack.c.l.b16 %v552
    %v852 = vunpack.c.h.b16 %v552
    %v853 = vunpack.c.l.b16 %v553
    %v854 = vunpack.c.h.b16 %v553
    %v855 = vunpack.c.l.b16 %v554
    %v856 = vunpack.c.h.b16 %v554
    %v857 = vunpack.c.l.b16 %v555
    %v858 = vunpack.c.h.b16 %v555
    %v859 = vunpack.c.l.b16 %v556
    %v860 = vunpack.c.h.b16 %v556
    %v861 = vunpack.c.l.b16 %v557
    %v862 = vunpack.c.h.b16 %v557
    %v863 = vunpack.c.l.b16 %v558
    %v864 = vunpack.c.h.b16 %v558
    %v865 = vunpack.c.l.b16 %v559
    %v866 = vunpack.c.h.b16 %v559
    %v867 = vunpack.c.l.b16 %v560
    %v868 = vunpack.c.h.b16 %v560
    %v869 = vunpack.c.l.b16 %v561
    %v870 = vunpack.c.h.b16 %v561
    %v871 = vunpack.c.l.b16 %v562
    %v872 = vunpack.c.h.b16 %v562
    %v873 = vunpack.c.l.b16 %v563
    %v874 = vunpack.c.h.b16 %v563
    %v875 = vunpack.c.l.b16 %v564
    %v876 = vunpack.c.h.b16 %v564
    %v877 = vunpack.c.l.b16 %v565
    %v878 = vunpack.c.h.b16 %v565
    %v879 = vunpack.c.l.b16 %v566
    %v880 = vunpack.c.h.b16 %v566
    %v881 = vunpack.c.l.b16 %v567
    %v882 = vunpack.c.h.b16 %v567
    %v883 = vunpack.c.l.b16 %v568
    %v884 = vunpack.c.h.b16 %v568
    %v885 = vunpack.c.l.b16 %v569
    %v886 = vunpack.c.h.b16 %v569
    %v887 = vunpack.c.l.b16 %v570
    %v888 = vunpack.c.h.b16 %v570
    %v889 = vunpack.c.l.b16 %v571
    %v890 = vunpack.c.h.b16 %v571
    %v891 = vunpack.c.l.b16 %v572
    %v892 = vunpack.c.h.b16 %v572
    %v893 = vunpack.c.l.b16 %v573
    %v894 = vunpack.c.h.b16 %v573
    %v895 = vunpack.c.l.b16 %v574
    %v896 = vunpack.c.h.b16 %v574
    %v897 = vunpack.c.l.b16 %v575
    %v898 = vunpack.c.h.b16 %v575
    %v899 = vunpack.c.l.b16 %v576
    %v900 = vunpack.c.h.b16 %v576
    %v901 = vunpack.c.l.b16 %v577
    %v902 = vunpack.c.h.b16 %v577
    %v903 = vunpack.c.l.b16 %v578
    %v904 = vunpack.c.h.b16 %v578
    %v905 = vunpack.c.l.b16 %v579
    %v906 = vunpack.c.h.b16 %v579
    %v907 = vunpack.c.l.b16 %v580
    %v908 = vunpack.c.h.b16 %v580
    %v909 = vunpack.c.l.b16 %v581
    %v910 = vunpack.c.h.b16 %v581
    %v911 = vunpack.c.l.b16 %v582
    %v912 = vunpack.c.h.b16 %v582
    %v913 = vunpack.c.l.b16 %v583
    %v914 = vunpack.c.h.b16 %v583
    %v915 = vunpack.c.l.b16 %v584
    %v916 = vunpack.c.h.b16 %v584
    %v917 = vunpack.c.l.b16 %v585
    %v918 = vunpack.c.h.b16 %v585
    %v919 = vunpack.c.l.b16 %v586
    %v920 = vunpack.c.h.b16 %v586
    %v921 = vunpack.c.l.b16 %v587
    %v922 = vunpack.c.h.b16 %v587
    %v923 = vunpack.c.l.b16 %v588
    %v924 = vunpack.c.h.b16 %v588
    %v925 = vunpack.c.l.b16 %v589
    %v926 = vunpack.c.h.b16 %v589
    %v927 = vunpack.c.l.b16 %v590
    %v928 = vunpack.c.h.b16 %v590
    %v929 = vunpack.c.l.b16 %v591
    %v930 = vunpack.c.h.b16 %v591
    %v931 = vunpack.c.l.b16 %v592
    %v932 = vunpack.c.h.b16 %v592
    %v933 = vunpack.c.l.b16 %v593
    %v934 = vunpack.c.h.b16 %v593
    %v935 = vunpack.c.l.b16 %v594
    %v936 = vunpack.c.h.b16 %v594
    %v937 = vunpack.c.l.b16 %v595
    %v938 = vunpack.c.h.b16 %v595
    %v939 = vunpack.c.l.b16 %v596
    %v940 = vunpack.c.h.b16 %v596
    %v941 = vunpack.c.l.b16 %v597
    %v942 = vunpack.c.h.b16 %v597
    %v943 = vunpack.c.l.b16 %v598
    %v944 = vunpack.c.h.b16 %v598
    %v945 = vunpack.c.l.b16 %v599
    %v946 = vunpack.c.h.b16 %v599
    %v947 = vunpack.c.l.b16 %v600
    %v948 = vunpack.c.h.b16 %v600
    %v949 = vunpack.c.l.b16 %v601
    %v950 = vunpack.c.h.b16 %v601
    %v951 = vunpack.c.l.b16 %v602
    %v952 = vunpack.c.h.b16 %v602
    %v953 = vunpack.c.l.b16 %v603
    %v954 = vunpack.c.h.b16 %v603
    %v955 = vunpack.c.l.b16 %v604
    %v956 = vunpack.c.h.b16 %v604
    %v957 = vunpack.c.l.b16 %v605
    %v958 = vunpack.c.h.b16 %v605
    %v959 = vunpack.c.l.b16 %v606
    %v960 = vunpack.c.h.b16 %v606
    %v961 = vunpack.c.l.b16 %v607
    %v962 = vunpack.c.h.b16 %v607
    %v963 = vunpack.c.l.b16 %v608
    %v964 = vunpack.c.h.b16 %v608
    %v965 = vunpack.c.l.b16 %v609
    %v966 = vunpack.c.h.b16 %v609
    %v967 = vunpack.c.l.b16 %v610
    %v968 = vunpack.c.h.b16 %v610
    %v969 = vunpack.c.l.b16 %v611
    %v970 = vunpack.c.h.b16 %v611
    %v971 = vunpack.c.l.b16 %v612
    %v972 = vunpack.c.h.b16 %v612
    %v973 = vunpack.c.l.b16 %v613
    %v974 = vunpack.c.h.b16 %v613
    %v975 = vunpack.c.l.b16 %v614
    %v976 = vunpack.c.h.b16 %v614
    %v977 = vunpack.c.l.b16 %v615
    %v978 = vunpack.c.h.b16 %v615
    %v979 = vunpack.c.l.b16 %v616
    %v980 = vunpack.c.h.b16 %v616
    %v981 = vunpack.c.l.b16 %v617
    %v982 = vunpack.c.h.b16 %v617
    %v983 = vunpack.c.l.b16 %v618
    %v984 = vunpack.c.h.b16 %v618
    %v985 = vunpack.c.l.b16 %v619
    %v986 = vunpack.c.h.b16 %v619
    %v987 = vunpack.c.l.b16 %v620
    %v988 = vunpack.c.h.b16 %v620
    %v989 = vunpack.c.l.b16 %v621
    %v990 = vunpack.c.h.b16 %v621
    %v991 = vunpack.c.l.b16 %v622
    %v992 = vunpack.c.h.b16 %v622
    %v993 = vunpack.c.l.b16 %v623
    %v994 = vunpack.c.h.b16 %v623
    %v995 = vunpack.c.l.b16 %v624
    %v996 = vunpack.c.h.b16 %v624
    %v997 = vunpack.c.l.b16 %v625
    %v998 = vunpack.c.h.b16 %v625
    %v999 = vunpack.c.l.b16 %v626
    %v1000 = vunpack.c.h.b16 %v626
    %v1001 = vunpack.c.l.b16 %v627
    %v1002 = vunpack.c.h.b16 %v627
    %v1003 = vunpack.c.l.b16 %v628
    %v1004 = vunpack.c.h.b16 %v628
    %v1005 = vunpack.c.l.b16 %v629
    %v1006 = vunpack.c.h.b16 %v629
    %v1007 = vunpack.c.l.b16 %v630
    %v1008 = vunpack.c.h.b16 %v630
    %v1009 = vunpack.c.l.b16 %v631
    %v1010 = vunpack.c.h.b16 %v631
    %v1011 = vunpack.c.l.b16 %v632
    %v1012 = vunpack.c.h.b16 %v632
    %v1013 = vunpack.c.l.b16 %v633
    %v1014 = vunpack.c.h.b16 %v633
    %v1015 = vunpack.c.l.b16 %v634
    %v1016 = vunpack.c.h.b16 %v634
    %v1017 = vunpack.c.l.b16 %v635
    %v1018 = vunpack.c.h.b16 %v635
    %v1019 = vunpack.c.l.b16 %v636
    %v1020 = vunpack.c.h.b16 %v636
    %v1021 = vpack.c.b16 %v769, %v765
    %v1022 = vpack.c.b16 %v770, %v766
    %v1023 = vpack.c.b16 %v771, %v767
    %v1024 = vpack.c.b16 %v772, %v768
    %v1025 = vpack.c.b16 %v777, %v773
    %v1026 = vpack.c.b16 %v778, %v774
    %v1027 = vpack.c.b16 %v779, %v775
    %v1028 = vpack.c.b16 %v780, %v776
    %v1029 = vpack.c.b16 %v785, %v781
    %v1030 = vpack.c.b16 %v786, %v782
    %v1031 = vpack.c.b16 %v787, %v783
    %v1032 = vpack.c.b16 %v788, %v784
    %v1033 = vpack.c.b16 %v793, %v789
    %v1034 = vpack.c.b16 %v794, %v790
    %v1035 = vpack.c.b16 %v795, %v791
    %v1036 = vpack.c.b16 %v796, %v792
    %v1037 = vpack.c.b16 %v801, %v797
    %v1038 = vpack.c.b16 %v802, %v798
    %v1039 = vpack.c.b16 %v803, %v799
    %v1040 = vpack.c.b16 %v804, %v800
    %v1041 = vpack.c.b16 %v809, %v805
    %v1042 = vpack.c.b16 %v810, %v806
    %v1043 = vpack.c.b16 %v811, %v807
    %v1044 = vpack.c.b16 %v812, %v808
    %v1045 = vpack.c.b16 %v817, %v813
    %v1046 = vpack.c.b16 %v818, %v814
    %v1047 = vpack.c.b16 %v819, %v815
    %v1048 = vpack.c.b16 %v820, %v816
    %v1049 = vpack.c.b16 %v825, %v821
    %v1050 = vpack.c.b16 %v826, %v822
    %v1051 = vpack.c.b16 %v827, %v823
    %v1052 = vpack.c.b16 %v828, %v824
    %v1053 = vpack.c.b16 %v833, %v829
    %v1054 = vpack.c.b16 %v834, %v830
    %v1055 = vpack.c.b16 %v835, %v831
    %v1056 = vpack.c.b16 %v836, %v832
    %v1057 = vpack.c.b16 %v841, %v837
    %v1058 = vpack.c.b16 %v842, %v838
    %v1059 = vpack.c.b16 %v843, %v839
    %v1060 = vpack.c.b16 %v844, %v840
    %v1061 = vpack.c.b16 %v849, %v845
    %v1062 = vpack.c.b16 %v850, %v846
    %v1063 = vpack.c.b16 %v851, %v847
    %v1064 = vpack.c.b16 %v852, %v848
    %v1065 = vpack.c.b16 %v857, %v853
    %v1066 = vpack.c.b16 %v858, %v854
    %v1067 = vpack.c.b16 %v859, %v855
    %v1068 = vpack.c.b16 %v860, %v856
    %v1069 = vpack.c.b16 %v865, %v861
    %v1070 = vpack.c.b16 %v866, %v862
    %v1071 = vpack.c.b16 %v867, %v863
    %v1072 = vpack.c.b16 %v868, %v864
    %v1073 = vpack.c.b16 %v873, %v869
    %v1074 = vpack.c.b16 %v874, %v870
    %v1075 = vpack.c.b16 %v875, %v871
    %v1076 = vpack.c.b16 %v876, %v872
    %v1077 = vpack.c.b16 %v881, %v877
    %v1078 = vpack.c.b16 %v882, %v878
    %v1079 = vpack.c.b16 %v883, %v879
    %v1080 = vpack.c.b16 %v884, %v880
    %v1081 = vpack.c.b16 %v889, %v885
    %v1082 = vpack.c.b16 %v890, %v886
    %v1083 = vpack.c.b16 %v891, %v887
    %v1084 = vpack.c.b16 %v892, %v888
    %v1085 = vpack.c.b16 %v897, %v893
    %v1086 = vpack.c.b16 %v898, %v894
    %v1087 = vpack.c.b16 %v899, %v895
    %v1088 = vpack.c.b16 %v900, %v896
    %v1089 = vpack.c.b16 %v905, %v901
    %v1090 = vpack.c.b16 %v906, %v902
    %v1091 = vpack.c.b16 %v907, %v903
    %v1092 = vpack.c.b16 %v908, %v904
    %v1093 = vpack.c.b16 %v913, %v909
    %v1094 = vpack.c.b16 %v914, %v910
    %v1095 = vpack.c.b16 %v915, %v911
    %v1096 = vpack.c.b16 %v916, %v912
    %v1097 = vpack.c.b16 %v921, %v917
    %v1098 = vpack.c.b16 %v922, %v918
    %v1099 = vpack.c.b16 %v923, %v919
    %v1100 = vpack.c.b16 %v924, %v920
    %v1101 = vpack.c.b16 %v929, %v925
    %v1102 = vpack.c.b16 %v930, %v926
    %v1103 = vpack.c.b16 %v931, %v927
    %v1104 = vpack.c.b16 %v932, %v928
    %v1105 = vpack.c.b16 %v937, %v933
    %v1106 = vpack.c.b16 %v938, %v934
    %v1107 = vpack.c.b16 %v939, %v935
    %v1108 = vpack.c.b16 %v940, %v936
    %v1109 = vpack.c.b16 %v945, %v941
    %v1110 = vpack.c.b16 %v946, %v942
    %v1111 = vpack.c.b16 %v947, %v943
    %v1112 = vpack.c.b16 %v948, %v944
    %v1113 = vpack.c.b16 %v953, %v949
    %v1114 = vpack.c.b16 %v954, %v950
    %v1115 = vpack.c.b16 %v955, %v951
    %v1116 = vpack.c.b16 %v956, %v952
    %v1117 = vpack.c.b16 %v961, %v957
    %v1118 = vpack.c.b16 %v962, %v958
    %v1119 = vpack.c.b16 %v963, %v959
    %v1120 = vpack.c.b16 %v964, %v960
    %v1121 = vpack.c.b16 %v969, %v965
    %v1122 = vpack.c.b16 %v970, %v966
    %v1123 = vpack.c.b16 %v971, %v967
    %v1124 = vpack.c.b16 %v972, %v968
    %v1125 = vpack.c.b16 %v977, %v973
    %v1126 = vpack.c.b16 %v978, %v974
    %v1127 = vpack.c.b16 %v979, %v975
    %v1128 = vpack.c.b16 %v980, %v976
    %v1129 = vpack.c.b16 %v985, %v981
    %v1130 = vpack.c.b16 %v986, %v982
    %v1131 = vpack.c.b16 %v987, %v983
    %v1132 = vpack.c.b16 %v988, %v984
    %v1133 = vpack.c.b16 %v993, %v989
    %v1134 = vpack.c.b16 %v994, %v990
    %v1135 = vpack.c.b16 %v995, %v991
    %v1136 = vpack.c.b16 %v996, %v992
    %v1137 = vpack.c.b16 %v1001, %v997
    %v1138 = vpack.c.b16 %v1002, %v998
    %v1139 = vpack.c.b16 %v1003, %v999
    %v1140 = vpack.c.b16 %v1004, %v1000
    %v1141 = vpack.c.b16 %v1009, %v1005
    %v1142 = vpack.c.b16 %v1010, %v1006
    %v1143 = vpack.c.b16 %v1011, %v1007
    %v1144 = vpack.c.b16 %v1012, %v1008
    %v1145 = vpack.c.b16 %v1017, %v1013
    %v1146 = vpack.c.b16 %v1018, %v1014
    %v1147 = vpack.c.b16 %v1019, %v1015
    %v1148 = vpack.c.b16 %v1020, %v1016
    %1277 = vmatprep.subr.bf16.mxu0 %v1050
    %1278 = vmatpush1.bf16.msra.mxu0 %v1049
    %1279 = vmatprep.subr.bf16.mxu0 %v1046
    %1280 = vmatpush1.bf16.msra.mxu0 %v1045
    %1281 = vmatprep.subr.bf16.mxu0 %v1042
    %1282 = vmatpush1.bf16.msra.mxu0 %v1041
    %1283 = vmatprep.subr.bf16.mxu0 %v1038
    %1284 = vmatpush1.bf16.msra.mxu0 %v1037
    %1285 = vmatprep.subr.bf16.mxu0 %v1034
    %1286 = vmatpush1.bf16.msra.mxu0 %v1033
    %1287 = vmatprep.subr.bf16.mxu0 %v1030
    %1288 = vmatpush1.bf16.msra.mxu0 %v1029
    %1289 = vmatprep.subr.bf16.mxu0 %v1026
    %1290 = vmatpush1.bf16.msra.mxu0 %v1025
    %1291 = vmatprep.subr.bf16.mxu0 %v1022
    %1292 = vmatpush1.bf16.msra.mxu0 %v1021
    %1293 = vmatprep.subr.bf16.mxu0 %v1082
    %1294 = vmatpush2.bf16.msra.mxu0 %v1081
    %1295 = vmatprep.subr.bf16.mxu0 %v1078
    %1296 = vmatpush2.bf16.msra.mxu0 %v1077
    %1297 = vmatprep.subr.bf16.mxu0 %v1074
    %1298 = vmatpush2.bf16.msra.mxu0 %v1073
    %1299 = vmatprep.subr.bf16.mxu0 %v1070
    %1300 = vmatpush2.bf16.msra.mxu0 %v1069
    %1301 = vmatprep.subr.bf16.mxu0 %v1066
    %1302 = vmatpush2.bf16.msra.mxu0 %v1065
    %1303 = vmatprep.subr.bf16.mxu0 %v1062
    %1304 = vmatpush2.bf16.msra.mxu0 %v1061
    %1305 = vmatprep.subr.bf16.mxu0 %v1058
    %1306 = vmatpush2.bf16.msra.mxu0 %v1057
    %1307 = vmatprep.subr.bf16.mxu0 %v1054
    %1308 = vmatpush2.bf16.msra.mxu0 %v1053
    %1309 = vmatprep.mubr.bf16.mxu0 %v502
    %1310 = vmatmul.mubr.bf16.gmra.mxu0 %v501
    %v1311 = vpop.f32.mrf.mxu0
    %v1312 = vadd.f32 0.0, %v1311
    %v1313 = vpop.f32.mrf.mxu0
    %v1314 = vadd.f32 0.0, %v1313
    %v1315 = vpop.f32.mrf.mxu0
    %v1316 = vpop.f32.mrf.mxu0
    %1317 = vdwg.mxu0
    %1318 = vmatprep.subr.bf16.mxu0 %v1114
    %1319 = vmatpush1.bf16.msra.mxu0 %v1113
    %1320 = vmatprep.subr.bf16.mxu0 %v1110
    %1321 = vmatpush1.bf16.msra.mxu0 %v1109
    %1322 = vmatprep.subr.bf16.mxu0 %v1106
    %1323 = vmatpush1.bf16.msra.mxu0 %v1105
    %1324 = vmatprep.subr.bf16.mxu0 %v1102
    %1325 = vmatpush1.bf16.msra.mxu0 %v1101
    %1326 = vmatprep.subr.bf16.mxu0 %v1098
    %1327 = vmatpush1.bf16.msra.mxu0 %v1097
    %1328 = vmatprep.subr.bf16.mxu0 %v1094
    %1329 = vmatpush1.bf16.msra.mxu0 %v1093
    %1330 = vmatprep.subr.bf16.mxu0 %v1090
    %1331 = vmatpush1.bf16.msra.mxu0 %v1089
    %1332 = vmatprep.subr.bf16.mxu0 %v1086
    %1333 = vmatpush1.bf16.msra.mxu0 %v1085
    %1334 = vmatprep.subr.bf16.mxu0 %v1146
    %1335 = vmatpush2.bf16.msra.mxu0 %v1145
    %1336 = vmatprep.subr.bf16.mxu0 %v1142
    %1337 = vmatpush2.bf16.msra.mxu0 %v1141
    %1338 = vmatprep.subr.bf16.mxu0 %v1138
    %1339 = vmatpush2.bf16.msra.mxu0 %v1137
    %1340 = vmatprep.subr.bf16.mxu0 %v1134
    %1341 = vmatpush2.bf16.msra.mxu0 %v1133
    %1342 = vmatprep.subr.bf16.mxu0 %v1130
    %1343 = vmatpush2.bf16.msra.mxu0 %v1129
    %1344 = vmatprep.subr.bf16.mxu0 %v1126
    %1345 = vmatpush2.bf16.msra.mxu0 %v1125
    %1346 = vmatprep.subr.bf16.mxu0 %v1122
    %1347 = vmatpush2.bf16.msra.mxu0 %v1121
    %1348 = vmatprep.subr.bf16.mxu0 %v1118
    %1349 = vmatpush2.bf16.msra.mxu0 %v1117
    %1350 = vmatprep.mubr.bf16.mxu0 %v504
    %1351 = vmatmul.mubr.bf16.gmra.mxu0 %v503
    %v1352 = vpop.f32.mrf.mxu0
    %v1353 = vadd.f32 %v1312, %v1352
    %v1354 = vpop.f32.mrf.mxu0
    %v1355 = vadd.f32 %v1314, %v1354
    %v1356 = vpop.f32.mrf.mxu0
    %v1357 = vpop.f32.mrf.mxu0
    %1358 = vdwg.mxu0
    %1359 = vmatprep.subr.bf16.mxu0 %v1052
    %1360 = vmatpush1.bf16.msra.mxu0 %v1051
    %1361 = vmatprep.subr.bf16.mxu0 %v1048
    %1362 = vmatpush1.bf16.msra.mxu0 %v1047
    %1363 = vmatprep.subr.bf16.mxu0 %v1044
    %1364 = vmatpush1.bf16.msra.mxu0 %v1043
    %1365 = vmatprep.subr.bf16.mxu0 %v1040
    %1366 = vmatpush1.bf16.msra.mxu0 %v1039
    %1367 = vmatprep.subr.bf16.mxu0 %v1036
    %1368 = vmatpush1.bf16.msra.mxu0 %v1035
    %1369 = vmatprep.subr.bf16.mxu0 %v1032
    %1370 = vmatpush1.bf16.msra.mxu0 %v1031
    %1371 = vmatprep.subr.bf16.mxu0 %v1028
    %1372 = vmatpush1.bf16.msra.mxu0 %v1027
    %1373 = vmatprep.subr.bf16.mxu0 %v1024
    %1374 = vmatpush1.bf16.msra.mxu0 %v1023
    %1375 = vmatprep.subr.bf16.mxu0 %v1084
    %1376 = vmatpush2.bf16.msra.mxu0 %v1083
    %1377 = vmatprep.subr.bf16.mxu0 %v1080
    %1378 = vmatpush2.bf16.msra.mxu0 %v1079
    %1379 = vmatprep.subr.bf16.mxu0 %v1076
    %1380 = vmatpush2.bf16.msra.mxu0 %v1075
    %1381 = vmatprep.subr.bf16.mxu0 %v1072
    %1382 = vmatpush2.bf16.msra.mxu0 %v1071
    %1383 = vmatprep.subr.bf16.mxu0 %v1068
    %1384 = vmatpush2.bf16.msra.mxu0 %v1067
    %1385 = vmatprep.subr.bf16.mxu0 %v1064
    %1386 = vmatpush2.bf16.msra.mxu0 %v1063
    %1387 = vmatprep.subr.bf16.mxu0 %v1060
    %1388 = vmatpush2.bf16.msra.mxu0 %v1059
    %1389 = vmatprep.subr.bf16.mxu0 %v1056
    %1390 = vmatpush2.bf16.msra.mxu0 %v1055
    %1391 = vmatprep.mubr.bf16.mxu0 %v502
    %1392 = vmatmul.mubr.bf16.gmra.mxu0 %v501
    %v1393 = vpop.f32.mrf.mxu0
    %v1394 = vadd.f32 0.0, %v1393
    %v1395 = vpop.f32.mrf.mxu0
    %v1396 = vadd.f32 0.0, %v1395
    %v1397 = vpop.f32.mrf.mxu0
    %v1398 = vpop.f32.mrf.mxu0
    %1399 = vdwg.mxu0
    %1400 = vmatprep.subr.bf16.mxu0 %v1116
    %1401 = vmatpush1.bf16.msra.mxu0 %v1115
    %1402 = vmatprep.subr.bf16.mxu0 %v1112
    %1403 = vmatpush1.bf16.msra.mxu0 %v1111
    %1404 = vmatprep.subr.bf16.mxu0 %v1108
    %1405 = vmatpush1.bf16.msra.mxu0 %v1107
    %1406 = vmatprep.subr.bf16.mxu0 %v1104
    %1407 = vmatpush1.bf16.msra.mxu0 %v1103
    %1408 = vmatprep.subr.bf16.mxu0 %v1100
    %1409 = vmatpush1.bf16.msra.mxu0 %v1099
    %1410 = vmatprep.subr.bf16.mxu0 %v1096
    %1411 = vmatpush1.bf16.msra.mxu0 %v1095
    %1412 = vmatprep.subr.bf16.mxu0 %v1092
    %1413 = vmatpush1.bf16.msra.mxu0 %v1091
    %1414 = vmatprep.subr.bf16.mxu0 %v1088
    %1415 = vmatpush1.bf16.msra.mxu0 %v1087
    %1416 = vmatprep.subr.bf16.mxu0 %v1148
    %1417 = vmatpush2.bf16.msra.mxu0 %v1147
    %1418 = vmatprep.subr.bf16.mxu0 %v1144
    %1419 = vmatpush2.bf16.msra.mxu0 %v1143
    %1420 = vmatprep.subr.bf16.mxu0 %v1140
    %1421 = vmatpush2.bf16.msra.mxu0 %v1139
    %1422 = vmatprep.subr.bf16.mxu0 %v1136
    %1423 = vmatpush2.bf16.msra.mxu0 %v1135
    %1424 = vmatprep.subr.bf16.mxu0 %v1132
    %1425 = vmatpush2.bf16.msra.mxu0 %v1131
    %1426 = vmatprep.subr.bf16.mxu0 %v1128
    %1427 = vmatpush2.bf16.msra.mxu0 %v1127
    %1428 = vmatprep.subr.bf16.mxu0 %v1124
    %1429 = vmatpush2.bf16.msra.mxu0 %v1123
    %1430 = vmatprep.subr.bf16.mxu0 %v1120
    %1431 = vmatpush2.bf16.msra.mxu0 %v1119
    %1432 = vmatprep.mubr.bf16.mxu0 %v504
    %1433 = vmatmul.mubr.bf16.gmra.mxu0 %v503
    %v1434 = vpop.f32.mrf.mxu0
    %v1435 = vadd.f32 %v1394, %v1434
    %v1436 = vpop.f32.mrf.mxu0
    %v1437 = vadd.f32 %v1396, %v1436
    %v1438 = vpop.f32.mrf.mxu0
    %v1439 = vpop.f32.mrf.mxu0
    %1440 = vdwg.mxu0
    %v1441 = vld [vmem:[#allocation13 + $0x8] sm:$0xf]
    %v1442 = vld [vmem:[#allocation13 + $0xc] sm:$0xf]
    %v1443 = vrot.slane %v1353, 4
    %v1444 = vadd.f32 %v1353, %v1443
    %v1445 = vrot.slane %v1444, 2
    %v1446 = vadd.f32 %v1444, %v1445
    %v1447 = vrot.slane %v1446, 1
    %v1448 = vadd.f32 %v1446, %v1447
    %v1449 = vrot.slane %v1355, 4
    %v1450 = vadd.f32 %v1355, %v1449
    %v1451 = vrot.slane %v1450, 2
    %v1452 = vadd.f32 %v1450, %v1451
    %v1453 = vrot.slane %v1452, 1
    %v1454 = vadd.f32 %v1452, %v1453
    %v1455 = vrot.slane %v1435, 4
    %v1456 = vadd.f32 %v1435, %v1455
    %v1457 = vrot.slane %v1456, 2
    %v1458 = vadd.f32 %v1456, %v1457
    %v1459 = vrot.slane %v1458, 1
    %v1460 = vadd.f32 %v1458, %v1459
    %v1461 = vrot.slane %v1437, 4
    %v1462 = vadd.f32 %v1437, %v1461
    %v1463 = vrot.slane %v1462, 2
    %v1464 = vadd.f32 %v1462, %v1463
    %v1465 = vrot.slane %v1464, 1
    %v1466 = vadd.f32 %v1464, %v1465
    %v1467 = vmul.f32 %v1448, 0.125
    %v1468 = vmul.f32 %v1454, 0.125
    %v1469 = vmul.f32 %v1460, 0.125
    %v1470 = vmul.f32 %v1466, 0.125
    %v1471 = vmul.f32 %v1353, %v1353
    %v1472 = vmul.f32 %v1355, %v1355
    %v1473 = vmul.f32 %v1435, %v1435
    %v1474 = vmul.f32 %v1437, %v1437
    %v1475 = vrot.slane %v1471, 4
    %v1476 = vadd.f32 %v1471, %v1475
    %v1477 = vrot.slane %v1476, 2
    %v1478 = vadd.f32 %v1476, %v1477
    %v1479 = vrot.slane %v1478, 1
    %v1480 = vadd.f32 %v1478, %v1479
    %v1481 = vrot.slane %v1472, 4
    %v1482 = vadd.f32 %v1472, %v1481
    %v1483 = vrot.slane %v1482, 2
    %v1484 = vadd.f32 %v1482, %v1483
    %v1485 = vrot.slane %v1484, 1
    %v1486 = vadd.f32 %v1484, %v1485
    %v1487 = vrot.slane %v1473, 4
    %v1488 = vadd.f32 %v1473, %v1487
    %v1489 = vrot.slane %v1488, 2
    %v1490 = vadd.f32 %v1488, %v1489
    %v1491 = vrot.slane %v1490, 1
    %v1492 = vadd.f32 %v1490, %v1491
    %v1493 = vrot.slane %v1474, 4
    %v1494 = vadd.f32 %v1474, %v1493
    %v1495 = vrot.slane %v1494, 2
    %v1496 = vadd.f32 %v1494, %v1495
    %v1497 = vrot.slane %v1496, 1
    %v1498 = vadd.f32 %v1496, %v1497
    %v1499 = vmul.f32 %v1480, 0.125
    %v1500 = vmul.f32 %v1486, 0.125
    %v1501 = vmul.f32 %v1492, 0.125
    %v1502 = vmul.f32 %v1498, 0.125
    %v1503 = vmul.f32 %v1467, %v1467
    %v1504 = vmul.f32 %v1468, %v1468
    %v1505 = vmul.f32 %v1469, %v1469
    %v1506 = vmul.f32 %v1470, %v1470
    %v1507 = vsub.f32 %v1499, %v1503
    %v1508 = vsub.f32 %v1500, %v1504
    %v1509 = vsub.f32 %v1501, %v1505
    %v1510 = vsub.f32 %v1502, %v1506
    %v1511 = vmax.f32 %v1507, 0.0
    %v1512 = vmax.f32 %v1508, 0.0
    %v1513 = vmax.f32 %v1509, 0.0
    %v1514 = vmax.f32 %v1510, 0.0
    %v1515 = vadd.f32 %v1511, 1e-05
    %v1516 = vadd.f32 %v1512, 1e-05
    %v1517 = vadd.f32 %v1513, 1e-05
    %v1518 = vadd.f32 %v1514, 1e-05
    %v1519 = vrsqrt.pop %v1515
    %v1520 = vrsqrt.pop %v1516
    %v1521 = vrsqrt.pop %v1517
    %v1522 = vrsqrt.pop %v1518
    %v1527 = vcombine.low %v1519, %v1520
    %v1528 = vcombine.low %v1521, %v1522
    %v1530 = vunpack.c.l.s4 1966171168
    %v1531 = vunpack.c.0.s8 %v1530
    %v1532 = vlaneseq
    %v1533 = vshrl.u32 %v1532, 7
    %v1534 = vsub.s32 %v1531, %v1533
    %v1535 = vrot.slane %v1527, %v1534
    %v1537 = vunpack.c.l.s4 1966171168
    %v1538 = vunpack.c.0.s8 %v1537
    %v1539 = vlaneseq
    %v1540 = vshrl.u32 %v1539, 7
    %v1541 = vsub.s32 %v1538, %v1540
    %v1542 = vrot.slane %v1528, %v1541
    %v1543 = vcombine.low %v1535, %v1542
    %v1545 = vunpack.c.l.s4 1966171168
    %v1546 = vunpack.c.0.s8 %v1545
    %v1547 = vlaneseq
    %v1548 = vshrl.u32 %v1547, 7
    %v1549 = vsub.s32 %v1546, %v1548
    %v1550 = vrot.slane %v1543, %v1549
    %v1552 = vmul.f32 %v1441, %v1550
    %v1554 = vlaneseq
    %v1555 = vshrl.u32 %v1554, 7
    %v1556 = vsub.s32 0, %v1555
    %v1557 = vrot.slane %v1552, %v1556
    %v1558 = vlaneseq
    %v1559 = vshrl.u32 %v1558, 7
    %v1560 = vsub.s32 1, %v1559
    %v1561 = vrot.slane %v1552, %v1560
    %v1562 = vlaneseq
    %v1563 = vshrl.u32 %v1562, 7
    %v1564 = vsub.s32 2, %v1563
    %v1565 = vrot.slane %v1552, %v1564
    %v1566 = vlaneseq
    %v1567 = vshrl.u32 %v1566, 7
    %v1568 = vsub.s32 3, %v1567
    %v1569 = vrot.slane %v1552, %v1568
    %v1574 = vmul.f32 %v1467, %v1557
    %v1575 = vmul.f32 %v1468, %v1561
    %v1576 = vmul.f32 %v1469, %v1565
    %v1577 = vmul.f32 %v1470, %v1569
    %v1582 = vcombine.low %v1574, %v1575
    %v1583 = vcombine.low %v1576, %v1577
    %v1585 = vunpack.c.l.s4 1966171168
    %v1586 = vunpack.c.0.s8 %v1585
    %v1587 = vlaneseq
    %v1588 = vshrl.u32 %v1587, 7
    %v1589 = vsub.s32 %v1586, %v1588
    %v1590 = vrot.slane %v1582, %v1589
    %v1592 = vunpack.c.l.s4 1966171168
    %v1593 = vunpack.c.0.s8 %v1592
    %v1594 = vlaneseq
    %v1595 = vshrl.u32 %v1594, 7
    %v1596 = vsub.s32 %v1593, %v1595
    %v1597 = vrot.slane %v1583, %v1596
    %v1598 = vcombine.low %v1590, %v1597
    %v1600 = vunpack.c.l.s4 1966171168
    %v1601 = vunpack.c.0.s8 %v1600
    %v1602 = vlaneseq
    %v1603 = vshrl.u32 %v1602, 7
    %v1604 = vsub.s32 %v1601, %v1603
    %v1605 = vrot.slane %v1598, %v1604
    %v1607 = vsub.f32 %v1442, %v1605
    %v1608 = vmul.f32 %v1353, %v1557
    %v1609 = vmul.f32 %v1355, %v1561
    %v1610 = vmul.f32 %v1435, %v1565
    %v1611 = vmul.f32 %v1437, %v1569
    %v1613 = vlaneseq
    %v1614 = vshrl.u32 %v1613, 7
    %v1615 = vsub.s32 0, %v1614
    %v1616 = vrot.slane %v1607, %v1615
    %v1617 = vlaneseq
    %v1618 = vshrl.u32 %v1617, 7
    %v1619 = vsub.s32 1, %v1618
    %v1620 = vrot.slane %v1607, %v1619
    %v1621 = vlaneseq
    %v1622 = vshrl.u32 %v1621, 7
    %v1623 = vsub.s32 2, %v1622
    %v1624 = vrot.slane %v1607, %v1623
    %v1625 = vlaneseq
    %v1626 = vshrl.u32 %v1625, 7
    %v1627 = vsub.s32 3, %v1626
    %v1628 = vrot.slane %v1607, %v1627
    %v1633 = vadd.f32 %v1608, %v1616
    %v1634 = vadd.f32 %v1609, %v1620
    %v1635 = vadd.f32 %v1610, %v1624
    %v1636 = vadd.f32 %v1611, %v1628
    %v1637 = vmax.f32 %v1633, 0.0
    %v1638 = vmax.f32 %v1634, 0.0
    %v1639 = vmax.f32 %v1635, 0.0
    %v1640 = vmax.f32 %v1636, 0.0
    %v1641 = vpack.c.bf16 %v1637, %v1637
    %v1642 = vpack.c.bf16 %v1638, %v1638
    %v1643 = vpack.c.bf16 %v1639, %v1639
    %v1644 = vpack.c.bf16 %v1640, %v1640
    %s1645 = sshll.u32 %s506, 4
    %1646 = dma.done %s69, %s1645
    %v1647 = vld [vmem:[#allocation3] sm:$0xff]
    %v1648 = vld [vmem:[#allocation3 + $0x8] sm:$0xff]
    %v1649 = vld [vmem:[#allocation3 + $0x10] sm:$0xff]
    %v1650 = vld [vmem:[#allocation3 + $0x18] sm:$0xff]
    %v1651 = vld [vmem:[#allocation3 + $0x20] sm:$0xff]
    %v1652 = vld [vmem:[#allocation3 + $0x28] sm:$0xff]
    %v1653 = vld [vmem:[#allocation3 + $0x30] sm:$0xff]
    %v1654 = vld [vmem:[#allocation3 + $0x38] sm:$0xff]
    %v1655 = vld [vmem:[#allocation3 + $0x40] sm:$0xff]
    %v1656 = vld [vmem:[#allocation3 + $0x48] sm:$0xff]
    %v1657 = vld [vmem:[#allocation3 + $0x50] sm:$0xff]
    %v1658 = vld [vmem:[#allocation3 + $0x58] sm:$0xff]
    %v1659 = vld [vmem:[#allocation3 + $0x60] sm:$0xff]
    %v1660 = vld [vmem:[#allocation3 + $0x68] sm:$0xff]
    %v1661 = vld [vmem:[#allocation3 + $0x70] sm:$0xff]
    %v1662 = vld [vmem:[#allocation3 + $0x78] sm:$0xff]
    %v1663 = vld [vmem:[#allocation3 + $0x80] sm:$0xff]
    %v1664 = vld [vmem:[#allocation3 + $0x88] sm:$0xff]
    %v1665 = vld [vmem:[#allocation3 + $0x90] sm:$0xff]
    %v1666 = vld [vmem:[#allocation3 + $0x98] sm:$0xff]
    %v1667 = vld [vmem:[#allocation3 + $0xa0] sm:$0xff]
    %v1668 = vld [vmem:[#allocation3 + $0xa8] sm:$0xff]
    %v1669 = vld [vmem:[#allocation3 + $0xb0] sm:$0xff]
    %v1670 = vld [vmem:[#allocation3 + $0xb8] sm:$0xff]
    %v1671 = vld [vmem:[#allocation3 + $0xc0] sm:$0xff]
    %v1672 = vld [vmem:[#allocation3 + $0xc8] sm:$0xff]
    %v1673 = vld [vmem:[#allocation3 + $0xd0] sm:$0xff]
    %v1674 = vld [vmem:[#allocation3 + $0xd8] sm:$0xff]
    %v1675 = vld [vmem:[#allocation3 + $0xe0] sm:$0xff]
    %v1676 = vld [vmem:[#allocation3 + $0xe8] sm:$0xff]
    %v1677 = vld [vmem:[#allocation3 + $0xf0] sm:$0xff]
    %v1678 = vld [vmem:[#allocation3 + $0xf8] sm:$0xff]
    %v1679 = vld [vmem:[#allocation3 + $0x100] sm:$0xff]
    %v1680 = vld [vmem:[#allocation3 + $0x108] sm:$0xff]
    %v1681 = vld [vmem:[#allocation3 + $0x110] sm:$0xff]
    %v1682 = vld [vmem:[#allocation3 + $0x118] sm:$0xff]
    %v1683 = vld [vmem:[#allocation3 + $0x120] sm:$0xff]
    %v1684 = vld [vmem:[#allocation3 + $0x128] sm:$0xff]
    %v1685 = vld [vmem:[#allocation3 + $0x130] sm:$0xff]
    %v1686 = vld [vmem:[#allocation3 + $0x138] sm:$0xff]
    %v1687 = vld [vmem:[#allocation3 + $0x140] sm:$0xff]
    %v1688 = vld [vmem:[#allocation3 + $0x148] sm:$0xff]
    %v1689 = vld [vmem:[#allocation3 + $0x150] sm:$0xff]
    %v1690 = vld [vmem:[#allocation3 + $0x158] sm:$0xff]
    %v1691 = vld [vmem:[#allocation3 + $0x160] sm:$0xff]
    %v1692 = vld [vmem:[#allocation3 + $0x168] sm:$0xff]
    %v1693 = vld [vmem:[#allocation3 + $0x170] sm:$0xff]
    %v1694 = vld [vmem:[#allocation3 + $0x178] sm:$0xff]
    %v1695 = vld [vmem:[#allocation3 + $0x180] sm:$0xff]
    %v1696 = vld [vmem:[#allocation3 + $0x188] sm:$0xff]
    %v1697 = vld [vmem:[#allocation3 + $0x190] sm:$0xff]
    %v1698 = vld [vmem:[#allocation3 + $0x198] sm:$0xff]
    %v1699 = vld [vmem:[#allocation3 + $0x1a0] sm:$0xff]
    %v1700 = vld [vmem:[#allocation3 + $0x1a8] sm:$0xff]
    %v1701 = vld [vmem:[#allocation3 + $0x1b0] sm:$0xff]
    %v1702 = vld [vmem:[#allocation3 + $0x1b8] sm:$0xff]
    %v1703 = vld [vmem:[#allocation3 + $0x1c0] sm:$0xff]
    %v1704 = vld [vmem:[#allocation3 + $0x1c8] sm:$0xff]
    %v1705 = vld [vmem:[#allocation3 + $0x1d0] sm:$0xff]
    %v1706 = vld [vmem:[#allocation3 + $0x1d8] sm:$0xff]
    %v1707 = vld [vmem:[#allocation3 + $0x1e0] sm:$0xff]
    %v1708 = vld [vmem:[#allocation3 + $0x1e8] sm:$0xff]
    %v1709 = vld [vmem:[#allocation3 + $0x1f0] sm:$0xff]
    %v1710 = vld [vmem:[#allocation3 + $0x1f8] sm:$0xff]
    %v1711 = vld [vmem:[#allocation3 + $0x200] sm:$0xff]
    %v1712 = vld [vmem:[#allocation3 + $0x208] sm:$0xff]
    %v1713 = vld [vmem:[#allocation3 + $0x210] sm:$0xff]
    %v1714 = vld [vmem:[#allocation3 + $0x218] sm:$0xff]
    %v1715 = vld [vmem:[#allocation3 + $0x220] sm:$0xff]
    %v1716 = vld [vmem:[#allocation3 + $0x228] sm:$0xff]
    %v1717 = vld [vmem:[#allocation3 + $0x230] sm:$0xff]
    %v1718 = vld [vmem:[#allocation3 + $0x238] sm:$0xff]
    %v1719 = vld [vmem:[#allocation3 + $0x240] sm:$0xff]
    %v1720 = vld [vmem:[#allocation3 + $0x248] sm:$0xff]
    %v1721 = vld [vmem:[#allocation3 + $0x250] sm:$0xff]
    %v1722 = vld [vmem:[#allocation3 + $0x258] sm:$0xff]
    %v1723 = vld [vmem:[#allocation3 + $0x260] sm:$0xff]
    %v1724 = vld [vmem:[#allocation3 + $0x268] sm:$0xff]
    %v1725 = vld [vmem:[#allocation3 + $0x270] sm:$0xff]
    %v1726 = vld [vmem:[#allocation3 + $0x278] sm:$0xff]
    %v1727 = vld [vmem:[#allocation3 + $0x280] sm:$0xff]
    %v1728 = vld [vmem:[#allocation3 + $0x288] sm:$0xff]
    %v1729 = vld [vmem:[#allocation3 + $0x290] sm:$0xff]
    %v1730 = vld [vmem:[#allocation3 + $0x298] sm:$0xff]
    %v1731 = vld [vmem:[#allocation3 + $0x2a0] sm:$0xff]
    %v1732 = vld [vmem:[#allocation3 + $0x2a8] sm:$0xff]
    %v1733 = vld [vmem:[#allocation3 + $0x2b0] sm:$0xff]
    %v1734 = vld [vmem:[#allocation3 + $0x2b8] sm:$0xff]
    %v1735 = vld [vmem:[#allocation3 + $0x2c0] sm:$0xff]
    %v1736 = vld [vmem:[#allocation3 + $0x2c8] sm:$0xff]
    %v1737 = vld [vmem:[#allocation3 + $0x2d0] sm:$0xff]
    %v1738 = vld [vmem:[#allocation3 + $0x2d8] sm:$0xff]
    %v1739 = vld [vmem:[#allocation3 + $0x2e0] sm:$0xff]
    %v1740 = vld [vmem:[#allocation3 + $0x2e8] sm:$0xff]
    %v1741 = vld [vmem:[#allocation3 + $0x2f0] sm:$0xff]
    %v1742 = vld [vmem:[#allocation3 + $0x2f8] sm:$0xff]
    %v1743 = vld [vmem:[#allocation3 + $0x300] sm:$0xff]
    %v1744 = vld [vmem:[#allocation3 + $0x308] sm:$0xff]
    %v1745 = vld [vmem:[#allocation3 + $0x310] sm:$0xff]
    %v1746 = vld [vmem:[#allocation3 + $0x318] sm:$0xff]
    %v1747 = vld [vmem:[#allocation3 + $0x320] sm:$0xff]
    %v1748 = vld [vmem:[#allocation3 + $0x328] sm:$0xff]
    %v1749 = vld [vmem:[#allocation3 + $0x330] sm:$0xff]
    %v1750 = vld [vmem:[#allocation3 + $0x338] sm:$0xff]
    %v1751 = vld [vmem:[#allocation3 + $0x340] sm:$0xff]
    %v1752 = vld [vmem:[#allocation3 + $0x348] sm:$0xff]
    %v1753 = vld [vmem:[#allocation3 + $0x350] sm:$0xff]
    %v1754 = vld [vmem:[#allocation3 + $0x358] sm:$0xff]
    %v1755 = vld [vmem:[#allocation3 + $0x360] sm:$0xff]
    %v1756 = vld [vmem:[#allocation3 + $0x368] sm:$0xff]
    %v1757 = vld [vmem:[#allocation3 + $0x370] sm:$0xff]
    %v1758 = vld [vmem:[#allocation3 + $0x378] sm:$0xff]
    %v1759 = vld [vmem:[#allocation3 + $0x380] sm:$0xff]
    %v1760 = vld [vmem:[#allocation3 + $0x388] sm:$0xff]
    %v1761 = vld [vmem:[#allocation3 + $0x390] sm:$0xff]
    %v1762 = vld [vmem:[#allocation3 + $0x398] sm:$0xff]
    %v1763 = vld [vmem:[#allocation3 + $0x3a0] sm:$0xff]
    %v1764 = vld [vmem:[#allocation3 + $0x3a8] sm:$0xff]
    %v1765 = vld [vmem:[#allocation3 + $0x3b0] sm:$0xff]
    %v1766 = vld [vmem:[#allocation3 + $0x3b8] sm:$0xff]
    %v1767 = vld [vmem:[#allocation3 + $0x3c0] sm:$0xff]
    %v1768 = vld [vmem:[#allocation3 + $0x3c8] sm:$0xff]
    %v1769 = vld [vmem:[#allocation3 + $0x3d0] sm:$0xff]
    %v1770 = vld [vmem:[#allocation3 + $0x3d8] sm:$0xff]
    %v1771 = vld [vmem:[#allocation3 + $0x3e0] sm:$0xff]
    %v1772 = vld [vmem:[#allocation3 + $0x3e8] sm:$0xff]
    %v1773 = vld [vmem:[#allocation3 + $0x3f0] sm:$0xff]
    %v1774 = vld [vmem:[#allocation3 + $0x3f8] sm:$0xff]
    %v1903 = vunpack.c.l.b16 %v1647
    %v1904 = vunpack.c.h.b16 %v1647
    %v1905 = vunpack.c.l.b16 %v1648
    %v1906 = vunpack.c.h.b16 %v1648
    %v1907 = vunpack.c.l.b16 %v1649
    %v1908 = vunpack.c.h.b16 %v1649
    %v1909 = vunpack.c.l.b16 %v1650
    %v1910 = vunpack.c.h.b16 %v1650
    %v1911 = vunpack.c.l.b16 %v1651
    %v1912 = vunpack.c.h.b16 %v1651
    %v1913 = vunpack.c.l.b16 %v1652
    %v1914 = vunpack.c.h.b16 %v1652
    %v1915 = vunpack.c.l.b16 %v1653
    %v1916 = vunpack.c.h.b16 %v1653
    %v1917 = vunpack.c.l.b16 %v1654
    %v1918 = vunpack.c.h.b16 %v1654
    %v1919 = vunpack.c.l.b16 %v1655
    %v1920 = vunpack.c.h.b16 %v1655
    %v1921 = vunpack.c.l.b16 %v1656
    %v1922 = vunpack.c.h.b16 %v1656
    %v1923 = vunpack.c.l.b16 %v1657
    %v1924 = vunpack.c.h.b16 %v1657
    %v1925 = vunpack.c.l.b16 %v1658
    %v1926 = vunpack.c.h.b16 %v1658
    %v1927 = vunpack.c.l.b16 %v1659
    %v1928 = vunpack.c.h.b16 %v1659
    %v1929 = vunpack.c.l.b16 %v1660
    %v1930 = vunpack.c.h.b16 %v1660
    %v1931 = vunpack.c.l.b16 %v1661
    %v1932 = vunpack.c.h.b16 %v1661
    %v1933 = vunpack.c.l.b16 %v1662
    %v1934 = vunpack.c.h.b16 %v1662
    %v1935 = vunpack.c.l.b16 %v1663
    %v1936 = vunpack.c.h.b16 %v1663
    %v1937 = vunpack.c.l.b16 %v1664
    %v1938 = vunpack.c.h.b16 %v1664
    %v1939 = vunpack.c.l.b16 %v1665
    %v1940 = vunpack.c.h.b16 %v1665
    %v1941 = vunpack.c.l.b16 %v1666
    %v1942 = vunpack.c.h.b16 %v1666
    %v1943 = vunpack.c.l.b16 %v1667
    %v1944 = vunpack.c.h.b16 %v1667
    %v1945 = vunpack.c.l.b16 %v1668
    %v1946 = vunpack.c.h.b16 %v1668
    %v1947 = vunpack.c.l.b16 %v1669
    %v1948 = vunpack.c.h.b16 %v1669
    %v1949 = vunpack.c.l.b16 %v1670
    %v1950 = vunpack.c.h.b16 %v1670
    %v1951 = vunpack.c.l.b16 %v1671
    %v1952 = vunpack.c.h.b16 %v1671
    %v1953 = vunpack.c.l.b16 %v1672
    %v1954 = vunpack.c.h.b16 %v1672
    %v1955 = vunpack.c.l.b16 %v1673
    %v1956 = vunpack.c.h.b16 %v1673
    %v1957 = vunpack.c.l.b16 %v1674
    %v1958 = vunpack.c.h.b16 %v1674
    %v1959 = vunpack.c.l.b16 %v1675
    %v1960 = vunpack.c.h.b16 %v1675
    %v1961 = vunpack.c.l.b16 %v1676
    %v1962 = vunpack.c.h.b16 %v1676
    %v1963 = vunpack.c.l.b16 %v1677
    %v1964 = vunpack.c.h.b16 %v1677
    %v1965 = vunpack.c.l.b16 %v1678
    %v1966 = vunpack.c.h.b16 %v1678
    %v1967 = vunpack.c.l.b16 %v1679
    %v1968 = vunpack.c.h.b16 %v1679
    %v1969 = vunpack.c.l.b16 %v1680
    %v1970 = vunpack.c.h.b16 %v1680
    %v1971 = vunpack.c.l.b16 %v1681
    %v1972 = vunpack.c.h.b16 %v1681
    %v1973 = vunpack.c.l.b16 %v1682
    %v1974 = vunpack.c.h.b16 %v1682
    %v1975 = vunpack.c.l.b16 %v1683
    %v1976 = vunpack.c.h.b16 %v1683
    %v1977 = vunpack.c.l.b16 %v1684
    %v1978 = vunpack.c.h.b16 %v1684
    %v1979 = vunpack.c.l.b16 %v1685
    %v1980 = vunpack.c.h.b16 %v1685
    %v1981 = vunpack.c.l.b16 %v1686
    %v1982 = vunpack.c.h.b16 %v1686
    %v1983 = vunpack.c.l.b16 %v1687
    %v1984 = vunpack.c.h.b16 %v1687
    %v1985 = vunpack.c.l.b16 %v1688
    %v1986 = vunpack.c.h.b16 %v1688
    %v1987 = vunpack.c.l.b16 %v1689
    %v1988 = vunpack.c.h.b16 %v1689
    %v1989 = vunpack.c.l.b16 %v1690
    %v1990 = vunpack.c.h.b16 %v1690
    %v1991 = vunpack.c.l.b16 %v1691
    %v1992 = vunpack.c.h.b16 %v1691
    %v1993 = vunpack.c.l.b16 %v1692
    %v1994 = vunpack.c.h.b16 %v1692
    %v1995 = vunpack.c.l.b16 %v1693
    %v1996 = vunpack.c.h.b16 %v1693
    %v1997 = vunpack.c.l.b16 %v1694
    %v1998 = vunpack.c.h.b16 %v1694
    %v1999 = vunpack.c.l.b16 %v1695
    %v2000 = vunpack.c.h.b16 %v1695
    %v2001 = vunpack.c.l.b16 %v1696
    %v2002 = vunpack.c.h.b16 %v1696
    %v2003 = vunpack.c.l.b16 %v1697
    %v2004 = vunpack.c.h.b16 %v1697
    %v2005 = vunpack.c.l.b16 %v1698
    %v2006 = vunpack.c.h.b16 %v1698
    %v2007 = vunpack.c.l.b16 %v1699
    %v2008 = vunpack.c.h.b16 %v1699
    %v2009 = vunpack.c.l.b16 %v1700
    %v2010 = vunpack.c.h.b16 %v1700
    %v2011 = vunpack.c.l.b16 %v1701
    %v2012 = vunpack.c.h.b16 %v1701
    %v2013 = vunpack.c.l.b16 %v1702
    %v2014 = vunpack.c.h.b16 %v1702
    %v2015 = vunpack.c.l.b16 %v1703
    %v2016 = vunpack.c.h.b16 %v1703
    %v2017 = vunpack.c.l.b16 %v1704
    %v2018 = vunpack.c.h.b16 %v1704
    %v2019 = vunpack.c.l.b16 %v1705
    %v2020 = vunpack.c.h.b16 %v1705
    %v2021 = vunpack.c.l.b16 %v1706
    %v2022 = vunpack.c.h.b16 %v1706
    %v2023 = vunpack.c.l.b16 %v1707
    %v2024 = vunpack.c.h.b16 %v1707
    %v2025 = vunpack.c.l.b16 %v1708
    %v2026 = vunpack.c.h.b16 %v1708
    %v2027 = vunpack.c.l.b16 %v1709
    %v2028 = vunpack.c.h.b16 %v1709
    %v2029 = vunpack.c.l.b16 %v1710
    %v2030 = vunpack.c.h.b16 %v1710
    %v2031 = vunpack.c.l.b16 %v1711
    %v2032 = vunpack.c.h.b16 %v1711
    %v2033 = vunpack.c.l.b16 %v1712
    %v2034 = vunpack.c.h.b16 %v1712
    %v2035 = vunpack.c.l.b16 %v1713
    %v2036 = vunpack.c.h.b16 %v1713
    %v2037 = vunpack.c.l.b16 %v1714
    %v2038 = vunpack.c.h.b16 %v1714
    %v2039 = vunpack.c.l.b16 %v1715
    %v2040 = vunpack.c.h.b16 %v1715
    %v2041 = vunpack.c.l.b16 %v1716
    %v2042 = vunpack.c.h.b16 %v1716
    %v2043 = vunpack.c.l.b16 %v1717
    %v2044 = vunpack.c.h.b16 %v1717
    %v2045 = vunpack.c.l.b16 %v1718
    %v2046 = vunpack.c.h.b16 %v1718
    %v2047 = vunpack.c.l.b16 %v1719
    %v2048 = vunpack.c.h.b16 %v1719
    %v2049 = vunpack.c.l.b16 %v1720
    %v2050 = vunpack.c.h.b16 %v1720
    %v2051 = vunpack.c.l.b16 %v1721
    %v2052 = vunpack.c.h.b16 %v1721
    %v2053 = vunpack.c.l.b16 %v1722
    %v2054 = vunpack.c.h.b16 %v1722
    %v2055 = vunpack.c.l.b16 %v1723
    %v2056 = vunpack.c.h.b16 %v1723
    %v2057 = vunpack.c.l.b16 %v1724
    %v2058 = vunpack.c.h.b16 %v1724
    %v2059 = vunpack.c.l.b16 %v1725
    %v2060 = vunpack.c.h.b16 %v1725
    %v2061 = vunpack.c.l.b16 %v1726
    %v2062 = vunpack.c.h.b16 %v1726
    %v2063 = vunpack.c.l.b16 %v1727
    %v2064 = vunpack.c.h.b16 %v1727
    %v2065 = vunpack.c.l.b16 %v1728
    %v2066 = vunpack.c.h.b16 %v1728
    %v2067 = vunpack.c.l.b16 %v1729
    %v2068 = vunpack.c.h.b16 %v1729
    %v2069 = vunpack.c.l.b16 %v1730
    %v2070 = vunpack.c.h.b16 %v1730
    %v2071 = vunpack.c.l.b16 %v1731
    %v2072 = vunpack.c.h.b16 %v1731
    %v2073 = vunpack.c.l.b16 %v1732
    %v2074 = vunpack.c.h.b16 %v1732
    %v2075 = vunpack.c.l.b16 %v1733
    %v2076 = vunpack.c.h.b16 %v1733
    %v2077 = vunpack.c.l.b16 %v1734
    %v2078 = vunpack.c.h.b16 %v1734
    %v2079 = vunpack.c.l.b16 %v1735
    %v2080 = vunpack.c.h.b16 %v1735
    %v2081 = vunpack.c.l.b16 %v1736
    %v2082 = vunpack.c.h.b16 %v1736
    %v2083 = vunpack.c.l.b16 %v1737
    %v2084 = vunpack.c.h.b16 %v1737
    %v2085 = vunpack.c.l.b16 %v1738
    %v2086 = vunpack.c.h.b16 %v1738
    %v2087 = vunpack.c.l.b16 %v1739
    %v2088 = vunpack.c.h.b16 %v1739
    %v2089 = vunpack.c.l.b16 %v1740
    %v2090 = vunpack.c.h.b16 %v1740
    %v2091 = vunpack.c.l.b16 %v1741
    %v2092 = vunpack.c.h.b16 %v1741
    %v2093 = vunpack.c.l.b16 %v1742
    %v2094 = vunpack.c.h.b16 %v1742
    %v2095 = vunpack.c.l.b16 %v1743
    %v2096 = vunpack.c.h.b16 %v1743
    %v2097 = vunpack.c.l.b16 %v1744
    %v2098 = vunpack.c.h.b16 %v1744
    %v2099 = vunpack.c.l.b16 %v1745
    %v2100 = vunpack.c.h.b16 %v1745
    %v2101 = vunpack.c.l.b16 %v1746
    %v2102 = vunpack.c.h.b16 %v1746
    %v2103 = vunpack.c.l.b16 %v1747
    %v2104 = vunpack.c.h.b16 %v1747
    %v2105 = vunpack.c.l.b16 %v1748
    %v2106 = vunpack.c.h.b16 %v1748
    %v2107 = vunpack.c.l.b16 %v1749
    %v2108 = vunpack.c.h.b16 %v1749
    %v2109 = vunpack.c.l.b16 %v1750
    %v2110 = vunpack.c.h.b16 %v1750
    %v2111 = vunpack.c.l.b16 %v1751
    %v2112 = vunpack.c.h.b16 %v1751
    %v2113 = vunpack.c.l.b16 %v1752
    %v2114 = vunpack.c.h.b16 %v1752
    %v2115 = vunpack.c.l.b16 %v1753
    %v2116 = vunpack.c.h.b16 %v1753
    %v2117 = vunpack.c.l.b16 %v1754
    %v2118 = vunpack.c.h.b16 %v1754
    %v2119 = vunpack.c.l.b16 %v1755
    %v2120 = vunpack.c.h.b16 %v1755
    %v2121 = vunpack.c.l.b16 %v1756
    %v2122 = vunpack.c.h.b16 %v1756
    %v2123 = vunpack.c.l.b16 %v1757
    %v2124 = vunpack.c.h.b16 %v1757
    %v2125 = vunpack.c.l.b16 %v1758
    %v2126 = vunpack.c.h.b16 %v1758
    %v2127 = vunpack.c.l.b16 %v1759
    %v2128 = vunpack.c.h.b16 %v1759
    %v2129 = vunpack.c.l.b16 %v1760
    %v2130 = vunpack.c.h.b16 %v1760
    %v2131 = vunpack.c.l.b16 %v1761
    %v2132 = vunpack.c.h.b16 %v1761
    %v2133 = vunpack.c.l.b16 %v1762
    %v2134 = vunpack.c.h.b16 %v1762
    %v2135 = vunpack.c.l.b16 %v1763
    %v2136 = vunpack.c.h.b16 %v1763
    %v2137 = vunpack.c.l.b16 %v1764
    %v2138 = vunpack.c.h.b16 %v1764
    %v2139 = vunpack.c.l.b16 %v1765
    %v2140 = vunpack.c.h.b16 %v1765
    %v2141 = vunpack.c.l.b16 %v1766
    %v2142 = vunpack.c.h.b16 %v1766
    %v2143 = vunpack.c.l.b16 %v1767
    %v2144 = vunpack.c.h.b16 %v1767
    %v2145 = vunpack.c.l.b16 %v1768
    %v2146 = vunpack.c.h.b16 %v1768
    %v2147 = vunpack.c.l.b16 %v1769
    %v2148 = vunpack.c.h.b16 %v1769
    %v2149 = vunpack.c.l.b16 %v1770
    %v2150 = vunpack.c.h.b16 %v1770
    %v2151 = vunpack.c.l.b16 %v1771
    %v2152 = vunpack.c.h.b16 %v1771
    %v2153 = vunpack.c.l.b16 %v1772
    %v2154 = vunpack.c.h.b16 %v1772
    %v2155 = vunpack.c.l.b16 %v1773
    %v2156 = vunpack.c.h.b16 %v1773
    %v2157 = vunpack.c.l.b16 %v1774
    %v2158 = vunpack.c.h.b16 %v1774
    %v2159 = vpack.c.b16 %v1907, %v1903
    %v2160 = vpack.c.b16 %v1908, %v1904
    %v2161 = vpack.c.b16 %v1909, %v1905
    %v2162 = vpack.c.b16 %v1910, %v1906
    %v2163 = vpack.c.b16 %v1915, %v1911
    %v2164 = vpack.c.b16 %v1916, %v1912
    %v2165 = vpack.c.b16 %v1917, %v1913
    %v2166 = vpack.c.b16 %v1918, %v1914
    %v2167 = vpack.c.b16 %v1923, %v1919
    %v2168 = vpack.c.b16 %v1924, %v1920
    %v2169 = vpack.c.b16 %v1925, %v1921
    %v2170 = vpack.c.b16 %v1926, %v1922
    %v2171 = vpack.c.b16 %v1931, %v1927
    %v2172 = vpack.c.b16 %v1932, %v1928
    %v2173 = vpack.c.b16 %v1933, %v1929
    %v2174 = vpack.c.b16 %v1934, %v1930
    %v2175 = vpack.c.b16 %v1939, %v1935
    %v2176 = vpack.c.b16 %v1940, %v1936
    %v2177 = vpack.c.b16 %v1941, %v1937
    %v2178 = vpack.c.b16 %v1942, %v1938
    %v2179 = vpack.c.b16 %v1947, %v1943
    %v2180 = vpack.c.b16 %v1948, %v1944
    %v2181 = vpack.c.b16 %v1949, %v1945
    %v2182 = vpack.c.b16 %v1950, %v1946
    %v2183 = vpack.c.b16 %v1955, %v1951
    %v2184 = vpack.c.b16 %v1956, %v1952
    %v2185 = vpack.c.b16 %v1957, %v1953
    %v2186 = vpack.c.b16 %v1958, %v1954
    %v2187 = vpack.c.b16 %v1963, %v1959
    %v2188 = vpack.c.b16 %v1964, %v1960
    %v2189 = vpack.c.b16 %v1965, %v1961
    %v2190 = vpack.c.b16 %v1966, %v1962
    %v2191 = vpack.c.b16 %v1971, %v1967
    %v2192 = vpack.c.b16 %v1972, %v1968
    %v2193 = vpack.c.b16 %v1973, %v1969
    %v2194 = vpack.c.b16 %v1974, %v1970
    %v2195 = vpack.c.b16 %v1979, %v1975
    %v2196 = vpack.c.b16 %v1980, %v1976
    %v2197 = vpack.c.b16 %v1981, %v1977
    %v2198 = vpack.c.b16 %v1982, %v1978
    %v2199 = vpack.c.b16 %v1987, %v1983
    %v2200 = vpack.c.b16 %v1988, %v1984
    %v2201 = vpack.c.b16 %v1989, %v1985
    %v2202 = vpack.c.b16 %v1990, %v1986
    %v2203 = vpack.c.b16 %v1995, %v1991
    %v2204 = vpack.c.b16 %v1996, %v1992
    %v2205 = vpack.c.b16 %v1997, %v1993
    %v2206 = vpack.c.b16 %v1998, %v1994
    %v2207 = vpack.c.b16 %v2003, %v1999
    %v2208 = vpack.c.b16 %v2004, %v2000
    %v2209 = vpack.c.b16 %v2005, %v2001
    %v2210 = vpack.c.b16 %v2006, %v2002
    %v2211 = vpack.c.b16 %v2011, %v2007
    %v2212 = vpack.c.b16 %v2012, %v2008
    %v2213 = vpack.c.b16 %v2013, %v2009
    %v2214 = vpack.c.b16 %v2014, %v2010
    %v2215 = vpack.c.b16 %v2019, %v2015
    %v2216 = vpack.c.b16 %v2020, %v2016
    %v2217 = vpack.c.b16 %v2021, %v2017
    %v2218 = vpack.c.b16 %v2022, %v2018
    %v2219 = vpack.c.b16 %v2027, %v2023
    %v2220 = vpack.c.b16 %v2028, %v2024
    %v2221 = vpack.c.b16 %v2029, %v2025
    %v2222 = vpack.c.b16 %v2030, %v2026
    %v2223 = vpack.c.b16 %v2035, %v2031
    %v2224 = vpack.c.b16 %v2036, %v2032
    %v2225 = vpack.c.b16 %v2037, %v2033
    %v2226 = vpack.c.b16 %v2038, %v2034
    %v2227 = vpack.c.b16 %v2043, %v2039
    %v2228 = vpack.c.b16 %v2044, %v2040
    %v2229 = vpack.c.b16 %v2045, %v2041
    %v2230 = vpack.c.b16 %v2046, %v2042
    %v2231 = vpack.c.b16 %v2051, %v2047
    %v2232 = vpack.c.b16 %v2052, %v2048
    %v2233 = vpack.c.b16 %v2053, %v2049
    %v2234 = vpack.c.b16 %v2054, %v2050
    %v2235 = vpack.c.b16 %v2059, %v2055
    %v2236 = vpack.c.b16 %v2060, %v2056
    %v2237 = vpack.c.b16 %v2061, %v2057
    %v2238 = vpack.c.b16 %v2062, %v2058
    %v2239 = vpack.c.b16 %v2067, %v2063
    %v2240 = vpack.c.b16 %v2068, %v2064
    %v2241 = vpack.c.b16 %v2069, %v2065
    %v2242 = vpack.c.b16 %v2070, %v2066
    %v2243 = vpack.c.b16 %v2075, %v2071
    %v2244 = vpack.c.b16 %v2076, %v2072
    %v2245 = vpack.c.b16 %v2077, %v2073
    %v2246 = vpack.c.b16 %v2078, %v2074
    %v2247 = vpack.c.b16 %v2083, %v2079
    %v2248 = vpack.c.b16 %v2084, %v2080
    %v2249 = vpack.c.b16 %v2085, %v2081
    %v2250 = vpack.c.b16 %v2086, %v2082
    %v2251 = vpack.c.b16 %v2091, %v2087
    %v2252 = vpack.c.b16 %v2092, %v2088
    %v2253 = vpack.c.b16 %v2093, %v2089
    %v2254 = vpack.c.b16 %v2094, %v2090
    %v2255 = vpack.c.b16 %v2099, %v2095
    %v2256 = vpack.c.b16 %v2100, %v2096
    %v2257 = vpack.c.b16 %v2101, %v2097
    %v2258 = vpack.c.b16 %v2102, %v2098
    %v2259 = vpack.c.b16 %v2107, %v2103
    %v2260 = vpack.c.b16 %v2108, %v2104
    %v2261 = vpack.c.b16 %v2109, %v2105
    %v2262 = vpack.c.b16 %v2110, %v2106
    %v2263 = vpack.c.b16 %v2115, %v2111
    %v2264 = vpack.c.b16 %v2116, %v2112
    %v2265 = vpack.c.b16 %v2117, %v2113
    %v2266 = vpack.c.b16 %v2118, %v2114
    %v2267 = vpack.c.b16 %v2123, %v2119
    %v2268 = vpack.c.b16 %v2124, %v2120
    %v2269 = vpack.c.b16 %v2125, %v2121
    %v2270 = vpack.c.b16 %v2126, %v2122
    %v2271 = vpack.c.b16 %v2131, %v2127
    %v2272 = vpack.c.b16 %v2132, %v2128
    %v2273 = vpack.c.b16 %v2133, %v2129
    %v2274 = vpack.c.b16 %v2134, %v2130
    %v2275 = vpack.c.b16 %v2139, %v2135
    %v2276 = vpack.c.b16 %v2140, %v2136
    %v2277 = vpack.c.b16 %v2141, %v2137
    %v2278 = vpack.c.b16 %v2142, %v2138
    %v2279 = vpack.c.b16 %v2147, %v2143
    %v2280 = vpack.c.b16 %v2148, %v2144
    %v2281 = vpack.c.b16 %v2149, %v2145
    %v2282 = vpack.c.b16 %v2150, %v2146
    %v2283 = vpack.c.b16 %v2155, %v2151
    %v2284 = vpack.c.b16 %v2156, %v2152
    %v2285 = vpack.c.b16 %v2157, %v2153
    %v2286 = vpack.c.b16 %v2158, %v2154
    %2415 = vmatprep.subr.bf16.mxu0 %v2188
    %2416 = vmatpush1.bf16.msra.mxu0 %v2187
    %2417 = vmatprep.subr.bf16.mxu0 %v2184
    %2418 = vmatpush1.bf16.msra.mxu0 %v2183
    %2419 = vmatprep.subr.bf16.mxu0 %v2180
    %2420 = vmatpush1.bf16.msra.mxu0 %v2179
    %2421 = vmatprep.subr.bf16.mxu0 %v2176
    %2422 = vmatpush1.bf16.msra.mxu0 %v2175
    %2423 = vmatprep.subr.bf16.mxu0 %v2172
    %2424 = vmatpush1.bf16.msra.mxu0 %v2171
    %2425 = vmatprep.subr.bf16.mxu0 %v2168
    %2426 = vmatpush1.bf16.msra.mxu0 %v2167
    %2427 = vmatprep.subr.bf16.mxu0 %v2164
    %2428 = vmatpush1.bf16.msra.mxu0 %v2163
    %2429 = vmatprep.subr.bf16.mxu0 %v2160
    %2430 = vmatpush1.bf16.msra.mxu0 %v2159
    %2431 = vmatprep.subr.bf16.mxu0 %v2220
    %2432 = vmatpush2.bf16.msra.mxu0 %v2219
    %2433 = vmatprep.subr.bf16.mxu0 %v2216
    %2434 = vmatpush2.bf16.msra.mxu0 %v2215
    %2435 = vmatprep.subr.bf16.mxu0 %v2212
    %2436 = vmatpush2.bf16.msra.mxu0 %v2211
    %2437 = vmatprep.subr.bf16.mxu0 %v2208
    %2438 = vmatpush2.bf16.msra.mxu0 %v2207
    %2439 = vmatprep.subr.bf16.mxu0 %v2204
    %2440 = vmatpush2.bf16.msra.mxu0 %v2203
    %2441 = vmatprep.subr.bf16.mxu0 %v2200
    %2442 = vmatpush2.bf16.msra.mxu0 %v2199
    %2443 = vmatprep.subr.bf16.mxu0 %v2196
    %2444 = vmatpush2.bf16.msra.mxu0 %v2195
    %2445 = vmatprep.subr.bf16.mxu0 %v2192
    %2446 = vmatpush2.bf16.msra.mxu0 %v2191
    %2447 = vmatprep.mubr.bf16.mxu0 %v1642
    %2448 = vmatmul.mubr.bf16.gmra.mxu0 %v1641
    %v2449 = vpop.f32.mrf.mxu0
    %v2450 = vadd.f32 0.0, %v2449
    %v2451 = vpop.f32.mrf.mxu0
    %v2452 = vadd.f32 0.0, %v2451
    %v2453 = vpop.f32.mrf.mxu0
    %v2454 = vpop.f32.mrf.mxu0
    %2455 = vdwg.mxu0
    %2456 = vmatprep.subr.bf16.mxu0 %v2252
    %2457 = vmatpush1.bf16.msra.mxu0 %v2251
    %2458 = vmatprep.subr.bf16.mxu0 %v2248
    %2459 = vmatpush1.bf16.msra.mxu0 %v2247
    %2460 = vmatprep.subr.bf16.mxu0 %v2244
    %2461 = vmatpush1.bf16.msra.mxu0 %v2243
    %2462 = vmatprep.subr.bf16.mxu0 %v2240
    %2463 = vmatpush1.bf16.msra.mxu0 %v2239
    %2464 = vmatprep.subr.bf16.mxu0 %v2236
    %2465 = vmatpush1.bf16.msra.mxu0 %v2235
    %2466 = vmatprep.subr.bf16.mxu0 %v2232
    %2467 = vmatpush1.bf16.msra.mxu0 %v2231
    %2468 = vmatprep.subr.bf16.mxu0 %v2228
    %2469 = vmatpush1.bf16.msra.mxu0 %v2227
    %2470 = vmatprep.subr.bf16.mxu0 %v2224
    %2471 = vmatpush1.bf16.msra.mxu0 %v2223
    %2472 = vmatprep.subr.bf16.mxu0 %v2284
    %2473 = vmatpush2.bf16.msra.mxu0 %v2283
    %2474 = vmatprep.subr.bf16.mxu0 %v2280
    %2475 = vmatpush2.bf16.msra.mxu0 %v2279
    %2476 = vmatprep.subr.bf16.mxu0 %v2276
    %2477 = vmatpush2.bf16.msra.mxu0 %v2275
    %2478 = vmatprep.subr.bf16.mxu0 %v2272
    %2479 = vmatpush2.bf16.msra.mxu0 %v2271
    %2480 = vmatprep.subr.bf16.mxu0 %v2268
    %2481 = vmatpush2.bf16.msra.mxu0 %v2267
    %2482 = vmatprep.subr.bf16.mxu0 %v2264
    %2483 = vmatpush2.bf16.msra.mxu0 %v2263
    %2484 = vmatprep.subr.bf16.mxu0 %v2260
    %2485 = vmatpush2.bf16.msra.mxu0 %v2259
    %2486 = vmatprep.subr.bf16.mxu0 %v2256
    %2487 = vmatpush2.bf16.msra.mxu0 %v2255
    %2488 = vmatprep.mubr.bf16.mxu0 %v1644
    %2489 = vmatmul.mubr.bf16.gmra.mxu0 %v1643
    %v2490 = vpop.f32.mrf.mxu0
    %v2491 = vadd.f32 %v2450, %v2490
    %v2492 = vpop.f32.mrf.mxu0
    %v2493 = vadd.f32 %v2452, %v2492
    %v2494 = vpop.f32.mrf.mxu0
    %v2495 = vpop.f32.mrf.mxu0
    %2496 = vdwg.mxu0
    %2497 = vmatprep.subr.bf16.mxu0 %v2190
    %2498 = vmatpush1.bf16.msra.mxu0 %v2189
    %2499 = vmatprep.subr.bf16.mxu0 %v2186
    %2500 = vmatpush1.bf16.msra.mxu0 %v2185
    %2501 = vmatprep.subr.bf16.mxu0 %v2182
    %2502 = vmatpush1.bf16.msra.mxu0 %v2181
    %2503 = vmatprep.subr.bf16.mxu0 %v2178
    %2504 = vmatpush1.bf16.msra.mxu0 %v2177
    %2505 = vmatprep.subr.bf16.mxu0 %v2174
    %2506 = vmatpush1.bf16.msra.mxu0 %v2173
    %2507 = vmatprep.subr.bf16.mxu0 %v2170
    %2508 = vmatpush1.bf16.msra.mxu0 %v2169
    %2509 = vmatprep.subr.bf16.mxu0 %v2166
    %2510 = vmatpush1.bf16.msra.mxu0 %v2165
    %2511 = vmatprep.subr.bf16.mxu0 %v2162
    %2512 = vmatpush1.bf16.msra.mxu0 %v2161
    %2513 = vmatprep.subr.bf16.mxu0 %v2222
    %2514 = vmatpush2.bf16.msra.mxu0 %v2221
    %2515 = vmatprep.subr.bf16.mxu0 %v2218
    %2516 = vmatpush2.bf16.msra.mxu0 %v2217
    %2517 = vmatprep.subr.bf16.mxu0 %v2214
    %2518 = vmatpush2.bf16.msra.mxu0 %v2213
    %2519 = vmatprep.subr.bf16.mxu0 %v2210
    %2520 = vmatpush2.bf16.msra.mxu0 %v2209
    %2521 = vmatprep.subr.bf16.mxu0 %v2206
    %2522 = vmatpush2.bf16.msra.mxu0 %v2205
    %2523 = vmatprep.subr.bf16.mxu0 %v2202
    %2524 = vmatpush2.bf16.msra.mxu0 %v2201
    %2525 = vmatprep.subr.bf16.mxu0 %v2198
    %2526 = vmatpush2.bf16.msra.mxu0 %v2197
    %2527 = vmatprep.subr.bf16.mxu0 %v2194
    %2528 = vmatpush2.bf16.msra.mxu0 %v2193
    %2529 = vmatprep.mubr.bf16.mxu0 %v1642
    %2530 = vmatmul.mubr.bf16.gmra.mxu0 %v1641
    %v2531 = vpop.f32.mrf.mxu0
    %v2532 = vadd.f32 0.0, %v2531
    %v2533 = vpop.f32.mrf.mxu0
    %v2534 = vadd.f32 0.0, %v2533
    %v2535 = vpop.f32.mrf.mxu0
    %v2536 = vpop.f32.mrf.mxu0
    %2537 = vdwg.mxu0
    %2538 = vmatprep.subr.bf16.mxu0 %v2254
    %2539 = vmatpush1.bf16.msra.mxu0 %v2253
    %2540 = vmatprep.subr.bf16.mxu0 %v2250
    %2541 = vmatpush1.bf16.msra.mxu0 %v2249
    %2542 = vmatprep.subr.bf16.mxu0 %v2246
    %2543 = vmatpush1.bf16.msra.mxu0 %v2245
    %2544 = vmatprep.subr.bf16.mxu0 %v2242
    %2545 = vmatpush1.bf16.msra.mxu0 %v2241
    %2546 = vmatprep.subr.bf16.mxu0 %v2238
    %2547 = vmatpush1.bf16.msra.mxu0 %v2237
    %2548 = vmatprep.subr.bf16.mxu0 %v2234
    %2549 = vmatpush1.bf16.msra.mxu0 %v2233
    %2550 = vmatprep.subr.bf16.mxu0 %v2230
    %2551 = vmatpush1.bf16.msra.mxu0 %v2229
    %2552 = vmatprep.subr.bf16.mxu0 %v2226
    %2553 = vmatpush1.bf16.msra.mxu0 %v2225
    %2554 = vmatprep.subr.bf16.mxu0 %v2286
    %2555 = vmatpush2.bf16.msra.mxu0 %v2285
    %2556 = vmatprep.subr.bf16.mxu0 %v2282
    %2557 = vmatpush2.bf16.msra.mxu0 %v2281
    %2558 = vmatprep.subr.bf16.mxu0 %v2278
    %2559 = vmatpush2.bf16.msra.mxu0 %v2277
    %2560 = vmatprep.subr.bf16.mxu0 %v2274
    %2561 = vmatpush2.bf16.msra.mxu0 %v2273
    %2562 = vmatprep.subr.bf16.mxu0 %v2270
    %2563 = vmatpush2.bf16.msra.mxu0 %v2269
    %2564 = vmatprep.subr.bf16.mxu0 %v2266
    %2565 = vmatpush2.bf16.msra.mxu0 %v2265
    %2566 = vmatprep.subr.bf16.mxu0 %v2262
    %2567 = vmatpush2.bf16.msra.mxu0 %v2261
    %2568 = vmatprep.subr.bf16.mxu0 %v2258
    %2569 = vmatpush2.bf16.msra.mxu0 %v2257
    %2570 = vmatprep.mubr.bf16.mxu0 %v1644
    %2571 = vmatmul.mubr.bf16.gmra.mxu0 %v1643
    %v2572 = vpop.f32.mrf.mxu0
    %v2573 = vadd.f32 %v2532, %v2572
    %v2574 = vpop.f32.mrf.mxu0
    %v2575 = vadd.f32 %v2534, %v2574
    %v2576 = vpop.f32.mrf.mxu0
    %v2577 = vpop.f32.mrf.mxu0
    %2578 = vdwg.mxu0
    %v2579 = vld [vmem:[#allocation13 + $0x10] sm:$0xf]
    %v2580 = vld [vmem:[#allocation13 + $0x14] sm:$0xf]
    %v2581 = vrot.slane %v2491, 4
    %v2582 = vadd.f32 %v2491, %v2581
    %v2583 = vrot.slane %v2582, 2
    %v2584 = vadd.f32 %v2582, %v2583
    %v2585 = vrot.slane %v2584, 1
    %v2586 = vadd.f32 %v2584, %v2585
    %v2587 = vrot.slane %v2493, 4
    %v2588 = vadd.f32 %v2493, %v2587
    %v2589 = vrot.slane %v2588, 2
    %v2590 = vadd.f32 %v2588, %v2589
    %v2591 = vrot.slane %v2590, 1
    %v2592 = vadd.f32 %v2590, %v2591
    %v2593 = vrot.slane %v2573, 4
    %v2594 = vadd.f32 %v2573, %v2593
    %v2595 = vrot.slane %v2594, 2
    %v2596 = vadd.f32 %v2594, %v2595
    %v2597 = vrot.slane %v2596, 1
    %v2598 = vadd.f32 %v2596, %v2597
    %v2599 = vrot.slane %v2575, 4
    %v2600 = vadd.f32 %v2575, %v2599
    %v2601 = vrot.slane %v2600, 2
    %v2602 = vadd.f32 %v2600, %v2601
    %v2603 = vrot.slane %v2602, 1
    %v2604 = vadd.f32 %v2602, %v2603
    %v2605 = vmul.f32 %v2586, 0.125
    %v2606 = vmul.f32 %v2592, 0.125
    %v2607 = vmul.f32 %v2598, 0.125
    %v2608 = vmul.f32 %v2604, 0.125
    %v2609 = vmul.f32 %v2491, %v2491
    %v2610 = vmul.f32 %v2493, %v2493
    %v2611 = vmul.f32 %v2573, %v2573
    %v2612 = vmul.f32 %v2575, %v2575
    %v2613 = vrot.slane %v2609, 4
    %v2614 = vadd.f32 %v2609, %v2613
    %v2615 = vrot.slane %v2614, 2
    %v2616 = vadd.f32 %v2614, %v2615
    %v2617 = vrot.slane %v2616, 1
    %v2618 = vadd.f32 %v2616, %v2617
    %v2619 = vrot.slane %v2610, 4
    %v2620 = vadd.f32 %v2610, %v2619
    %v2621 = vrot.slane %v2620, 2
    %v2622 = vadd.f32 %v2620, %v2621
    %v2623 = vrot.slane %v2622, 1
    %v2624 = vadd.f32 %v2622, %v2623
    %v2625 = vrot.slane %v2611, 4
    %v2626 = vadd.f32 %v2611, %v2625
    %v2627 = vrot.slane %v2626, 2
    %v2628 = vadd.f32 %v2626, %v2627
    %v2629 = vrot.slane %v2628, 1
    %v2630 = vadd.f32 %v2628, %v2629
    %v2631 = vrot.slane %v2612, 4
    %v2632 = vadd.f32 %v2612, %v2631
    %v2633 = vrot.slane %v2632, 2
    %v2634 = vadd.f32 %v2632, %v2633
    %v2635 = vrot.slane %v2634, 1
    %v2636 = vadd.f32 %v2634, %v2635
    %v2637 = vmul.f32 %v2618, 0.125
    %v2638 = vmul.f32 %v2624, 0.125
    %v2639 = vmul.f32 %v2630, 0.125
    %v2640 = vmul.f32 %v2636, 0.125
    %v2641 = vmul.f32 %v2605, %v2605
    %v2642 = vmul.f32 %v2606, %v2606
    %v2643 = vmul.f32 %v2607, %v2607
    %v2644 = vmul.f32 %v2608, %v2608
    %v2645 = vsub.f32 %v2637, %v2641
    %v2646 = vsub.f32 %v2638, %v2642
    %v2647 = vsub.f32 %v2639, %v2643
    %v2648 = vsub.f32 %v2640, %v2644
    %v2649 = vmax.f32 %v2645, 0.0
    %v2650 = vmax.f32 %v2646, 0.0
    %v2651 = vmax.f32 %v2647, 0.0
    %v2652 = vmax.f32 %v2648, 0.0
    %v2653 = vadd.f32 %v2649, 1e-05
    %v2654 = vadd.f32 %v2650, 1e-05
    %v2655 = vadd.f32 %v2651, 1e-05
    %v2656 = vadd.f32 %v2652, 1e-05
    %v2657 = vrsqrt.pop %v2653
    %v2658 = vrsqrt.pop %v2654
    %v2659 = vrsqrt.pop %v2655
    %v2660 = vrsqrt.pop %v2656
    %v2665 = vcombine.low %v2657, %v2658
    %v2666 = vcombine.low %v2659, %v2660
    %v2668 = vunpack.c.l.s4 1966171168
    %v2669 = vunpack.c.0.s8 %v2668
    %v2670 = vlaneseq
    %v2671 = vshrl.u32 %v2670, 7
    %v2672 = vsub.s32 %v2669, %v2671
    %v2673 = vrot.slane %v2665, %v2672
    %v2675 = vunpack.c.l.s4 1966171168
    %v2676 = vunpack.c.0.s8 %v2675
    %v2677 = vlaneseq
    %v2678 = vshrl.u32 %v2677, 7
    %v2679 = vsub.s32 %v2676, %v2678
    %v2680 = vrot.slane %v2666, %v2679
    %v2681 = vcombine.low %v2673, %v2680
    %v2683 = vunpack.c.l.s4 1966171168
    %v2684 = vunpack.c.0.s8 %v2683
    %v2685 = vlaneseq
    %v2686 = vshrl.u32 %v2685, 7
    %v2687 = vsub.s32 %v2684, %v2686
    %v2688 = vrot.slane %v2681, %v2687
    %v2690 = vmul.f32 %v2579, %v2688
    %v2692 = vlaneseq
    %v2693 = vshrl.u32 %v2692, 7
    %v2694 = vsub.s32 0, %v2693
    %v2695 = vrot.slane %v2690, %v2694
    %v2696 = vlaneseq
    %v2697 = vshrl.u32 %v2696, 7
    %v2698 = vsub.s32 1, %v2697
    %v2699 = vrot.slane %v2690, %v2698
    %v2700 = vlaneseq
    %v2701 = vshrl.u32 %v2700, 7
    %v2702 = vsub.s32 2, %v2701
    %v2703 = vrot.slane %v2690, %v2702
    %v2704 = vlaneseq
    %v2705 = vshrl.u32 %v2704, 7
    %v2706 = vsub.s32 3, %v2705
    %v2707 = vrot.slane %v2690, %v2706
    %v2712 = vmul.f32 %v2605, %v2695
    %v2713 = vmul.f32 %v2606, %v2699
    %v2714 = vmul.f32 %v2607, %v2703
    %v2715 = vmul.f32 %v2608, %v2707
    %v2720 = vcombine.low %v2712, %v2713
    %v2721 = vcombine.low %v2714, %v2715
    %v2723 = vunpack.c.l.s4 1966171168
    %v2724 = vunpack.c.0.s8 %v2723
    %v2725 = vlaneseq
    %v2726 = vshrl.u32 %v2725, 7
    %v2727 = vsub.s32 %v2724, %v2726
    %v2728 = vrot.slane %v2720, %v2727
    %v2730 = vunpack.c.l.s4 1966171168
    %v2731 = vunpack.c.0.s8 %v2730
    %v2732 = vlaneseq
    %v2733 = vshrl.u32 %v2732, 7
    %v2734 = vsub.s32 %v2731, %v2733
    %v2735 = vrot.slane %v2721, %v2734
    %v2736 = vcombine.low %v2728, %v2735
    %v2738 = vunpack.c.l.s4 1966171168
    %v2739 = vunpack.c.0.s8 %v2738
    %v2740 = vlaneseq
    %v2741 = vshrl.u32 %v2740, 7
    %v2742 = vsub.s32 %v2739, %v2741
    %v2743 = vrot.slane %v2736, %v2742
    %v2745 = vsub.f32 %v2580, %v2743
    %v2746 = vmul.f32 %v2491, %v2695
    %v2747 = vmul.f32 %v2493, %v2699
    %v2748 = vmul.f32 %v2573, %v2703
    %v2749 = vmul.f32 %v2575, %v2707
    %v2751 = vlaneseq
    %v2752 = vshrl.u32 %v2751, 7
    %v2753 = vsub.s32 0, %v2752
    %v2754 = vrot.slane %v2745, %v2753
    %v2755 = vlaneseq
    %v2756 = vshrl.u32 %v2755, 7
    %v2757 = vsub.s32 1, %v2756
    %v2758 = vrot.slane %v2745, %v2757
    %v2759 = vlaneseq
    %v2760 = vshrl.u32 %v2759, 7
    %v2761 = vsub.s32 2, %v2760
    %v2762 = vrot.slane %v2745, %v2761
    %v2763 = vlaneseq
    %v2764 = vshrl.u32 %v2763, 7
    %v2765 = vsub.s32 3, %v2764
    %v2766 = vrot.slane %v2745, %v2765
    %v2771 = vadd.f32 %v2746, %v2754
    %v2772 = vadd.f32 %v2747, %v2758
    %v2773 = vadd.f32 %v2748, %v2762
    %v2774 = vadd.f32 %v2749, %v2766
    %v2775 = vmax.f32 %v2771, 0.0
    %v2776 = vmax.f32 %v2772, 0.0
    %v2777 = vmax.f32 %v2773, 0.0
    %v2778 = vmax.f32 %v2774, 0.0
    %v2779 = vpack.c.bf16 %v2775, %v2775
    %v2780 = vpack.c.bf16 %v2776, %v2776
    %v2781 = vpack.c.bf16 %v2777, %v2777
    %v2782 = vpack.c.bf16 %v2778, %v2778
    %s2783 = smul.u32 %s505, 2
    %s2784 = sshll.u32 %s2783, 4
    %2785 = dma.done %s81, %s2784
    %v2786 = vld [vmem:[#allocation4] sm:$0xff]
    %v2787 = vld [vmem:[#allocation4 + $0x8] sm:$0xff]
    %v2788 = vld [vmem:[#allocation4 + $0x10] sm:$0xff]
    %v2789 = vld [vmem:[#allocation4 + $0x18] sm:$0xff]
    %v2790 = vld [vmem:[#allocation4 + $0x20] sm:$0xff]
    %v2791 = vld [vmem:[#allocation4 + $0x28] sm:$0xff]
    %v2792 = vld [vmem:[#allocation4 + $0x30] sm:$0xff]
    %v2793 = vld [vmem:[#allocation4 + $0x38] sm:$0xff]
    %v2794 = vld [vmem:[#allocation4 + $0x40] sm:$0xff]
    %v2795 = vld [vmem:[#allocation4 + $0x48] sm:$0xff]
    %v2796 = vld [vmem:[#allocation4 + $0x50] sm:$0xff]
    %v2797 = vld [vmem:[#allocation4 + $0x58] sm:$0xff]
    %v2798 = vld [vmem:[#allocation4 + $0x60] sm:$0xff]
    %v2799 = vld [vmem:[#allocation4 + $0x68] sm:$0xff]
    %v2800 = vld [vmem:[#allocation4 + $0x70] sm:$0xff]
    %v2801 = vld [vmem:[#allocation4 + $0x78] sm:$0xff]
    %v2802 = vld [vmem:[#allocation4 + $0x80] sm:$0xff]
    %v2803 = vld [vmem:[#allocation4 + $0x88] sm:$0xff]
    %v2804 = vld [vmem:[#allocation4 + $0x90] sm:$0xff]
    %v2805 = vld [vmem:[#allocation4 + $0x98] sm:$0xff]
    %v2806 = vld [vmem:[#allocation4 + $0xa0] sm:$0xff]
    %v2807 = vld [vmem:[#allocation4 + $0xa8] sm:$0xff]
    %v2808 = vld [vmem:[#allocation4 + $0xb0] sm:$0xff]
    %v2809 = vld [vmem:[#allocation4 + $0xb8] sm:$0xff]
    %v2810 = vld [vmem:[#allocation4 + $0xc0] sm:$0xff]
    %v2811 = vld [vmem:[#allocation4 + $0xc8] sm:$0xff]
    %v2812 = vld [vmem:[#allocation4 + $0xd0] sm:$0xff]
    %v2813 = vld [vmem:[#allocation4 + $0xd8] sm:$0xff]
    %v2814 = vld [vmem:[#allocation4 + $0xe0] sm:$0xff]
    %v2815 = vld [vmem:[#allocation4 + $0xe8] sm:$0xff]
    %v2816 = vld [vmem:[#allocation4 + $0xf0] sm:$0xff]
    %v2817 = vld [vmem:[#allocation4 + $0xf8] sm:$0xff]
    %v2818 = vld [vmem:[#allocation4 + $0x100] sm:$0xff]
    %v2819 = vld [vmem:[#allocation4 + $0x108] sm:$0xff]
    %v2820 = vld [vmem:[#allocation4 + $0x110] sm:$0xff]
    %v2821 = vld [vmem:[#allocation4 + $0x118] sm:$0xff]
    %v2822 = vld [vmem:[#allocation4 + $0x120] sm:$0xff]
    %v2823 = vld [vmem:[#allocation4 + $0x128] sm:$0xff]
    %v2824 = vld [vmem:[#allocation4 + $0x130] sm:$0xff]
    %v2825 = vld [vmem:[#allocation4 + $0x138] sm:$0xff]
    %v2826 = vld [vmem:[#allocation4 + $0x140] sm:$0xff]
    %v2827 = vld [vmem:[#allocation4 + $0x148] sm:$0xff]
    %v2828 = vld [vmem:[#allocation4 + $0x150] sm:$0xff]
    %v2829 = vld [vmem:[#allocation4 + $0x158] sm:$0xff]
    %v2830 = vld [vmem:[#allocation4 + $0x160] sm:$0xff]
    %v2831 = vld [vmem:[#allocation4 + $0x168] sm:$0xff]
    %v2832 = vld [vmem:[#allocation4 + $0x170] sm:$0xff]
    %v2833 = vld [vmem:[#allocation4 + $0x178] sm:$0xff]
    %v2834 = vld [vmem:[#allocation4 + $0x180] sm:$0xff]
    %v2835 = vld [vmem:[#allocation4 + $0x188] sm:$0xff]
    %v2836 = vld [vmem:[#allocation4 + $0x190] sm:$0xff]
    %v2837 = vld [vmem:[#allocation4 + $0x198] sm:$0xff]
    %v2838 = vld [vmem:[#allocation4 + $0x1a0] sm:$0xff]
    %v2839 = vld [vmem:[#allocation4 + $0x1a8] sm:$0xff]
    %v2840 = vld [vmem:[#allocation4 + $0x1b0] sm:$0xff]
    %v2841 = vld [vmem:[#allocation4 + $0x1b8] sm:$0xff]
    %v2842 = vld [vmem:[#allocation4 + $0x1c0] sm:$0xff]
    %v2843 = vld [vmem:[#allocation4 + $0x1c8] sm:$0xff]
    %v2844 = vld [vmem:[#allocation4 + $0x1d0] sm:$0xff]
    %v2845 = vld [vmem:[#allocation4 + $0x1d8] sm:$0xff]
    %v2846 = vld [vmem:[#allocation4 + $0x1e0] sm:$0xff]
    %v2847 = vld [vmem:[#allocation4 + $0x1e8] sm:$0xff]
    %v2848 = vld [vmem:[#allocation4 + $0x1f0] sm:$0xff]
    %v2849 = vld [vmem:[#allocation4 + $0x1f8] sm:$0xff]
    %v2914 = vunpack.c.l.b16 %v2786
    %v2915 = vunpack.c.h.b16 %v2786
    %v2916 = vunpack.c.l.b16 %v2787
    %v2917 = vunpack.c.h.b16 %v2787
    %v2918 = vunpack.c.l.b16 %v2788
    %v2919 = vunpack.c.h.b16 %v2788
    %v2920 = vunpack.c.l.b16 %v2789
    %v2921 = vunpack.c.h.b16 %v2789
    %v2922 = vunpack.c.l.b16 %v2790
    %v2923 = vunpack.c.h.b16 %v2790
    %v2924 = vunpack.c.l.b16 %v2791
    %v2925 = vunpack.c.h.b16 %v2791
    %v2926 = vunpack.c.l.b16 %v2792
    %v2927 = vunpack.c.h.b16 %v2792
    %v2928 = vunpack.c.l.b16 %v2793
    %v2929 = vunpack.c.h.b16 %v2793
    %v2930 = vunpack.c.l.b16 %v2794
    %v2931 = vunpack.c.h.b16 %v2794
    %v2932 = vunpack.c.l.b16 %v2795
    %v2933 = vunpack.c.h.b16 %v2795
    %v2934 = vunpack.c.l.b16 %v2796
    %v2935 = vunpack.c.h.b16 %v2796
    %v2936 = vunpack.c.l.b16 %v2797
    %v2937 = vunpack.c.h.b16 %v2797
    %v2938 = vunpack.c.l.b16 %v2798
    %v2939 = vunpack.c.h.b16 %v2798
    %v2940 = vunpack.c.l.b16 %v2799
    %v2941 = vunpack.c.h.b16 %v2799
    %v2942 = vunpack.c.l.b16 %v2800
    %v2943 = vunpack.c.h.b16 %v2800
    %v2944 = vunpack.c.l.b16 %v2801
    %v2945 = vunpack.c.h.b16 %v2801
    %v2946 = vunpack.c.l.b16 %v2802
    %v2947 = vunpack.c.h.b16 %v2802
    %v2948 = vunpack.c.l.b16 %v2803
    %v2949 = vunpack.c.h.b16 %v2803
    %v2950 = vunpack.c.l.b16 %v2804
    %v2951 = vunpack.c.h.b16 %v2804
    %v2952 = vunpack.c.l.b16 %v2805
    %v2953 = vunpack.c.h.b16 %v2805
    %v2954 = vunpack.c.l.b16 %v2806
    %v2955 = vunpack.c.h.b16 %v2806
    %v2956 = vunpack.c.l.b16 %v2807
    %v2957 = vunpack.c.h.b16 %v2807
    %v2958 = vunpack.c.l.b16 %v2808
    %v2959 = vunpack.c.h.b16 %v2808
    %v2960 = vunpack.c.l.b16 %v2809
    %v2961 = vunpack.c.h.b16 %v2809
    %v2962 = vunpack.c.l.b16 %v2810
    %v2963 = vunpack.c.h.b16 %v2810
    %v2964 = vunpack.c.l.b16 %v2811
    %v2965 = vunpack.c.h.b16 %v2811
    %v2966 = vunpack.c.l.b16 %v2812
    %v2967 = vunpack.c.h.b16 %v2812
    %v2968 = vunpack.c.l.b16 %v2813
    %v2969 = vunpack.c.h.b16 %v2813
    %v2970 = vunpack.c.l.b16 %v2814
    %v2971 = vunpack.c.h.b16 %v2814
    %v2972 = vunpack.c.l.b16 %v2815
    %v2973 = vunpack.c.h.b16 %v2815
    %v2974 = vunpack.c.l.b16 %v2816
    %v2975 = vunpack.c.h.b16 %v2816
    %v2976 = vunpack.c.l.b16 %v2817
    %v2977 = vunpack.c.h.b16 %v2817
    %v2978 = vunpack.c.l.b16 %v2818
    %v2979 = vunpack.c.h.b16 %v2818
    %v2980 = vunpack.c.l.b16 %v2819
    %v2981 = vunpack.c.h.b16 %v2819
    %v2982 = vunpack.c.l.b16 %v2820
    %v2983 = vunpack.c.h.b16 %v2820
    %v2984 = vunpack.c.l.b16 %v2821
    %v2985 = vunpack.c.h.b16 %v2821
    %v2986 = vunpack.c.l.b16 %v2822
    %v2987 = vunpack.c.h.b16 %v2822
    %v2988 = vunpack.c.l.b16 %v2823
    %v2989 = vunpack.c.h.b16 %v2823
    %v2990 = vunpack.c.l.b16 %v2824
    %v2991 = vunpack.c.h.b16 %v2824
    %v2992 = vunpack.c.l.b16 %v2825
    %v2993 = vunpack.c.h.b16 %v2825
    %v2994 = vunpack.c.l.b16 %v2826
    %v2995 = vunpack.c.h.b16 %v2826
    %v2996 = vunpack.c.l.b16 %v2827
    %v2997 = vunpack.c.h.b16 %v2827
    %v2998 = vunpack.c.l.b16 %v2828
    %v2999 = vunpack.c.h.b16 %v2828
    %v3000 = vunpack.c.l.b16 %v2829
    %v3001 = vunpack.c.h.b16 %v2829
    %v3002 = vunpack.c.l.b16 %v2830
    %v3003 = vunpack.c.h.b16 %v2830
    %v3004 = vunpack.c.l.b16 %v2831
    %v3005 = vunpack.c.h.b16 %v2831
    %v3006 = vunpack.c.l.b16 %v2832
    %v3007 = vunpack.c.h.b16 %v2832
    %v3008 = vunpack.c.l.b16 %v2833
    %v3009 = vunpack.c.h.b16 %v2833
    %v3010 = vunpack.c.l.b16 %v2834
    %v3011 = vunpack.c.h.b16 %v2834
    %v3012 = vunpack.c.l.b16 %v2835
    %v3013 = vunpack.c.h.b16 %v2835
    %v3014 = vunpack.c.l.b16 %v2836
    %v3015 = vunpack.c.h.b16 %v2836
    %v3016 = vunpack.c.l.b16 %v2837
    %v3017 = vunpack.c.h.b16 %v2837
    %v3018 = vunpack.c.l.b16 %v2838
    %v3019 = vunpack.c.h.b16 %v2838
    %v3020 = vunpack.c.l.b16 %v2839
    %v3021 = vunpack.c.h.b16 %v2839
    %v3022 = vunpack.c.l.b16 %v2840
    %v3023 = vunpack.c.h.b16 %v2840
    %v3024 = vunpack.c.l.b16 %v2841
    %v3025 = vunpack.c.h.b16 %v2841
    %v3026 = vunpack.c.l.b16 %v2842
    %v3027 = vunpack.c.h.b16 %v2842
    %v3028 = vunpack.c.l.b16 %v2843
    %v3029 = vunpack.c.h.b16 %v2843
    %v3030 = vunpack.c.l.b16 %v2844
    %v3031 = vunpack.c.h.b16 %v2844
    %v3032 = vunpack.c.l.b16 %v2845
    %v3033 = vunpack.c.h.b16 %v2845
    %v3034 = vunpack.c.l.b16 %v2846
    %v3035 = vunpack.c.h.b16 %v2846
    %v3036 = vunpack.c.l.b16 %v2847
    %v3037 = vunpack.c.h.b16 %v2847
    %v3038 = vunpack.c.l.b16 %v2848
    %v3039 = vunpack.c.h.b16 %v2848
    %v3040 = vunpack.c.l.b16 %v2849
    %v3041 = vunpack.c.h.b16 %v2849
    %v3042 = vpack.c.b16 %v2916, %v2914
    %v3043 = vpack.c.b16 %v2917, %v2915
    %v3044 = vpack.c.b16 %v2920, %v2918
    %v3045 = vpack.c.b16 %v2921, %v2919
    %v3046 = vpack.c.b16 %v2924, %v2922
    %v3047 = vpack.c.b16 %v2925, %v2923
    %v3048 = vpack.c.b16 %v2928, %v2926
    %v3049 = vpack.c.b16 %v2929, %v2927
    %v3050 = vpack.c.b16 %v2932, %v2930
    %v3051 = vpack.c.b16 %v2933, %v2931
    %v3052 = vpack.c.b16 %v2936, %v2934
    %v3053 = vpack.c.b16 %v2937, %v2935
    %v3054 = vpack.c.b16 %v2940, %v2938
    %v3055 = vpack.c.b16 %v2941, %v2939
    %v3056 = vpack.c.b16 %v2944, %v2942
    %v3057 = vpack.c.b16 %v2945, %v2943
    %v3058 = vpack.c.b16 %v2948, %v2946
    %v3059 = vpack.c.b16 %v2949, %v2947
    %v3060 = vpack.c.b16 %v2952, %v2950
    %v3061 = vpack.c.b16 %v2953, %v2951
    %v3062 = vpack.c.b16 %v2956, %v2954
    %v3063 = vpack.c.b16 %v2957, %v2955
    %v3064 = vpack.c.b16 %v2960, %v2958
    %v3065 = vpack.c.b16 %v2961, %v2959
    %v3066 = vpack.c.b16 %v2964, %v2962
    %v3067 = vpack.c.b16 %v2965, %v2963
    %v3068 = vpack.c.b16 %v2968, %v2966
    %v3069 = vpack.c.b16 %v2969, %v2967
    %v3070 = vpack.c.b16 %v2972, %v2970
    %v3071 = vpack.c.b16 %v2973, %v2971
    %v3072 = vpack.c.b16 %v2976, %v2974
    %v3073 = vpack.c.b16 %v2977, %v2975
    %v3074 = vpack.c.b16 %v2980, %v2978
    %v3075 = vpack.c.b16 %v2981, %v2979
    %v3076 = vpack.c.b16 %v2984, %v2982
    %v3077 = vpack.c.b16 %v2985, %v2983
    %v3078 = vpack.c.b16 %v2988, %v2986
    %v3079 = vpack.c.b16 %v2989, %v2987
    %v3080 = vpack.c.b16 %v2992, %v2990
    %v3081 = vpack.c.b16 %v2993, %v2991
    %v3082 = vpack.c.b16 %v2996, %v2994
    %v3083 = vpack.c.b16 %v2997, %v2995
    %v3084 = vpack.c.b16 %v3000, %v2998
    %v3085 = vpack.c.b16 %v3001, %v2999
    %v3086 = vpack.c.b16 %v3004, %v3002
    %v3087 = vpack.c.b16 %v3005, %v3003
    %v3088 = vpack.c.b16 %v3008, %v3006
    %v3089 = vpack.c.b16 %v3009, %v3007
    %v3090 = vpack.c.b16 %v3012, %v3010
    %v3091 = vpack.c.b16 %v3013, %v3011
    %v3092 = vpack.c.b16 %v3016, %v3014
    %v3093 = vpack.c.b16 %v3017, %v3015
    %v3094 = vpack.c.b16 %v3020, %v3018
    %v3095 = vpack.c.b16 %v3021, %v3019
    %v3096 = vpack.c.b16 %v3024, %v3022
    %v3097 = vpack.c.b16 %v3025, %v3023
    %v3098 = vpack.c.b16 %v3028, %v3026
    %v3099 = vpack.c.b16 %v3029, %v3027
    %v3100 = vpack.c.b16 %v3032, %v3030
    %v3101 = vpack.c.b16 %v3033, %v3031
    %v3102 = vpack.c.b16 %v3036, %v3034
    %v3103 = vpack.c.b16 %v3037, %v3035
    %v3104 = vpack.c.b16 %v3040, %v3038
    %v3105 = vpack.c.b16 %v3041, %v3039
    %3170 = vmatprep.subr.bf16.mxu0 %v3057
    %3171 = vmatpush1.bf16.msra.mxu0 %v3056
    %3172 = vmatprep.subr.bf16.mxu0 %v3055
    %3173 = vmatpush1.bf16.msra.mxu0 %v3054
    %3174 = vmatprep.subr.bf16.mxu0 %v3053
    %3175 = vmatpush1.bf16.msra.mxu0 %v3052
    %3176 = vmatprep.subr.bf16.mxu0 %v3051
    %3177 = vmatpush1.bf16.msra.mxu0 %v3050
    %3178 = vmatprep.subr.bf16.mxu0 %v3049
    %3179 = vmatpush1.bf16.msra.mxu0 %v3048
    %3180 = vmatprep.subr.bf16.mxu0 %v3047
    %3181 = vmatpush1.bf16.msra.mxu0 %v3046
    %3182 = vmatprep.subr.bf16.mxu0 %v3045
    %3183 = vmatpush1.bf16.msra.mxu0 %v3044
    %3184 = vmatprep.subr.bf16.mxu0 %v3043
    %3185 = vmatpush1.bf16.msra.mxu0 %v3042
    %3186 = vmatprep.subr.bf16.mxu0 %v3073
    %3187 = vmatpush2.bf16.msra.mxu0 %v3072
    %3188 = vmatprep.subr.bf16.mxu0 %v3071
    %3189 = vmatpush2.bf16.msra.mxu0 %v3070
    %3190 = vmatprep.subr.bf16.mxu0 %v3069
    %3191 = vmatpush2.bf16.msra.mxu0 %v3068
    %3192 = vmatprep.subr.bf16.mxu0 %v3067
    %3193 = vmatpush2.bf16.msra.mxu0 %v3066
    %3194 = vmatprep.subr.bf16.mxu0 %v3065
    %3195 = vmatpush2.bf16.msra.mxu0 %v3064
    %3196 = vmatprep.subr.bf16.mxu0 %v3063
    %3197 = vmatpush2.bf16.msra.mxu0 %v3062
    %3198 = vmatprep.subr.bf16.mxu0 %v3061
    %3199 = vmatpush2.bf16.msra.mxu0 %v3060
    %3200 = vmatprep.subr.bf16.mxu0 %v3059
    %3201 = vmatpush2.bf16.msra.mxu0 %v3058
    %3202 = vmatprep.mubr.bf16.mxu0 %v2780
    %3203 = vmatmul.mubr.bf16.gmra.mxu0 %v2779
    %v3204 = vpop.f32.mrf.mxu0
    %v3205 = vadd.f32 0.0, %v3204
    %v3206 = vpop.f32.mrf.mxu0
    %v3207 = vadd.f32 0.0, %v3206
    %v3208 = vpop.f32.mrf.mxu0
    %v3209 = vpop.f32.mrf.mxu0
    %3210 = vdwg.mxu0
    %3211 = vmatprep.subr.bf16.mxu0 %v3089
    %3212 = vmatpush1.bf16.msra.mxu0 %v3088
    %3213 = vmatprep.subr.bf16.mxu0 %v3087
    %3214 = vmatpush1.bf16.msra.mxu0 %v3086
    %3215 = vmatprep.subr.bf16.mxu0 %v3085
    %3216 = vmatpush1.bf16.msra.mxu0 %v3084
    %3217 = vmatprep.subr.bf16.mxu0 %v3083
    %3218 = vmatpush1.bf16.msra.mxu0 %v3082
    %3219 = vmatprep.subr.bf16.mxu0 %v3081
    %3220 = vmatpush1.bf16.msra.mxu0 %v3080
    %3221 = vmatprep.subr.bf16.mxu0 %v3079
    %3222 = vmatpush1.bf16.msra.mxu0 %v3078
    %3223 = vmatprep.subr.bf16.mxu0 %v3077
    %3224 = vmatpush1.bf16.msra.mxu0 %v3076
    %3225 = vmatprep.subr.bf16.mxu0 %v3075
    %3226 = vmatpush1.bf16.msra.mxu0 %v3074
    %3227 = vmatprep.subr.bf16.mxu0 %v3105
    %3228 = vmatpush2.bf16.msra.mxu0 %v3104
    %3229 = vmatprep.subr.bf16.mxu0 %v3103
    %3230 = vmatpush2.bf16.msra.mxu0 %v3102
    %3231 = vmatprep.subr.bf16.mxu0 %v3101
    %3232 = vmatpush2.bf16.msra.mxu0 %v3100
    %3233 = vmatprep.subr.bf16.mxu0 %v3099
    %3234 = vmatpush2.bf16.msra.mxu0 %v3098
    %3235 = vmatprep.subr.bf16.mxu0 %v3097
    %3236 = vmatpush2.bf16.msra.mxu0 %v3096
    %3237 = vmatprep.subr.bf16.mxu0 %v3095
    %3238 = vmatpush2.bf16.msra.mxu0 %v3094
    %3239 = vmatprep.subr.bf16.mxu0 %v3093
    %3240 = vmatpush2.bf16.msra.mxu0 %v3092
    %3241 = vmatprep.subr.bf16.mxu0 %v3091
    %3242 = vmatpush2.bf16.msra.mxu0 %v3090
    %3243 = vmatprep.mubr.bf16.mxu0 %v2782
    %3244 = vmatmul.mubr.bf16.gmra.mxu0 %v2781
    %v3245 = vpop.f32.mrf.mxu0
    %v3246 = vadd.f32 %v3205, %v3245
    %v3247 = vpop.f32.mrf.mxu0
    %v3248 = vadd.f32 %v3207, %v3247
    %v3249 = vpop.f32.mrf.mxu0
    %v3250 = vpop.f32.mrf.mxu0
    %3251 = vdwg.mxu0
    %v3252 = vld [vmem:[#allocation13 + $0x18] sm:$0x3]
    %v3253 = vld [vmem:[#allocation13 + $0x1a] sm:$0x3]
    %v3254 = vrot.slane %v3246, 4
    %v3255 = vadd.f32 %v3246, %v3254
    %v3256 = vrot.slane %v3255, 2
    %v3257 = vadd.f32 %v3255, %v3256
    %v3258 = vrot.slane %v3257, 1
    %v3259 = vadd.f32 %v3257, %v3258
    %v3260 = vrot.slane %v3248, 4
    %v3261 = vadd.f32 %v3248, %v3260
    %v3262 = vrot.slane %v3261, 2
    %v3263 = vadd.f32 %v3261, %v3262
    %v3264 = vrot.slane %v3263, 1
    %v3265 = vadd.f32 %v3263, %v3264
    %v3266 = vmul.f32 %v3259, 0.125
    %v3267 = vmul.f32 %v3265, 0.125
    %v3268 = vmul.f32 %v3246, %v3246
    %v3269 = vmul.f32 %v3248, %v3248
    %v3270 = vrot.slane %v3268, 4
    %v3271 = vadd.f32 %v3268, %v3270
    %v3272 = vrot.slane %v3271, 2
    %v3273 = vadd.f32 %v3271, %v3272
    %v3274 = vrot.slane %v3273, 1
    %v3275 = vadd.f32 %v3273, %v3274
    %v3276 = vrot.slane %v3269, 4
    %v3277 = vadd.f32 %v3269, %v3276
    %v3278 = vrot.slane %v3277, 2
    %v3279 = vadd.f32 %v3277, %v3278
    %v3280 = vrot.slane %v3279, 1
    %v3281 = vadd.f32 %v3279, %v3280
    %v3282 = vmul.f32 %v3275, 0.125
    %v3283 = vmul.f32 %v3281, 0.125
    %v3284 = vmul.f32 %v3266, %v3266
    %v3285 = vmul.f32 %v3267, %v3267
    %v3286 = vsub.f32 %v3282, %v3284
    %v3287 = vsub.f32 %v3283, %v3285
    %v3288 = vmax.f32 %v3286, 0.0
    %v3289 = vmax.f32 %v3287, 0.0
    %v3290 = vadd.f32 %v3288, 1e-05
    %v3291 = vadd.f32 %v3289, 1e-05
    %v3292 = vrsqrt.pop %v3290
    %v3293 = vrsqrt.pop %v3291
    %v3296 = vcombine.low %v3292, %v3293
    %v3298 = vunpack.c.l.s4 1966171168
    %v3299 = vunpack.c.0.s8 %v3298
    %v3300 = vlaneseq
    %v3301 = vshrl.u32 %v3300, 7
    %v3302 = vsub.s32 %v3299, %v3301
    %v3303 = vrot.slane %v3296, %v3302
    %v3305 = vunpack.c.l.s4 1966171168
    %v3306 = vunpack.c.0.s8 %v3305
    %v3307 = vlaneseq
    %v3308 = vshrl.u32 %v3307, 7
    %v3309 = vsub.s32 %v3306, %v3308
    %v3310 = vrot.slane %v3303, %v3309
    %v3312 = vmul.f32 %v3252, %v3310
    %v3314 = vlaneseq
    %v3315 = vshrl.u32 %v3314, 7
    %v3316 = vsub.s32 0, %v3315
    %v3317 = vrot.slane %v3312, %v3316
    %v3318 = vlaneseq
    %v3319 = vshrl.u32 %v3318, 7
    %v3320 = vsub.s32 1, %v3319
    %v3321 = vrot.slane %v3312, %v3320
    %v3324 = vmul.f32 %v3266, %v3317
    %v3325 = vmul.f32 %v3267, %v3321
    %v3328 = vcombine.low %v3324, %v3325
    %v3330 = vunpack.c.l.s4 1966171168
    %v3331 = vunpack.c.0.s8 %v3330
    %v3332 = vlaneseq
    %v3333 = vshrl.u32 %v3332, 7
    %v3334 = vsub.s32 %v3331, %v3333
    %v3335 = vrot.slane %v3328, %v3334
    %v3337 = vunpack.c.l.s4 1966171168
    %v3338 = vunpack.c.0.s8 %v3337
    %v3339 = vlaneseq
    %v3340 = vshrl.u32 %v3339, 7
    %v3341 = vsub.s32 %v3338, %v3340
    %v3342 = vrot.slane %v3335, %v3341
    %v3344 = vsub.f32 %v3253, %v3342
    %v3345 = vmul.f32 %v3246, %v3317
    %v3346 = vmul.f32 %v3248, %v3321
    %v3348 = vlaneseq
    %v3349 = vshrl.u32 %v3348, 7
    %v3350 = vsub.s32 0, %v3349
    %v3351 = vrot.slane %v3344, %v3350
    %v3352 = vlaneseq
    %v3353 = vshrl.u32 %v3352, 7
    %v3354 = vsub.s32 1, %v3353
    %v3355 = vrot.slane %v3344, %v3354
    %v3358 = vadd.f32 %v3345, %v3351
    %v3359 = vadd.f32 %v3346, %v3355
    %v3360 = vmax.f32 %v3358, 0.0
    %v3361 = vmax.f32 %v3359, 0.0
    %v3362 = vpack.c.bf16 %v3360, %v3360
    %v3363 = vpack.c.bf16 %v3361, %v3361
    %s3364 = smul.u32 4, 32
    %s3365 = smul.u32 %s3364, 1
    %s3366 = sshll.u32 %s3365, 4
    %3367 = dma.done %s93, %s3366
    %v3368 = vld [vmem:[#allocation5] sm:$0xf]
    %v3369 = vld [vmem:[#allocation5 + $0x4] sm:$0xf]
    %v3370 = vld [vmem:[#allocation5 + $0x8] sm:$0xf]
    %v3371 = vld [vmem:[#allocation5 + $0xc] sm:$0xf]
    %v3372 = vld [vmem:[#allocation5 + $0x10] sm:$0xf]
    %v3373 = vld [vmem:[#allocation5 + $0x14] sm:$0xf]
    %v3374 = vld [vmem:[#allocation5 + $0x18] sm:$0xf]
    %v3375 = vld [vmem:[#allocation5 + $0x1c] sm:$0xf]
    %v3376 = vld [vmem:[#allocation5 + $0x20] sm:$0xf]
    %v3377 = vld [vmem:[#allocation5 + $0x24] sm:$0xf]
    %v3378 = vld [vmem:[#allocation5 + $0x28] sm:$0xf]
    %v3379 = vld [vmem:[#allocation5 + $0x2c] sm:$0xf]
    %v3380 = vld [vmem:[#allocation5 + $0x30] sm:$0xf]
    %v3381 = vld [vmem:[#allocation5 + $0x34] sm:$0xf]
    %v3382 = vld [vmem:[#allocation5 + $0x38] sm:$0xf]
    %v3383 = vld [vmem:[#allocation5 + $0x3c] sm:$0xf]
    %v3384 = vld [vmem:[#allocation5 + $0x40] sm:$0xf]
    %v3385 = vld [vmem:[#allocation5 + $0x44] sm:$0xf]
    %v3386 = vld [vmem:[#allocation5 + $0x48] sm:$0xf]
    %v3387 = vld [vmem:[#allocation5 + $0x4c] sm:$0xf]
    %v3388 = vld [vmem:[#allocation5 + $0x50] sm:$0xf]
    %v3389 = vld [vmem:[#allocation5 + $0x54] sm:$0xf]
    %v3390 = vld [vmem:[#allocation5 + $0x58] sm:$0xf]
    %v3391 = vld [vmem:[#allocation5 + $0x5c] sm:$0xf]
    %v3392 = vld [vmem:[#allocation5 + $0x60] sm:$0xf]
    %v3393 = vld [vmem:[#allocation5 + $0x64] sm:$0xf]
    %v3394 = vld [vmem:[#allocation5 + $0x68] sm:$0xf]
    %v3395 = vld [vmem:[#allocation5 + $0x6c] sm:$0xf]
    %v3396 = vld [vmem:[#allocation5 + $0x70] sm:$0xf]
    %v3397 = vld [vmem:[#allocation5 + $0x74] sm:$0xf]
    %v3398 = vld [vmem:[#allocation5 + $0x78] sm:$0xf]
    %v3399 = vld [vmem:[#allocation5 + $0x7c] sm:$0xf]
    %v3432 = vunpack.c.l.b16 %v3368
    %v3433 = vunpack.c.l.b16 %v3369
    %v3434 = vunpack.c.l.b16 %v3370
    %v3435 = vunpack.c.l.b16 %v3371
    %v3436 = vunpack.c.l.b16 %v3372
    %v3437 = vunpack.c.l.b16 %v3373
    %v3438 = vunpack.c.l.b16 %v3374
    %v3439 = vunpack.c.l.b16 %v3375
    %v3440 = vunpack.c.l.b16 %v3376
    %v3441 = vunpack.c.l.b16 %v3377
    %v3442 = vunpack.c.l.b16 %v3378
    %v3443 = vunpack.c.l.b16 %v3379
    %v3444 = vunpack.c.l.b16 %v3380
    %v3445 = vunpack.c.l.b16 %v3381
    %v3446 = vunpack.c.l.b16 %v3382
    %v3447 = vunpack.c.l.b16 %v3383
    %v3448 = vunpack.c.l.b16 %v3384
    %v3449 = vunpack.c.l.b16 %v3385
    %v3450 = vunpack.c.l.b16 %v3386
    %v3451 = vunpack.c.l.b16 %v3387
    %v3452 = vunpack.c.l.b16 %v3388
    %v3453 = vunpack.c.l.b16 %v3389
    %v3454 = vunpack.c.l.b16 %v3390
    %v3455 = vunpack.c.l.b16 %v3391
    %v3456 = vunpack.c.l.b16 %v3392
    %v3457 = vunpack.c.l.b16 %v3393
    %v3458 = vunpack.c.l.b16 %v3394
    %v3459 = vunpack.c.l.b16 %v3395
    %v3460 = vunpack.c.l.b16 %v3396
    %v3461 = vunpack.c.l.b16 %v3397
    %v3462 = vunpack.c.l.b16 %v3398
    %v3463 = vunpack.c.l.b16 %v3399
    %v3464 = vpack.c.b16 %v3433, %v3432
    %v3465 = vpack.c.b16 %v3435, %v3434
    %v3466 = vpack.c.b16 %v3437, %v3436
    %v3467 = vpack.c.b16 %v3439, %v3438
    %v3468 = vpack.c.b16 %v3441, %v3440
    %v3469 = vpack.c.b16 %v3443, %v3442
    %v3470 = vpack.c.b16 %v3445, %v3444
    %v3471 = vpack.c.b16 %v3447, %v3446
    %v3472 = vpack.c.b16 %v3449, %v3448
    %v3473 = vpack.c.b16 %v3451, %v3450
    %v3474 = vpack.c.b16 %v3453, %v3452
    %v3475 = vpack.c.b16 %v3455, %v3454
    %v3476 = vpack.c.b16 %v3457, %v3456
    %v3477 = vpack.c.b16 %v3459, %v3458
    %v3478 = vpack.c.b16 %v3461, %v3460
    %v3479 = vpack.c.b16 %v3463, %v3462
    %3496 = vmatprep.subr.bf16.mxu0 0
    %3497 = vmatpush1.bf16.msra.mxu0 %v3471
    %3498 = vmatprep.subr.bf16.mxu0 0
    %3499 = vmatpush1.bf16.msra.mxu0 %v3470
    %3500 = vmatprep.subr.bf16.mxu0 0
    %3501 = vmatpush1.bf16.msra.mxu0 %v3469
    %3502 = vmatprep.subr.bf16.mxu0 0
    %3503 = vmatpush1.bf16.msra.mxu0 %v3468
    %3504 = vmatprep.subr.bf16.mxu0 0
    %3505 = vmatpush1.bf16.msra.mxu0 %v3467
    %3506 = vmatprep.subr.bf16.mxu0 0
    %3507 = vmatpush1.bf16.msra.mxu0 %v3466
    %3508 = vmatprep.subr.bf16.mxu0 0
    %3509 = vmatpush1.bf16.msra.mxu0 %v3465
    %3510 = vmatprep.subr.bf16.mxu0 0
    %3511 = vmatpush1.bf16.msra.mxu0 %v3464
    %3512 = vmatprep.subr.bf16.mxu0 0
    %3513 = vmatpush2.bf16.msra.mxu0 %v3479
    %3514 = vmatprep.subr.bf16.mxu0 0
    %3515 = vmatpush2.bf16.msra.mxu0 %v3478
    %3516 = vmatprep.subr.bf16.mxu0 0
    %3517 = vmatpush2.bf16.msra.mxu0 %v3477
    %3518 = vmatprep.subr.bf16.mxu0 0
    %3519 = vmatpush2.bf16.msra.mxu0 %v3476
    %3520 = vmatprep.subr.bf16.mxu0 0
    %3521 = vmatpush2.bf16.msra.mxu0 %v3475
    %3522 = vmatprep.subr.bf16.mxu0 0
    %3523 = vmatpush2.bf16.msra.mxu0 %v3474
    %3524 = vmatprep.subr.bf16.mxu0 0
    %3525 = vmatpush2.bf16.msra.mxu0 %v3473
    %3526 = vmatprep.subr.bf16.mxu0 0
    %3527 = vmatpush2.bf16.msra.mxu0 %v3472
    %3528 = vmatprep.mubr.bf16.mxu0 %v3363
    %3529 = vmatmul.mubr.bf16.gmra.mxu0 %v3362
    %v3530 = vpop.f32.mrf.mxu0
    %v3531 = vadd.f32 0.0, %v3530
    %v3532 = vpop.f32.mrf.mxu0
    %v3533 = vpop.f32.mrf.mxu0
    %v3534 = vpop.f32.mrf.mxu0
    %3535 = vdwg.mxu0
    %v3536 = vld [vmem:[#allocation13 + $0x1c] sm:$0x1]
    %v3537 = vld [vmem:[#allocation13 + $0x1d] sm:$0x1]
    %v3538 = vrot.slane %v3531, 4
    %v3539 = vadd.f32 %v3531, %v3538
    %v3540 = vrot.slane %v3539, 2
    %v3541 = vadd.f32 %v3539, %v3540
    %v3542 = vrot.slane %v3541, 1
    %v3543 = vadd.f32 %v3541, %v3542
    %v3544 = vmul.f32 %v3543, 0.125
    %v3545 = vmul.f32 %v3531, %v3531
    %v3546 = vrot.slane %v3545, 4
    %v3547 = vadd.f32 %v3545, %v3546
    %v3548 = vrot.slane %v3547, 2
    %v3549 = vadd.f32 %v3547, %v3548
    %v3550 = vrot.slane %v3549, 1
    %v3551 = vadd.f32 %v3549, %v3550
    %v3552 = vmul.f32 %v3551, 0.125
    %v3553 = vmul.f32 %v3544, %v3544
    %v3554 = vsub.f32 %v3552, %v3553
    %v3555 = vmax.f32 %v3554, 0.0
    %v3556 = vadd.f32 %v3555, 1e-05
    %v3557 = vrsqrt.pop %v3556
    %v3558 = vmul.f32 %v3536, %v3557
    %v3559 = vmul.f32 %v3544, %v3558
    %v3560 = vsub.f32 %v3537, %v3559
    %v3562 = vlaneseq
    %v3563 = vshrl.u32 %v3562, 7
    %v3564 = vsub.s32 0, %v3563
    %v3565 = vrot.slane %v3558, %v3564
    %v3567 = vmul.f32 %v3531, %v3565
    %v3569 = vlaneseq
    %v3570 = vshrl.u32 %v3569, 7
    %v3571 = vsub.s32 0, %v3570
    %v3572 = vrot.slane %v3560, %v3571
    %v3574 = vadd.f32 %v3567, %v3572
    %v3575 = vmax.f32 %v3574, 0.0
    %v3576 = vpack.c.bf16 %v3575, %v3575
    %s3577 = smul.u32 4, 16
    %s3578 = smul.u32 %s3577, 1
    %s3579 = sshll.u32 %s3578, 4
    %3580 = dma.done %s105, %s3579
    %v3581 = vld [vmem:[#allocation13 + $0x1e] sm:$0x1]
    %v3582 = vld [vmem:[#allocation6] sm:$0xf]
    %v3583 = vld [vmem:[#allocation6 + $0x4] sm:$0xf]
    %v3584 = vld [vmem:[#allocation6 + $0x8] sm:$0xf]
    %v3585 = vld [vmem:[#allocation6 + $0xc] sm:$0xf]
    %v3586 = vld [vmem:[#allocation6 + $0x10] sm:$0xf]
    %v3587 = vld [vmem:[#allocation6 + $0x14] sm:$0xf]
    %v3588 = vld [vmem:[#allocation6 + $0x18] sm:$0xf]
    %v3589 = vld [vmem:[#allocation6 + $0x1c] sm:$0xf]
    %v3590 = vld [vmem:[#allocation6 + $0x20] sm:$0xf]
    %v3591 = vld [vmem:[#allocation6 + $0x24] sm:$0xf]
    %v3592 = vld [vmem:[#allocation6 + $0x28] sm:$0xf]
    %v3593 = vld [vmem:[#allocation6 + $0x2c] sm:$0xf]
    %v3594 = vld [vmem:[#allocation6 + $0x30] sm:$0xf]
    %v3595 = vld [vmem:[#allocation6 + $0x34] sm:$0xf]
    %v3596 = vld [vmem:[#allocation6 + $0x38] sm:$0xf]
    %v3597 = vld [vmem:[#allocation6 + $0x3c] sm:$0xf]
    %v3599 = vlaneseq
    %v3600 = vshrl.u32 %v3599, 7
    %v3601 = vsub.s32 0, %v3600
    %v3602 = vrot.slane %v3581, %v3601
    %v3620 = vunpack.c.l.b16 %v3582
    %v3621 = vunpack.c.l.b16 %v3583
    %v3622 = vunpack.c.l.b16 %v3584
    %v3623 = vunpack.c.l.b16 %v3585
    %v3624 = vunpack.c.l.b16 %v3586
    %v3625 = vunpack.c.l.b16 %v3587
    %v3626 = vunpack.c.l.b16 %v3588
    %v3627 = vunpack.c.l.b16 %v3589
    %v3628 = vunpack.c.l.b16 %v3590
    %v3629 = vunpack.c.l.b16 %v3591
    %v3630 = vunpack.c.l.b16 %v3592
    %v3631 = vunpack.c.l.b16 %v3593
    %v3632 = vunpack.c.l.b16 %v3594
    %v3633 = vunpack.c.l.b16 %v3595
    %v3634 = vunpack.c.l.b16 %v3596
    %v3635 = vunpack.c.l.b16 %v3597
    %v3636 = vpack.c.b16 %v3621, %v3620
    %v3637 = vpack.c.b16 %v3623, %v3622
    %v3638 = vpack.c.b16 %v3625, %v3624
    %v3639 = vpack.c.b16 %v3627, %v3626
    %v3640 = vpack.c.b16 %v3629, %v3628
    %v3641 = vpack.c.b16 %v3631, %v3630
    %v3642 = vpack.c.b16 %v3633, %v3632
    %v3643 = vpack.c.b16 %v3635, %v3634
    %3652 = vmatprep.subr.bf16.mxu0 0
    %3653 = vmatpush1.bf16.msra.mxu0 %v3643
    %3654 = vmatprep.subr.bf16.mxu0 0
    %3655 = vmatpush1.bf16.msra.mxu0 %v3642
    %3656 = vmatprep.subr.bf16.mxu0 0
    %3657 = vmatpush1.bf16.msra.mxu0 %v3641
    %3658 = vmatprep.subr.bf16.mxu0 0
    %3659 = vmatpush1.bf16.msra.mxu0 %v3640
    %3660 = vmatprep.subr.bf16.mxu0 0
    %3661 = vmatpush1.bf16.msra.mxu0 %v3639
    %3662 = vmatprep.subr.bf16.mxu0 0
    %3663 = vmatpush1.bf16.msra.mxu0 %v3638
    %3664 = vmatprep.subr.bf16.mxu0 0
    %3665 = vmatpush1.bf16.msra.mxu0 %v3637
    %3666 = vmatprep.subr.bf16.mxu0 0
    %3667 = vmatpush1.bf16.msra.mxu0 %v3636
    %3668 = vmatprep.subr.bf16.mxu0 0
    %3669 = vmatpush2.bf16.msra.mxu0 0
    %3670 = vmatprep.subr.bf16.mxu0 0
    %3671 = vmatpush2.bf16.msra.mxu0 0
    %3672 = vmatprep.subr.bf16.mxu0 0
    %3673 = vmatpush2.bf16.msra.mxu0 0
    %3674 = vmatprep.subr.bf16.mxu0 0
    %3675 = vmatpush2.bf16.msra.mxu0 0
    %3676 = vmatprep.subr.bf16.mxu0 0
    %3677 = vmatpush2.bf16.msra.mxu0 0
    %3678 = vmatprep.subr.bf16.mxu0 0
    %3679 = vmatpush2.bf16.msra.mxu0 0
    %3680 = vmatprep.subr.bf16.mxu0 0
    %3681 = vmatpush2.bf16.msra.mxu0 0
    %3682 = vmatprep.subr.bf16.mxu0 0
    %3683 = vmatpush2.bf16.msra.mxu0 0
    %3684 = vmatprep.mubr.bf16.mxu0 0
    %3685 = vmatmul.mubr.bf16.gmra.mxu0 %v3576
    %v3686 = vpop.f32.mrf.mxu0
    %v3687 = vadd.f32 %v3602, %v3686
    %v3688 = vpop.f32.mrf.mxu0
    %v3689 = vpop.f32.mrf.mxu0
    %v3690 = vpop.f32.mrf.mxu0
    %3691 = vdwg.mxu0
    %3692 = vst [vmem:[#allocation14] sm:$0xff] %v3687
    // Predicated region
    $region46: #{decoder_att_forward_fused.1} parent=1 // pred_check
      _
    $region47: #{decoder_att_forward_fused.1} parent=1 // pred_check_branch
      %3694 = sbr.rel (0) target = $region49
    $region48: #{decoder_att_forward_fused.1} parent=1 // pred_region
      %s3696 = ssub.s32 128, 128
      %3697 = vsyncadd [#allocation10], %s3696
      %s3699 = sshll.u32 [#allocation14], 4
      %s3700 = int_to_ptr.vmem [resolvable:$true] %s3699
      %3702 = dma.vmem_to_hbm [thread:$0]  %s3700, 128, %s8, [#allocation10]
    $region49: #{decoder_att_forward_fused.1} parent=1 // pred_fallthru
      _
    // Predicated region
    $region50: #{decoder_att_forward_fused.1} parent=1 // pred_check
      _
    $region51: #{decoder_att_forward_fused.1} parent=1 // pred_check_branch
      %3704 = sbr.rel (0) target = $region53
    $region52: #{decoder_att_forward_fused.1} parent=1 // pred_region
      %3705 = dma.done [#allocation10], 128
    $region53: #{decoder_att_forward_fused.1} parent=1 // pred_fallthru
      _
    %3706 = vsyncpa [#allocation9], 1
    %3707 = vsyncpa [#allocation12], 1
    %3708 = vsyncpa [#allocation10], 1
  %3709 = vsyncmov [#allocation7]
  %s3710 = vpop.sfrf %3709
  %p3711 = scmp.eq.s32.totalorder %s3710, 0
  %p3712 = pneg %p3711
  %3714 = shalt.err (%p3712)
  %s3715 = scalar_lea.sflag [#allocation7], 1
  %3716 = vsyncmov %s3715
  %s3717 = vpop.sfrf %3716
  %p3718 = scmp.eq.s32.totalorder %s3717, 0
  %p3719 = pneg %p3718
  %3721 = shalt.err (%p3719)
  %s3722 = scalar_lea.sflag [#allocation7], 2
  %3723 = vsyncmov %s3722
  %s3724 = vpop.sfrf %3723
  %p3725 = scmp.eq.s32.totalorder %s3724, 0
  %p3726 = pneg %p3725
  %3728 = shalt.err (%p3726)
  %s3729 = scalar_lea.sflag [#allocation7], 3
  %3730 = vsyncmov %s3729
  %s3731 = vpop.sfrf %3730
  %p3732 = scmp.eq.s32.totalorder %s3731, 0
  %p3733 = pneg %p3732
  %3735 = shalt.err (%p3733)
  %s3736 = scalar_lea.sflag [#allocation7], 4
  %3737 = vsyncmov %s3736
  %s3738 = vpop.sfrf %3737
  %p3739 = scmp.eq.s32.totalorder %s3738, 0
  %p3740 = pneg %p3739
  %3742 = shalt.err (%p3740)

</llo_original>
